<compile_context>
chip_gen: v6e
topology: v6e:2x2x1
jax: 0.10.0
libtpu: 0.0.40
codegen_flags: <defaults>
</compile_context>

<pallas_src>
import jax
import jax.numpy as jnp
from jax.experimental import pallas as pl
from jax.experimental.pallas import tpu as pltpu


# ----------------------------------------------------------------------------
# Fused DecoderBlock kernel: concat + pad + (conv3x3 + BN + ReLU) x 2
# ----------------------------------------------------------------------------
def _decoder_block_kernel(upx_ref, skip_ref, w1_ref, s1_ref, b1_ref,
                          w2t_ref, s2_ref, b2_ref, o_ref, u_ref, h_ref):
    # upx_ref : (1, H2, W2, Cin)     bf16   x, already 2x nearest-upsampled, NHWC
    # skip_ref: (1, H2, W2, Cskip)   bf16
    # w1_ref  : (9*(Cin+Cskip), Cmid) bf16  conv1 weights, rows = (tap-major, channel-minor)
    # s1,b1   : (1, Cmid)            f32    folded BN scale/bias of conv1
    # w2t_ref : (Cout, 9*Cmid)       bf16   conv2 weights, transposed layout
    # s2,b2   : (Cout, 1)            f32    folded BN scale/bias of conv2
    # o_ref   : (1, Cout, H2*W2)     f32    NCHW order, flattened spatial (lane-dense)
    # u_ref   : (H2+2, W2+2, Cin+Cskip) f32 scratch: concat([up(x), skip]) + zero pad
    # h_ref   : (H2+2, W2+2, Cmid)   f32    scratch: conv1 activation + zero pad
    H2 = upx_ref.shape[1]
    W2 = upx_ref.shape[2]
    c1 = u_ref.shape[2]
    cmid = h_ref.shape[2]
    M = H2 * W2

    def im2col_bf16(src_ref, c):
        # One (M, 9*c) bf16 patch matrix (tap-major / channel-minor columns) staged in VMEM,
        # feeding a single MXU contraction instead of 9 small K=c matmuls.
        taps = [src_ref[ky:ky + H2, kx:kx + W2, :].reshape(M, c)
                for ky in range(3) for kx in range(3)]
        return jnp.concatenate(taps, axis=1).astype(jnp.bfloat16)

    # ---- fused upsample(x)-concat-skip with zero padding, entirely in VMEM ----
    u_ref[...] = jnp.zeros(u_ref.shape, u_ref.dtype)
    u_ref[1:H2 + 1, 1:W2 + 1, :] = jnp.concatenate(
        [upx_ref[0], skip_ref[0]], axis=-1).astype(u_ref.dtype)

    # ---- conv1 (3x3, pad 1) as one bf16 MXU matmul, f32 BN + ReLU epilogue ----
    acc1 = jnp.dot(im2col_bf16(u_ref, c1), w1_ref[...],
                   preferred_element_type=jnp.float32)            # (M, Cmid) f32
    y1 = jnp.maximum(acc1 * s1_ref[...] + b1_ref[...], 0.0)

    # intermediate activation never leaves VMEM; re-padded for conv2
    h_ref[...] = jnp.zeros(h_ref.shape, h_ref.dtype)
    h_ref[1:H2 + 1, 1:W2 + 1, :] = y1.reshape(H2, W2, cmid)

    # ---- conv2, computed transposed so the store is lane-dense and already NCHW ----
    acc2 = jax.lax.dot_general(
        w2t_ref[...], im2col_bf16(h_ref, cmid),
        dimension_numbers=(((1,), (1,)), ((), ())),
        preferred_element_type=jnp.float32)                       # (Cout, M) f32
    y2 = jnp.maximum(acc2 * s2_ref[...] + b2_ref[...], 0.0)
    o_ref[0] = y2.astype(o_ref.dtype)


# ----------------------------------------------------------------------------
# Parameter construction (PyTorch-style shapes, BN folded for inference)
# ----------------------------------------------------------------------------
def make_conv_bn_params(key, cin, cout, eps=1e-5):
    k_w, k_g, k_b, k_m, k_v = jax.random.split(key, 5)
    w_oihw = 0.1 * jax.random.normal(k_w, (cout, cin, 3, 3), jnp.float32)
    gamma = 1.0 + 0.1 * jax.random.normal(k_g, (cout,), jnp.float32)
    beta = 0.1 * jax.random.normal(k_b, (cout,), jnp.float32)
    running_mean = 0.1 * jax.random.normal(k_m, (cout,), jnp.float32)
    running_var = jnp.abs(1.0 + 0.1 * jax.random.normal(k_v, (cout,), jnp.float32))
    scale = gamma / jnp.sqrt(running_var + eps)
    bias = beta - running_mean * scale
    return w_oihw, scale, bias


# ----------------------------------------------------------------------------
# DecoderBlock forward
# ----------------------------------------------------------------------------
def decoder_block_forward(x_nchw, skip_nchw, params):
    """x_nchw: (N, Cin, H, W); skip_nchw: (N, Cskip, 2H, 2W). Returns (N, Cout, 2H, 2W)."""
    assert skip_nchw is not None  # TODO(synk): no-skip fused variant.
    N, Cin, H, W = x_nchw.shape
    Cskip = skip_nchw.shape[1]
    H2, W2 = 2 * H, 2 * W
    M = H2 * W2

    w1_oihw, s1, b1 = params["conv1"]
    w2_oihw, s2, b2 = params["conv2"]
    Cmid = w1_oihw.shape[0]
    Cout = w2_oihw.shape[0]
    C1 = Cin + Cskip

    # 2x nearest upsample + NCHW->NHWC + bf16 cast of the inputs (one fused XLA pass each).
    upx = jnp.repeat(jnp.repeat(x_nchw, 2, axis=2), 2, axis=3)
    upx = jnp.transpose(upx, (0, 2, 3, 1)).astype(jnp.bfloat16)
    skip = jnp.transpose(skip_nchw, (0, 2, 3, 1)).astype(jnp.bfloat16)

    # Fold conv weights to the in-kernel im2col layouts, bf16 at the pallas_call boundary.
    w1_mat = jnp.transpose(w1_oihw, (2, 3, 1, 0)).reshape(9 * C1, Cmid).astype(jnp.bfloat16)
    w2t_mat = jnp.transpose(w2_oihw, (0, 2, 3, 1)).reshape(Cout, 9 * Cmid).astype(jnp.bfloat16)
    s1m = s1.reshape(1, Cmid).astype(jnp.float32)
    b1m = b1.reshape(1, Cmid).astype(jnp.float32)
    s2m = s2.reshape(Cout, 1).astype(jnp.float32)
    b2m = b2.reshape(Cout, 1).astype(jnp.float32)

    flops = 2 * N * M * 9 * (C1 * Cmid + Cmid * Cout)
    bytes_accessed = (2 * (N * M * (Cin + Cskip) + 9 * C1 * Cmid + Cout * 9 * Cmid)
                      + 4 * (2 * Cmid + 2 * Cout + N * Cout * M))

    out = pl.pallas_call(
        _decoder_block_kernel,
        out_shape=jax.ShapeDtypeStruct((N, Cout, M), jnp.float32),
        grid_spec=pltpu.PrefetchScalarGridSpec(
            num_scalar_prefetch=0,
            grid=(N,),
            in_specs=[
                pl.BlockSpec((1, H2, W2, Cin), lambda n: (n, 0, 0, 0)),
                pl.BlockSpec((1, H2, W2, Cskip), lambda n: (n, 0, 0, 0)),
                pl.BlockSpec((9 * C1, Cmid), lambda n: (0, 0)),
                pl.BlockSpec((1, Cmid), lambda n: (0, 0)),
                pl.BlockSpec((1, Cmid), lambda n: (0, 0)),
                pl.BlockSpec((Cout, 9 * Cmid), lambda n: (0, 0)),
                pl.BlockSpec((Cout, 1), lambda n: (0, 0)),
                pl.BlockSpec((Cout, 1), lambda n: (0, 0)),
            ],
            out_specs=pl.BlockSpec((1, Cout, M), lambda n: (n, 0, 0)),
            scratch_shapes=[
                pltpu.VMEM((H2 + 2, W2 + 2, C1), jnp.float32),
                pltpu.VMEM((H2 + 2, W2 + 2, Cmid), jnp.float32),
            ],
        ),
        compiler_params=pltpu.CompilerParams(
            dimension_semantics=("parallel",)),
        cost_estimate=pl.CostEstimate(
            flops=flops, transcendentals=0, bytes_accessed=bytes_accessed),
    )(upx, skip, w1_mat, s1m, b1m, w2t_mat, s2m, b2m)

    # (N, Cout, H2*W2) -> (N, Cout, H2, W2): row-major reshape, no transpose needed.
    return out.reshape(N, Cout, H2, W2)


# ----------------------------------------------------------------------------
# Pure-JAX reference (same bf16 matmul inputs / f32 accumulation as the kernel)
# ----------------------------------------------------------------------------
def _reference_forward(x_nchw, skip_nchw, params):
    upx = jnp.repeat(jnp.repeat(x_nchw, 2, axis=2), 2, axis=3)
    u = jnp.concatenate([upx, skip_nchw], axis=1)                     # NCHW
    u = jnp.transpose(u, (0, 2, 3, 1)).astype(jnp.bfloat16)           # NHWC

    def conv_bn_relu(v, w_oihw, scale, bias):
        w_hwio = jnp.transpose(w_oihw, (2, 3, 1, 0)).astype(jnp.bfloat16)
        y = jax.lax.conv_general_dilated(
            v, w_hwio, window_strides=(1, 1), padding="SAME",
            dimension_numbers=("NHWC", "HWIO", "NHWC"),
            preferred_element_type=jnp.float32)
        return jnp.maximum(y * scale.reshape(1, 1, 1, -1) + bias.reshape(1, 1, 1, -1), 0.0)

    w1, s1, b1 = params["conv1"]
    w2, s2, b2 = params["conv2"]
    y1 = conv_bn_relu(u, w1, s1, b1).astype(jnp.bfloat16)
    y2 = conv_bn_relu(y1, w2, s2, b2)
    return jnp.transpose(y2, (0, 3, 1, 2))


if __name__ == "__main__":
    # Small shapes: batch=2, in_channels=4, skip_channels=4, out_channels=8, spatial 8 -> 16.
    N, Cin, Cskip, Cout, H, W = 2, 4, 4, 8, 8, 8

    key = jax.random.PRNGKey(0)
    k_x, k_skip, k_p1, k_p2 = jax.random.split(key, 4)

    x = jax.random.normal(k_x, (N, Cin, H, W), jnp.float32)
    skip = jax.random.normal(k_skip, (N, Cskip, 2 * H, 2 * W), jnp.float32)

    params = {
        "conv1": make_conv_bn_params(k_p1, Cin + Cskip, Cout),
        "conv2": make_conv_bn_params(k_p2, Cout, Cout),
    }

    out = jax.jit(decoder_block_forward)(x, skip, params)
    out = jax.block_until_ready(out)
    assert out.shape == (N, Cout, 2 * H, 2 * W), out.shape

    ref = _reference_forward(x, skip, params)
    err = float(jnp.max(jnp.abs(out - ref)))
    assert jnp.allclose(out, ref, atol=2e-2, rtol=2e-2), err

    print("KERNEL_OK")
</pallas_src>

<mosaic_0001>
module attributes {stable_mosaic.version = 11 : i64} {
  func.func @_decoder_block_kernel(%arg0: i32, %arg1: memref<1x16x16x4xbf16, #tpu.memory_space<vmem>>, %arg2: memref<1x16x16x4xbf16, #tpu.memory_space<vmem>>, %arg3: memref<72x8xbf16, #tpu.memory_space<vmem>>, %arg4: memref<1x8xf32, #tpu.memory_space<vmem>>, %arg5: memref<1x8xf32, #tpu.memory_space<vmem>>, %arg6: memref<8x72xbf16, #tpu.memory_space<vmem>>, %arg7: memref<8x1xf32, #tpu.memory_space<vmem>>, %arg8: memref<8x1xf32, #tpu.memory_space<vmem>>, %arg9: memref<1x8x256xf32, #tpu.memory_space<vmem>>, %arg10: memref<18x18x8xf32, #tpu.memory_space<vmem>>, %arg11: memref<18x18x8xf32, #tpu.memory_space<vmem>>) attributes {dimension_semantics = [#tpu.dimension_semantics<parallel>], iteration_bounds = array<i64: 2>, scalar_prefetch = 0 : i64, scratch_operands = 2 : i64, tpu.core_type = #tpu.core_type<tc>, window_params = [{transform_indices = @transform_0, window_bounds = array<i64: 1, 16, 16, 4>}, {transform_indices = @transform_1, window_bounds = array<i64: 1, 16, 16, 4>}, {pipeline_mode = #tpu.pipeline_mode<synchronous>, transform_indices = @transform_2, window_bounds = array<i64: 72, 8>}, {pipeline_mode = #tpu.pipeline_mode<synchronous>, transform_indices = @transform_3, window_bounds = array<i64: 1, 8>}, {pipeline_mode = #tpu.pipeline_mode<synchronous>, transform_indices = @transform_4, window_bounds = array<i64: 1, 8>}, {pipeline_mode = #tpu.pipeline_mode<synchronous>, transform_indices = @transform_5, window_bounds = array<i64: 8, 72>}, {pipeline_mode = #tpu.pipeline_mode<synchronous>, transform_indices = @transform_6, window_bounds = array<i64: 8, 1>}, {pipeline_mode = #tpu.pipeline_mode<synchronous>, transform_indices = @transform_7, window_bounds = array<i64: 8, 1>}, {transform_indices = @transform_8, window_bounds = array<i64: 1, 8, 256>}]} {
    %cst = arith.constant 0.000000e+00 : f32
    %0 = vector.broadcast %cst : f32 to vector<18x18x8xf32>
    %c0 = arith.constant 0 : index
    %c0_0 = arith.constant 0 : index
    %c0_1 = arith.constant 0 : index
    %1 = vector.load %arg10[%c0, %c0_0, %c0_1] : memref<18x18x8xf32, #tpu.memory_space<vmem>>, vector<18x18x8xf32>
    tpu.vector_store %arg10[%c0, %c0_0, %c0_1], %0 {strides = array<i32>} : memref<18x18x8xf32, #tpu.memory_space<vmem>>, vector<18x18x8xf32>,
    %c0_2 = arith.constant 0 : index
    %c0_3 = arith.constant 0 : index
    %c0_4 = arith.constant 0 : index
    %c0_5 = arith.constant 0 : index
    %2 = vector.load %arg1[%c0_2, %c0_3, %c0_4, %c0_5] : memref<1x16x16x4xbf16, #tpu.memory_space<vmem>>, vector<1x16x16x4xbf16>
    %3 = vector.shape_cast %2 : vector<1x16x16x4xbf16> to vector<16x16x4xbf16>
    %c0_6 = arith.constant 0 : index
    %c0_7 = arith.constant 0 : index
    %c0_8 = arith.constant 0 : index
    %c0_9 = arith.constant 0 : index
    %4 = vector.load %arg2[%c0_6, %c0_7, %c0_8, %c0_9] : memref<1x16x16x4xbf16, #tpu.memory_space<vmem>>, vector<1x16x16x4xbf16>
    %5 = vector.shape_cast %4 : vector<1x16x16x4xbf16> to vector<16x16x4xbf16>
    %6 = tpu.concatenate %3, %5 in 2 : vector<16x16x4xbf16>, vector<16x16x4xbf16> -> vector<16x16x8xbf16>
    %7 = arith.extf %6 : vector<16x16x8xbf16> to vector<16x16x8xf32>
    %c1 = arith.constant 1 : index
    %c1_10 = arith.constant 1 : index
    %c0_11 = arith.constant 0 : index
    %8 = vector.load %arg10[%c1, %c1_10, %c0_11] : memref<18x18x8xf32, #tpu.memory_space<vmem>>, vector<16x16x8xf32>
    tpu.vector_store %arg10[%c1, %c1_10, %c0_11], %7 {strides = array<i32>} : memref<18x18x8xf32, #tpu.memory_space<vmem>>, vector<16x16x8xf32>,
    %c0_12 = arith.constant 0 : index
    %c0_13 = arith.constant 0 : index
    %c0_14 = arith.constant 0 : index
    %9 = vector.load %arg10[%c0_12, %c0_13, %c0_14] : memref<18x18x8xf32, #tpu.memory_space<vmem>>, vector<16x16x8xf32>
    %10 = vector.shape_cast %9 : vector<16x16x8xf32> to vector<256x8xf32>
    %c0_15 = arith.constant 0 : index
    %c1_16 = arith.constant 1 : index
    %c0_17 = arith.constant 0 : index
    %11 = vector.load %arg10[%c0_15, %c1_16, %c0_17] : memref<18x18x8xf32, #tpu.memory_space<vmem>>, vector<16x16x8xf32>
    %12 = vector.shape_cast %11 : vector<16x16x8xf32> to vector<256x8xf32>
    %c0_18 = arith.constant 0 : index
    %c2 = arith.constant 2 : index
    %c0_19 = arith.constant 0 : index
    %13 = vector.load %arg10[%c0_18, %c2, %c0_19] : memref<18x18x8xf32, #tpu.memory_space<vmem>>, vector<16x16x8xf32>
    %14 = vector.shape_cast %13 : vector<16x16x8xf32> to vector<256x8xf32>
    %c1_20 = arith.constant 1 : index
    %c0_21 = arith.constant 0 : index
    %c0_22 = arith.constant 0 : index
    %15 = vector.load %arg10[%c1_20, %c0_21, %c0_22] : memref<18x18x8xf32, #tpu.memory_space<vmem>>, vector<16x16x8xf32>
    %16 = vector.shape_cast %15 : vector<16x16x8xf32> to vector<256x8xf32>
    %c1_23 = arith.constant 1 : index
    %c1_24 = arith.constant 1 : index
    %c0_25 = arith.constant 0 : index
    %17 = vector.load %arg10[%c1_23, %c1_24, %c0_25] : memref<18x18x8xf32, #tpu.memory_space<vmem>>, vector<16x16x8xf32>
    %18 = vector.shape_cast %17 : vector<16x16x8xf32> to vector<256x8xf32>
    %c1_26 = arith.constant 1 : index
    %c2_27 = arith.constant 2 : index
    %c0_28 = arith.constant 0 : index
    %19 = vector.load %arg10[%c1_26, %c2_27, %c0_28] : memref<18x18x8xf32, #tpu.memory_space<vmem>>, vector<16x16x8xf32>
    %20 = vector.shape_cast %19 : vector<16x16x8xf32> to vector<256x8xf32>
    %c2_29 = arith.constant 2 : index
    %c0_30 = arith.constant 0 : index
    %c0_31 = arith.constant 0 : index
    %21 = vector.load %arg10[%c2_29, %c0_30, %c0_31] : memref<18x18x8xf32, #tpu.memory_space<vmem>>, vector<16x16x8xf32>
    %22 = vector.shape_cast %21 : vector<16x16x8xf32> to vector<256x8xf32>
    %c2_32 = arith.constant 2 : index
    %c1_33 = arith.constant 1 : index
    %c0_34 = arith.constant 0 : index
    %23 = vector.load %arg10[%c2_32, %c1_33, %c0_34] : memref<18x18x8xf32, #tpu.memory_space<vmem>>, vector<16x16x8xf32>
    %24 = vector.shape_cast %23 : vector<16x16x8xf32> to vector<256x8xf32>
    %c2_35 = arith.constant 2 : index
    %c2_36 = arith.constant 2 : index
    %c0_37 = arith.constant 0 : index
    %25 = vector.load %arg10[%c2_35, %c2_36, %c0_37] : memref<18x18x8xf32, #tpu.memory_space<vmem>>, vector<16x16x8xf32>
    %26 = vector.shape_cast %25 : vector<16x16x8xf32> to vector<256x8xf32>
    %27 = tpu.concatenate %10, %12, %14, %16, %18, %20, %22, %24, %26 in 1 : vector<256x8xf32>, vector<256x8xf32>, vector<256x8xf32>, vector<256x8xf32>, vector<256x8xf32>, vector<256x8xf32>, vector<256x8xf32>, vector<256x8xf32>, vector<256x8xf32> -> vector<256x72xf32>
    %28 = arith.truncf %27 : vector<256x72xf32> to vector<256x72xbf16>
    %c0_38 = arith.constant 0 : index
    %c0_39 = arith.constant 0 : index
    %29 = vector.load %arg3[%c0_38, %c0_39] : memref<72x8xbf16, #tpu.memory_space<vmem>>, vector<72x8xbf16>
    %cst_40 = arith.constant dense<0.000000e+00> : vector<256x8xf32>
    %30 = tpu.matmul %28, %29, %cst_40 {dimension_numbers = #tpu.dot_dimension_numbers<[1], [0], [0], [1], [0, 0, 1, 1], [], []>} : vector<256x72xbf16>, vector<72x8xbf16>, vector<256x8xf32> -> vector<256x8xf32>
    %c0_41 = arith.constant 0 : index
    %c0_42 = arith.constant 0 : index
    %31 = vector.load %arg4[%c0_41, %c0_42] : memref<1x8xf32, #tpu.memory_space<vmem>>, vector<1x8xf32>
    %32 = vector.broadcast %31 : vector<1x8xf32> to vector<256x8xf32>
    %33 = arith.mulf %30, %32 : vector<256x8xf32>
    %c0_43 = arith.constant 0 : index
    %c0_44 = arith.constant 0 : index
    %34 = vector.load %arg5[%c0_43, %c0_44] : memref<1x8xf32, #tpu.memory_space<vmem>>, vector<1x8xf32>
    %35 = vector.broadcast %34 : vector<1x8xf32> to vector<256x8xf32>
    %36 = arith.addf %33, %35 : vector<256x8xf32>
    %cst_45 = arith.constant 0.000000e+00 : f32
    %37 = vector.broadcast %cst_45 : f32 to vector<256x8xf32>
    %38 = arith.maximumf %36, %37 : vector<256x8xf32>
    %cst_46 = arith.constant 0.000000e+00 : f32
    %39 = vector.broadcast %cst_46 : f32 to vector<18x18x8xf32>
    %c0_47 = arith.constant 0 : index
    %c0_48 = arith.constant 0 : index
    %c0_49 = arith.constant 0 : index
    %40 = vector.load %arg11[%c0_47, %c0_48, %c0_49] : memref<18x18x8xf32, #tpu.memory_space<vmem>>, vector<18x18x8xf32>
    tpu.vector_store %arg11[%c0_47, %c0_48, %c0_49], %39 {strides = array<i32>} : memref<18x18x8xf32, #tpu.memory_space<vmem>>, vector<18x18x8xf32>,
    %41 = vector.shape_cast %38 : vector<256x8xf32> to vector<16x16x8xf32>
    %c1_50 = arith.constant 1 : index
    %c1_51 = arith.constant 1 : index
    %c0_52 = arith.constant 0 : index
    %42 = vector.load %arg11[%c1_50, %c1_51, %c0_52] : memref<18x18x8xf32, #tpu.memory_space<vmem>>, vector<16x16x8xf32>
    tpu.vector_store %arg11[%c1_50, %c1_51, %c0_52], %41 {strides = array<i32>} : memref<18x18x8xf32, #tpu.memory_space<vmem>>, vector<16x16x8xf32>,
    %c0_53 = arith.constant 0 : index
    %c0_54 = arith.constant 0 : index
    %43 = vector.load %arg6[%c0_53, %c0_54] : memref<8x72xbf16, #tpu.memory_space<vmem>>, vector<8x72xbf16>
    %c0_55 = arith.constant 0 : index
    %c0_56 = arith.constant 0 : index
    %c0_57 = arith.constant 0 : index
    %44 = vector.load %arg11[%c0_55, %c0_56, %c0_57] : memref<18x18x8xf32, #tpu.memory_space<vmem>>, vector<16x16x8xf32>
    %45 = vector.shape_cast %44 : vector<16x16x8xf32> to vector<256x8xf32>
    %c0_58 = arith.constant 0 : index
    %c1_59 = arith.constant 1 : index
    %c0_60 = arith.constant 0 : index
    %46 = vector.load %arg11[%c0_58, %c1_59, %c0_60] : memref<18x18x8xf32, #tpu.memory_space<vmem>>, vector<16x16x8xf32>
    %47 = vector.shape_cast %46 : vector<16x16x8xf32> to vector<256x8xf32>
    %c0_61 = arith.constant 0 : index
    %c2_62 = arith.constant 2 : index
    %c0_63 = arith.constant 0 : index
    %48 = vector.load %arg11[%c0_61, %c2_62, %c0_63] : memref<18x18x8xf32, #tpu.memory_space<vmem>>, vector<16x16x8xf32>
    %49 = vector.shape_cast %48 : vector<16x16x8xf32> to vector<256x8xf32>
    %c1_64 = arith.constant 1 : index
    %c0_65 = arith.constant 0 : index
    %c0_66 = arith.constant 0 : index
    %50 = vector.load %arg11[%c1_64, %c0_65, %c0_66] : memref<18x18x8xf32, #tpu.memory_space<vmem>>, vector<16x16x8xf32>
    %51 = vector.shape_cast %50 : vector<16x16x8xf32> to vector<256x8xf32>
    %c1_67 = arith.constant 1 : index
    %c1_68 = arith.constant 1 : index
    %c0_69 = arith.constant 0 : index
    %52 = vector.load %arg11[%c1_67, %c1_68, %c0_69] : memref<18x18x8xf32, #tpu.memory_space<vmem>>, vector<16x16x8xf32>
    %53 = vector.shape_cast %52 : vector<16x16x8xf32> to vector<256x8xf32>
    %c1_70 = arith.constant 1 : index
    %c2_71 = arith.constant 2 : index
    %c0_72 = arith.constant 0 : index
    %54 = vector.load %arg11[%c1_70, %c2_71, %c0_72] : memref<18x18x8xf32, #tpu.memory_space<vmem>>, vector<16x16x8xf32>
    %55 = vector.shape_cast %54 : vector<16x16x8xf32> to vector<256x8xf32>
    %c2_73 = arith.constant 2 : index
    %c0_74 = arith.constant 0 : index
    %c0_75 = arith.constant 0 : index
    %56 = vector.load %arg11[%c2_73, %c0_74, %c0_75] : memref<18x18x8xf32, #tpu.memory_space<vmem>>, vector<16x16x8xf32>
    %57 = vector.shape_cast %56 : vector<16x16x8xf32> to vector<256x8xf32>
    %c2_76 = arith.constant 2 : index
    %c1_77 = arith.constant 1 : index
    %c0_78 = arith.constant 0 : index
    %58 = vector.load %arg11[%c2_76, %c1_77, %c0_78] : memref<18x18x8xf32, #tpu.memory_space<vmem>>, vector<16x16x8xf32>
    %59 = vector.shape_cast %58 : vector<16x16x8xf32> to vector<256x8xf32>
    %c2_79 = arith.constant 2 : index
    %c2_80 = arith.constant 2 : index
    %c0_81 = arith.constant 0 : index
    %60 = vector.load %arg11[%c2_79, %c2_80, %c0_81] : memref<18x18x8xf32, #tpu.memory_space<vmem>>, vector<16x16x8xf32>
    %61 = vector.shape_cast %60 : vector<16x16x8xf32> to vector<256x8xf32>
    %62 = tpu.concatenate %45, %47, %49, %51, %53, %55, %57, %59, %61 in 1 : vector<256x8xf32>, vector<256x8xf32>, vector<256x8xf32>, vector<256x8xf32>, vector<256x8xf32>, vector<256x8xf32>, vector<256x8xf32>, vector<256x8xf32>, vector<256x8xf32> -> vector<256x72xf32>
    %63 = arith.truncf %62 : vector<256x72xf32> to vector<256x72xbf16>
    %cst_82 = arith.constant dense<0.000000e+00> : vector<8x256xf32>
    %64 = tpu.matmul %43, %63, %cst_82 {dimension_numbers = #tpu.dot_dimension_numbers<[1], [1], [0], [0], [0, 0, 1, 0], [], []>} : vector<8x72xbf16>, vector<256x72xbf16>, vector<8x256xf32> -> vector<8x256xf32>
    %c0_83 = arith.constant 0 : index
    %c0_84 = arith.constant 0 : index
    %65 = vector.load %arg7[%c0_83, %c0_84] : memref<8x1xf32, #tpu.memory_space<vmem>>, vector<8x1xf32>
    %66 = vector.broadcast %65 : vector<8x1xf32> to vector<8x256xf32>
    %67 = arith.mulf %64, %66 : vector<8x256xf32>
    %c0_85 = arith.constant 0 : index
    %c0_86 = arith.constant 0 : index
    %68 = vector.load %arg8[%c0_85, %c0_86] : memref<8x1xf32, #tpu.memory_space<vmem>>, vector<8x1xf32>
    %69 = vector.broadcast %68 : vector<8x1xf32> to vector<8x256xf32>
    %70 = arith.addf %67, %69 : vector<8x256xf32>
    %cst_87 = arith.constant 0.000000e+00 : f32
    %71 = vector.broadcast %cst_87 : f32 to vector<8x256xf32>
    %72 = arith.maximumf %70, %71 : vector<8x256xf32>
    %c0_88 = arith.constant 0 : index
    %c0_89 = arith.constant 0 : index
    %c0_90 = arith.constant 0 : index
    %73 = vector.load %arg9[%c0_88, %c0_89, %c0_90] : memref<1x8x256xf32, #tpu.memory_space<vmem>>, vector<1x8x256xf32>
    %74 = vector.shape_cast %73 : vector<1x8x256xf32> to vector<8x256xf32>
    %75 = vector.shape_cast %72 : vector<8x256xf32> to vector<1x8x256xf32>
    tpu.vector_store %arg9[%c0_88, %c0_89, %c0_90], %75 {strides = array<i32>} : memref<1x8x256xf32, #tpu.memory_space<vmem>>, vector<1x8x256xf32>,
    return
  }
  func.func @transform_0(%arg0: i32) -> (i32, i32, i32, i32) {
    %c0_i32 = arith.constant 0 : i32
    %c0_i32_0 = arith.constant 0 : i32
    %c0_i32_1 = arith.constant 0 : i32
    %c0_i32_2 = arith.constant 0 : i32
    return %arg0, %c0_i32, %c0_i32_0, %c0_i32_1 : i32, i32, i32, i32
  }
  func.func @transform_1(%arg0: i32) -> (i32, i32, i32, i32) {
    %c0_i32 = arith.constant 0 : i32
    %c0_i32_0 = arith.constant 0 : i32
    %c0_i32_1 = arith.constant 0 : i32
    %c0_i32_2 = arith.constant 0 : i32
    return %arg0, %c0_i32, %c0_i32_0, %c0_i32_1 : i32, i32, i32, i32
  }
  func.func @transform_2(%arg0: i32) -> (i32, i32) {
    %c0_i32 = arith.constant 0 : i32
    %c0_i32_0 = arith.constant 0 : i32
    %c0_i32_1 = arith.constant 0 : i32
    return %c0_i32, %c0_i32_0 : i32, i32
  }
  func.func @transform_3(%arg0: i32) -> (i32, i32) {
    %c0_i32 = arith.constant 0 : i32
    %c0_i32_0 = arith.constant 0 : i32
    %c0_i32_1 = arith.constant 0 : i32
    return %c0_i32, %c0_i32_0 : i32, i32
  }
  func.func @transform_4(%arg0: i32) -> (i32, i32) {
    %c0_i32 = arith.constant 0 : i32
    %c0_i32_0 = arith.constant 0 : i32
    %c0_i32_1 = arith.constant 0 : i32
    return %c0_i32, %c0_i32_0 : i32, i32
  }
  func.func @transform_5(%arg0: i32) -> (i32, i32) {
    %c0_i32 = arith.constant 0 : i32
    %c0_i32_0 = arith.constant 0 : i32
    %c0_i32_1 = arith.constant 0 : i32
    return %c0_i32, %c0_i32_0 : i32, i32
  }
  func.func @transform_6(%arg0: i32) -> (i32, i32) {
    %c0_i32 = arith.constant 0 : i32
    %c0_i32_0 = arith.constant 0 : i32
    %c0_i32_1 = arith.constant 0 : i32
    return %c0_i32, %c0_i32_0 : i32, i32
  }
  func.func @transform_7(%arg0: i32) -> (i32, i32) {
    %c0_i32 = arith.constant 0 : i32
    %c0_i32_0 = arith.constant 0 : i32
    %c0_i32_1 = arith.constant 0 : i32
    return %c0_i32, %c0_i32_0 : i32, i32
  }
  func.func @transform_8(%arg0: i32) -> (i32, i32, i32) {
    %c0_i32 = arith.constant 0 : i32
    %c0_i32_0 = arith.constant 0 : i32
    %c0_i32_1 = arith.constant 0 : i32
    return %arg0, %c0_i32, %c0_i32_0 : i32, i32, i32
  }
}

</mosaic_0001>

<llo_original>
// kernel: decoder_block_forward.1
$region0: #{decoder_block_forward.1}
  #allocation0 [shape = 'u32[]', space=smem, size = 0x4, offset = 0x4, fixed_abs, tag = 'smem constant byte address 0x4 - core index']
  #allocation1 [shape = 'u32[144,128]{1,0:T(1,128)}', space=vmem, size = 0x12000, scoped, tag = 'internal scratch']
  #allocation2 [shape = 'f32[18,18,8]{2,1,0:T(8,128)}', space=vmem, size = 0x36000, scoped, tag = 'scratch operand']
  #allocation3 [shape = 'f32[18,18,8]{2,1,0:T(8,128)}', space=vmem, size = 0x36000, scoped, tag = 'scratch operand']
  %s0 = inlined_call_operand.vmem [shape: bf16[2,16,16,4], index: 0, kind: input, shape index: {}]
  %s1 = inlined_call_operand.vmem [shape: bf16[2,16,16,4], index: 1, kind: input, shape index: {}]
  %s2 = inlined_call_operand.vmem [shape: bf16[72,8], index: 2, kind: input, shape index: {}]
  %s3 = inlined_call_operand.vmem [shape: f32[1,8], index: 3, kind: input, shape index: {}]
  %s4 = inlined_call_operand.vmem [shape: f32[1,8], index: 4, kind: input, shape index: {}]
  %s5 = inlined_call_operand.vmem [shape: bf16[8,72], index: 5, kind: input, shape index: {}]
  %s6 = inlined_call_operand.vmem [shape: f32[8,1], index: 6, kind: input, shape index: {}]
  %s7 = inlined_call_operand.vmem [shape: f32[8,1], index: 7, kind: input, shape index: {}]
  %s8 = inlined_call_operand.vmem [shape: f32[2,8,256], index: 8, kind: output, shape index: {}]
  %s9 = sld [smem:[#allocation0]]
  $region65: #{decoder_block_forward.1} parent=0
    _
  %s11 = ssub.s32 1, %s9
  %s12 = scalar_select 0, %s11, %s9
  loop: start=0, step=1, limit=4
  $region2: #{decoder_block_forward.1} parent=0 // loop_pre_header
    _
  $region3: #{decoder_block_forward.1} parent=0 // loop_header
    %s14 = sphi 0, %s18
    %p15 = scmp.ge.s32.totalorder %s14, 4
    %s24 = sphi 0, %s26
    %s27 = sphi 0, %s24
    %s28 = sphi 0, %s27
    %s44 = sphi 0, %s28
    %s50 = sphi 0, %s52
    %s53 = sphi 0, %s50
    %s54 = sphi 0, %s53
    %s70 = sphi 0, %s54
    %s74 = sphi 0, %s74
    %s76 = sphi 0, %s74
    %s77 = sphi 0, %s76
    %s91 = sphi 0, %s77
    %s95 = sphi 0, %s95
    %s97 = sphi 0, %s95
    %s98 = sphi 0, %s97
    %s112 = sphi 0, %s98
    %s116 = sphi 0, %s116
    %s118 = sphi 0, %s116
    %s119 = sphi 0, %s118
    %s133 = sphi 0, %s119
    %s137 = sphi 0, %s137
    %s139 = sphi 0, %s137
    %s140 = sphi 0, %s139
    %s154 = sphi 0, %s140
    %s158 = sphi 0, %s158
    %s160 = sphi 0, %s158
    %s161 = sphi 0, %s160
    %s175 = sphi 0, %s161
    %s179 = sphi 0, %s179
    %s181 = sphi 0, %s179
    %s182 = sphi 0, %s181
    %s196 = sphi 0, %s182
    %s202 = sphi 0, %s204
    %s205 = sphi 0, %s202
    %s206 = sphi 0, %s205
    %s222 = sphi 0, %s206
  $region4: #{decoder_block_forward.1} parent=0 // loop_header_branch
    %17 = sbr.rel (%p15) target = $region8
  $region5: #{decoder_block_forward.1} parent=0 // loop_body
    %s19 = ssub.s32 %s14, 1
    %s20 = ssub.s32 %s14, 2
    %s21 = sadd.s32 %s14, 1
    %s22 = ssub.s32 %s14, %s21
    %p23 = scmp.eq.s32.totalorder %s22, 0
    %s25 = sadd.s32 %s24, 1
    %s26 = scalar_select %p23, %s24, %s25
    %p29 = pneg %p23
    %p30 = scmp.eq.s32.totalorder %s14, 1
    %p31 = por %p29, %p30
    %p32 = scmp.ne.s32.totalorder %s24, %s27
    %p33 = scmp.eq.s32.totalorder %s14, 0
    %p34 = por %p32, %p33
    %p35 = scmp.ne.s32.totalorder %s24, %s27
    %p36 = scmp.eq.s32.totalorder %s19, 1
    %p37 = por %p35, %p36
    %p38 = scmp.ne.s32.totalorder %s27, %s28
    %p39 = scmp.eq.s32.totalorder %s19, 0
    %p40 = por %p38, %p39
    %p41 = scmp.ne.s32.totalorder %s27, %s28
    %p42 = scmp.eq.s32.totalorder %s20, 1
    %p43 = por %p41, %p42
    %p45 = scmp.ne.s32.totalorder %s28, %s44
    %p46 = scmp.eq.s32.totalorder %s20, 0
    %p47 = por %p45, %p46
    %s48 = ssub.s32 %s14, %s21
    %p49 = scmp.eq.s32.totalorder %s48, 0
    %s51 = sadd.s32 %s50, 1
    %s52 = scalar_select %p49, %s50, %s51
    %p55 = pneg %p49
    %p56 = scmp.eq.s32.totalorder %s14, 1
    %p57 = por %p55, %p56
    %p58 = scmp.ne.s32.totalorder %s50, %s53
    %p59 = scmp.eq.s32.totalorder %s14, 0
    %p60 = por %p58, %p59
    %p61 = scmp.ne.s32.totalorder %s50, %s53
    %p62 = scmp.eq.s32.totalorder %s19, 1
    %p63 = por %p61, %p62
    %p64 = scmp.ne.s32.totalorder %s53, %s54
    %p65 = scmp.eq.s32.totalorder %s19, 0
    %p66 = por %p64, %p65
    %p67 = scmp.ne.s32.totalorder %s53, %s54
    %p68 = scmp.eq.s32.totalorder %s20, 1
    %p69 = por %p67, %p68
    %p71 = scmp.ne.s32.totalorder %s54, %s70
    %p72 = scmp.eq.s32.totalorder %s20, 0
    %p73 = por %p71, %p72
    %s75 = sadd.s32 %s74, 1
    %p78 = scmp.eq.s32.totalorder %s14, 1
    %p79 = scmp.ne.s32.totalorder %s74, %s76
    %p80 = scmp.eq.s32.totalorder %s14, 0
    %p81 = por %p79, %p80
    %p82 = scmp.ne.s32.totalorder %s74, %s76
    %p83 = scmp.eq.s32.totalorder %s19, 1
    %p84 = por %p82, %p83
    %p85 = scmp.ne.s32.totalorder %s76, %s77
    %p86 = scmp.eq.s32.totalorder %s19, 0
    %p87 = por %p85, %p86
    %p88 = scmp.ne.s32.totalorder %s76, %s77
    %p89 = scmp.eq.s32.totalorder %s20, 1
    %p90 = por %p88, %p89
    %p92 = scmp.ne.s32.totalorder %s77, %s91
    %p93 = scmp.eq.s32.totalorder %s20, 0
    %p94 = por %p92, %p93
    %s96 = sadd.s32 %s95, 1
    %p99 = scmp.eq.s32.totalorder %s14, 1
    %p100 = scmp.ne.s32.totalorder %s95, %s97
    %p101 = scmp.eq.s32.totalorder %s14, 0
    %p102 = por %p100, %p101
    %p103 = scmp.ne.s32.totalorder %s95, %s97
    %p104 = scmp.eq.s32.totalorder %s19, 1
    %p105 = por %p103, %p104
    %p106 = scmp.ne.s32.totalorder %s97, %s98
    %p107 = scmp.eq.s32.totalorder %s19, 0
    %p108 = por %p106, %p107
    %p109 = scmp.ne.s32.totalorder %s97, %s98
    %p110 = scmp.eq.s32.totalorder %s20, 1
    %p111 = por %p109, %p110
    %p113 = scmp.ne.s32.totalorder %s98, %s112
    %p114 = scmp.eq.s32.totalorder %s20, 0
    %p115 = por %p113, %p114
    %s117 = sadd.s32 %s116, 1
    %p120 = scmp.eq.s32.totalorder %s14, 1
    %p121 = scmp.ne.s32.totalorder %s116, %s118
    %p122 = scmp.eq.s32.totalorder %s14, 0
    %p123 = por %p121, %p122
    %p124 = scmp.ne.s32.totalorder %s116, %s118
    %p125 = scmp.eq.s32.totalorder %s19, 1
    %p126 = por %p124, %p125
    %p127 = scmp.ne.s32.totalorder %s118, %s119
    %p128 = scmp.eq.s32.totalorder %s19, 0
    %p129 = por %p127, %p128
    %p130 = scmp.ne.s32.totalorder %s118, %s119
    %p131 = scmp.eq.s32.totalorder %s20, 1
    %p132 = por %p130, %p131
    %p134 = scmp.ne.s32.totalorder %s119, %s133
    %p135 = scmp.eq.s32.totalorder %s20, 0
    %p136 = por %p134, %p135
    %s138 = sadd.s32 %s137, 1
    %p141 = scmp.eq.s32.totalorder %s14, 1
    %p142 = scmp.ne.s32.totalorder %s137, %s139
    %p143 = scmp.eq.s32.totalorder %s14, 0
    %p144 = por %p142, %p143
    %p145 = scmp.ne.s32.totalorder %s137, %s139
    %p146 = scmp.eq.s32.totalorder %s19, 1
    %p147 = por %p145, %p146
    %p148 = scmp.ne.s32.totalorder %s139, %s140
    %p149 = scmp.eq.s32.totalorder %s19, 0
    %p150 = por %p148, %p149
    %p151 = scmp.ne.s32.totalorder %s139, %s140
    %p152 = scmp.eq.s32.totalorder %s20, 1
    %p153 = por %p151, %p152
    %p155 = scmp.ne.s32.totalorder %s140, %s154
    %p156 = scmp.eq.s32.totalorder %s20, 0
    %p157 = por %p155, %p156
    %s159 = sadd.s32 %s158, 1
    %p162 = scmp.eq.s32.totalorder %s14, 1
    %p163 = scmp.ne.s32.totalorder %s158, %s160
    %p164 = scmp.eq.s32.totalorder %s14, 0
    %p165 = por %p163, %p164
    %p166 = scmp.ne.s32.totalorder %s158, %s160
    %p167 = scmp.eq.s32.totalorder %s19, 1
    %p168 = por %p166, %p167
    %p169 = scmp.ne.s32.totalorder %s160, %s161
    %p170 = scmp.eq.s32.totalorder %s19, 0
    %p171 = por %p169, %p170
    %p172 = scmp.ne.s32.totalorder %s160, %s161
    %p173 = scmp.eq.s32.totalorder %s20, 1
    %p174 = por %p172, %p173
    %p176 = scmp.ne.s32.totalorder %s161, %s175
    %p177 = scmp.eq.s32.totalorder %s20, 0
    %p178 = por %p176, %p177
    %s180 = sadd.s32 %s179, 1
    %p183 = scmp.eq.s32.totalorder %s14, 1
    %p184 = scmp.ne.s32.totalorder %s179, %s181
    %p185 = scmp.eq.s32.totalorder %s14, 0
    %p186 = por %p184, %p185
    %p187 = scmp.ne.s32.totalorder %s179, %s181
    %p188 = scmp.eq.s32.totalorder %s19, 1
    %p189 = por %p187, %p188
    %p190 = scmp.ne.s32.totalorder %s181, %s182
    %p191 = scmp.eq.s32.totalorder %s19, 0
    %p192 = por %p190, %p191
    %p193 = scmp.ne.s32.totalorder %s181, %s182
    %p194 = scmp.eq.s32.totalorder %s20, 1
    %p195 = por %p193, %p194
    %p197 = scmp.ne.s32.totalorder %s182, %s196
    %p198 = scmp.eq.s32.totalorder %s20, 0
    %p199 = por %p197, %p198
    %s200 = ssub.s32 %s14, %s21
    %p201 = scmp.eq.s32.totalorder %s200, 0
    %s203 = sadd.s32 %s202, 1
    %s204 = scalar_select %p201, %s202, %s203
    %p207 = pneg %p201
    %p208 = scmp.eq.s32.totalorder %s14, 1
    %p209 = por %p207, %p208
    %p210 = scmp.ne.s32.totalorder %s202, %s205
    %p211 = scmp.eq.s32.totalorder %s14, 0
    %p212 = por %p210, %p211
    %p213 = scmp.ne.s32.totalorder %s202, %s205
    %p214 = scmp.eq.s32.totalorder %s19, 1
    %p215 = por %p213, %p214
    %p216 = scmp.ne.s32.totalorder %s205, %s206
    %p217 = scmp.eq.s32.totalorder %s19, 0
    %p218 = por %p216, %p217
    %p219 = scmp.ne.s32.totalorder %s205, %s206
    %p220 = scmp.eq.s32.totalorder %s20, 1
    %p221 = por %p219, %p220
    %p223 = scmp.ne.s32.totalorder %s206, %s222
    %p224 = scmp.eq.s32.totalorder %s20, 0
    %p225 = por %p223, %p224
    %p226 = scmp.le.s32.totalorder 1, %s14
    %p227 = scmp.lt.s32.totalorder %s14, 3
    %p228 = pnand %p226, %p227
    %p229 = pneg %p228
    // Predicated region
    $region9: #{decoder_block_forward.1} parent=5 // pred_check
      _
    $region10: #{decoder_block_forward.1} parent=5 // pred_check_branch
      %231 = sbr.rel (%p228) target = $region12
    $region11: #{decoder_block_forward.1} parent=5 // pred_region
      %s232 = ssub.s32 %s14, 1
      // Predicated region
      $region13: #{decoder_block_forward.1} parent=11 // pred_check
        %p233 = pneg %p87
      $region14: #{decoder_block_forward.1} parent=11 // pred_check_branch
        %235 = sbr.rel (%p233) target = $region16
      $region15: #{decoder_block_forward.1} parent=11 // pred_region
        _
      $region16: #{decoder_block_forward.1} parent=11 // pred_fallthru
        _
      // Predicated region
      $region17: #{decoder_block_forward.1} parent=11 // pred_check
        %p236 = pneg %p108
      $region18: #{decoder_block_forward.1} parent=11 // pred_check_branch
        %238 = sbr.rel (%p236) target = $region20
      $region19: #{decoder_block_forward.1} parent=11 // pred_region
        _
      $region20: #{decoder_block_forward.1} parent=11 // pred_fallthru
        _
      // Predicated region
      $region21: #{decoder_block_forward.1} parent=11 // pred_check
        %p239 = pneg %p129
      $region22: #{decoder_block_forward.1} parent=11 // pred_check_branch
        %241 = sbr.rel (%p239) target = $region24
      $region23: #{decoder_block_forward.1} parent=11 // pred_region
        _
      $region24: #{decoder_block_forward.1} parent=11 // pred_fallthru
        _
      // Predicated region
      $region25: #{decoder_block_forward.1} parent=11 // pred_check
        %p242 = pneg %p150
      $region26: #{decoder_block_forward.1} parent=11 // pred_check_branch
        %244 = sbr.rel (%p242) target = $region28
      $region27: #{decoder_block_forward.1} parent=11 // pred_region
        _
      $region28: #{decoder_block_forward.1} parent=11 // pred_fallthru
        _
      // Predicated region
      $region29: #{decoder_block_forward.1} parent=11 // pred_check
        %p245 = pneg %p171
      $region30: #{decoder_block_forward.1} parent=11 // pred_check_branch
        %247 = sbr.rel (%p245) target = $region32
      $region31: #{decoder_block_forward.1} parent=11 // pred_region
        _
      $region32: #{decoder_block_forward.1} parent=11 // pred_fallthru
        _
      // Predicated region
      $region33: #{decoder_block_forward.1} parent=11 // pred_check
        %p248 = pneg %p192
      $region34: #{decoder_block_forward.1} parent=11 // pred_check_branch
        %250 = sbr.rel (%p248) target = $region36
      $region35: #{decoder_block_forward.1} parent=11 // pred_region
        _
      $region36: #{decoder_block_forward.1} parent=11 // pred_fallthru
        _
    $region12: #{decoder_block_forward.1} parent=5 // pred_fallthru
      _
    %p251 = scmp.lt.s32.totalorder %s14, 2
    // Predicated region
    $region37: #{decoder_block_forward.1} parent=5 // pred_check
      %p252 = pneg %p251
    $region38: #{decoder_block_forward.1} parent=5 // pred_check_branch
      %254 = sbr.rel (%p252) target = $region40
    $region39: #{decoder_block_forward.1} parent=5 // pred_region
      // Predicated region
      $region41: #{decoder_block_forward.1} parent=39 // pred_check
        %p255 = pneg %p34
      $region42: #{decoder_block_forward.1} parent=39 // pred_check_branch
        %257 = sbr.rel (%p255) target = $region44
      $region43: #{decoder_block_forward.1} parent=39 // pred_region
        %p258 = scmp.lt.s32.totalorder %s14, 1
        %s259 = scalar_select %p258, %s14, 1
        %s260 = smul.addr %s259, 32
        %s261 = smul.addr %s260, 4
        %s262 = scalar_lea.vmem %s0, %s261
      $region44: #{decoder_block_forward.1} parent=39 // pred_fallthru
        _
      // Predicated region
      $region45: #{decoder_block_forward.1} parent=39 // pred_check
        %p263 = pneg %p60
      $region46: #{decoder_block_forward.1} parent=39 // pred_check_branch
        %265 = sbr.rel (%p263) target = $region48
      $region47: #{decoder_block_forward.1} parent=39 // pred_region
        %p266 = scmp.lt.s32.totalorder %s14, 1
        %s267 = scalar_select %p266, %s14, 1
        %s268 = smul.addr %s267, 32
        %s269 = smul.addr %s268, 4
        %s270 = scalar_lea.vmem %s1, %s269
      $region48: #{decoder_block_forward.1} parent=39 // pred_fallthru
        _
    $region40: #{decoder_block_forward.1} parent=5 // pred_fallthru
      _
    %p271 = scmp.le.s32.totalorder 1, %s14
    %p272 = scmp.lt.s32.totalorder %s14, 3
    %p273 = pnand %p271, %p272
    %p274 = pneg %p273
    // Predicated region
    $region49: #{decoder_block_forward.1} parent=5 // pred_check
      _
    $region50: #{decoder_block_forward.1} parent=5 // pred_check_branch
      %276 = sbr.rel (%p273) target = $region52
    $region51: #{decoder_block_forward.1} parent=5 // pred_region
      %s277 = ssub.s32 %s14, 1
      %p278 = scmp.lt.s32.totalorder %s19, 1
      %s279 = scalar_select %p278, %s19, 1
      %s280 = smul.addr %s279, 32
      %s281 = smul.addr %s280, 4
      %s282 = scalar_lea.vmem %s0, %s281
      %p283 = pneg %p40
      %p284 = pneg %p37
      %p285 = scmp.lt.s32.totalorder %s19, 1
      %s286 = scalar_select %p285, %s19, 1
      %s287 = smul.addr %s286, 32
      %s288 = smul.addr %s287, 4
      %s289 = scalar_lea.vmem %s1, %s288
      %p290 = pneg %p66
      %p291 = pneg %p63
      %p292 = pneg %p87
      %p293 = pneg %p84
      %p294 = pneg %p108
      %p295 = pneg %p105
      %p296 = pneg %p129
      %p297 = pneg %p126
      %p298 = pneg %p150
      %p299 = pneg %p147
      %p300 = pneg %p171
      %p301 = pneg %p168
      %p302 = pneg %p192
      %p303 = pneg %p189
      %p304 = pneg %p218
      %p305 = pneg %p215
      %p306 = scmp.lt.s32.totalorder %s19, 1
      %s307 = scalar_select %p306, %s19, 1
      %s308 = smul.addr %s307, 2
      %s309 = smul.addr %s308, 8
      %s310 = scalar_lea.vmem %s8, %s309
      %p311 = scmp.lt.s32.totalorder %s19, 1
      %s312 = scalar_select %p311, %s19, 1
      %s313 = smul.addr %s312, 32
      %s314 = smul.addr %s313, 4
      %s315 = scalar_lea.vmem %s0, %s314
      %p316 = scmp.lt.s32.totalorder %s19, 1
      %s317 = scalar_select %p316, %s19, 1
      %s318 = smul.addr %s317, 32
      %s319 = smul.addr %s318, 4
      %s320 = scalar_lea.vmem %s1, %s319
      %p321 = scmp.lt.s32.totalorder %s19, 1
      %s322 = scalar_select %p321, %s19, 1
      %s323 = smul.addr %s322, 2
      %s324 = smul.addr %s323, 8
      %s325 = scalar_lea.vmem %s8, %s324
      %vm327 = vcmask 64512
      %328 = vst.msk [vmem:[#allocation2] sm:$0xff] %vm327, 0.0
      %329 = vst.msk [vmem:[#allocation2 + $0x8] sm:$0xff] %vm327, 0.0
      %vm330 = vcmask 58368
      %331 = vst.msk [vmem:[#allocation2 + $0x10] sm:$0x3] %vm330, 0.0
      %332 = vst.msk [vmem:[#allocation2 + $0x18] sm:$0xff] %vm327, 0.0
      %333 = vst.msk [vmem:[#allocation2 + $0x20] sm:$0xff] %vm327, 0.0
      %334 = vst.msk [vmem:[#allocation2 + $0x28] sm:$0x3] %vm330, 0.0
      %335 = vst.msk [vmem:[#allocation2 + $0x30] sm:$0xff] %vm327, 0.0
      %336 = vst.msk [vmem:[#allocation2 + $0x38] sm:$0xff] %vm327, 0.0
      %337 = vst.msk [vmem:[#allocation2 + $0x40] sm:$0x3] %vm330, 0.0
      %338 = vst.msk [vmem:[#allocation2 + $0x48] sm:$0xff] %vm327, 0.0
      %339 = vst.msk [vmem:[#allocation2 + $0x50] sm:$0xff] %vm327, 0.0
      %340 = vst.msk [vmem:[#allocation2 + $0x58] sm:$0x3] %vm330, 0.0
      %341 = vst.msk [vmem:[#allocation2 + $0x60] sm:$0xff] %vm327, 0.0
      %342 = vst.msk [vmem:[#allocation2 + $0x68] sm:$0xff] %vm327, 0.0
      %343 = vst.msk [vmem:[#allocation2 + $0x70] sm:$0x3] %vm330, 0.0
      %344 = vst.msk [vmem:[#allocation2 + $0x78] sm:$0xff] %vm327, 0.0
      %345 = vst.msk [vmem:[#allocation2 + $0x80] sm:$0xff] %vm327, 0.0
      %346 = vst.msk [vmem:[#allocation2 + $0x88] sm:$0x3] %vm330, 0.0
      %347 = vst.msk [vmem:[#allocation2 + $0x90] sm:$0xff] %vm327, 0.0
      %348 = vst.msk [vmem:[#allocation2 + $0x98] sm:$0xff] %vm327, 0.0
      %349 = vst.msk [vmem:[#allocation2 + $0xa0] sm:$0x3] %vm330, 0.0
      %350 = vst.msk [vmem:[#allocation2 + $0xa8] sm:$0xff] %vm327, 0.0
      %351 = vst.msk [vmem:[#allocation2 + $0xb0] sm:$0xff] %vm327, 0.0
      %352 = vst.msk [vmem:[#allocation2 + $0xb8] sm:$0x3] %vm330, 0.0
      %353 = vst.msk [vmem:[#allocation2 + $0xc0] sm:$0xff] %vm327, 0.0
      %354 = vst.msk [vmem:[#allocation2 + $0xc8] sm:$0xff] %vm327, 0.0
      %355 = vst.msk [vmem:[#allocation2 + $0xd0] sm:$0x3] %vm330, 0.0
      %356 = vst.msk [vmem:[#allocation2 + $0xd8] sm:$0xff] %vm327, 0.0
      %357 = vst.msk [vmem:[#allocation2 + $0xe0] sm:$0xff] %vm327, 0.0
      %358 = vst.msk [vmem:[#allocation2 + $0xe8] sm:$0x3] %vm330, 0.0
      %359 = vst.msk [vmem:[#allocation2 + $0xf0] sm:$0xff] %vm327, 0.0
      %360 = vst.msk [vmem:[#allocation2 + $0xf8] sm:$0xff] %vm327, 0.0
      %361 = vst.msk [vmem:[#allocation2 + $0x100] sm:$0x3] %vm330, 0.0
      %362 = vst.msk [vmem:[#allocation2 + $0x108] sm:$0xff] %vm327, 0.0
      %363 = vst.msk [vmem:[#allocation2 + $0x110] sm:$0xff] %vm327, 0.0
      %364 = vst.msk [vmem:[#allocation2 + $0x118] sm:$0x3] %vm330, 0.0
      %365 = vst.msk [vmem:[#allocation2 + $0x120] sm:$0xff] %vm327, 0.0
      %366 = vst.msk [vmem:[#allocation2 + $0x128] sm:$0xff] %vm327, 0.0
      %367 = vst.msk [vmem:[#allocation2 + $0x130] sm:$0x3] %vm330, 0.0
      %368 = vst.msk [vmem:[#allocation2 + $0x138] sm:$0xff] %vm327, 0.0
      %369 = vst.msk [vmem:[#allocation2 + $0x140] sm:$0xff] %vm327, 0.0
      %370 = vst.msk [vmem:[#allocation2 + $0x148] sm:$0x3] %vm330, 0.0
      %371 = vst.msk [vmem:[#allocation2 + $0x150] sm:$0xff] %vm327, 0.0
      %372 = vst.msk [vmem:[#allocation2 + $0x158] sm:$0xff] %vm327, 0.0
      %373 = vst.msk [vmem:[#allocation2 + $0x160] sm:$0x3] %vm330, 0.0
      %374 = vst.msk [vmem:[#allocation2 + $0x168] sm:$0xff] %vm327, 0.0
      %375 = vst.msk [vmem:[#allocation2 + $0x170] sm:$0xff] %vm327, 0.0
      %376 = vst.msk [vmem:[#allocation2 + $0x178] sm:$0x3] %vm330, 0.0
      %377 = vst.msk [vmem:[#allocation2 + $0x180] sm:$0xff] %vm327, 0.0
      %378 = vst.msk [vmem:[#allocation2 + $0x188] sm:$0xff] %vm327, 0.0
      %379 = vst.msk [vmem:[#allocation2 + $0x190] sm:$0x3] %vm330, 0.0
      %380 = vst.msk [vmem:[#allocation2 + $0x198] sm:$0xff] %vm327, 0.0
      %381 = vst.msk [vmem:[#allocation2 + $0x1a0] sm:$0xff] %vm327, 0.0
      %382 = vst.msk [vmem:[#allocation2 + $0x1a8] sm:$0x3] %vm330, 0.0
      %v383 = vld [vmem:[%s315] sm:$0xf]
      %v384 = vld [vmem:[%s315 + $0x4] sm:$0xf]
      %v385 = vld [vmem:[%s315 + $0x8] sm:$0xf]
      %v386 = vld [vmem:[%s315 + $0xc] sm:$0xf]
      %v387 = vld [vmem:[%s315 + $0x10] sm:$0xf]
      %v388 = vld [vmem:[%s315 + $0x14] sm:$0xf]
      %v389 = vld [vmem:[%s315 + $0x18] sm:$0xf]
      %v390 = vld [vmem:[%s315 + $0x1c] sm:$0xf]
      %v391 = vld [vmem:[%s315 + $0x20] sm:$0xf]
      %v392 = vld [vmem:[%s315 + $0x24] sm:$0xf]
      %v393 = vld [vmem:[%s315 + $0x28] sm:$0xf]
      %v394 = vld [vmem:[%s315 + $0x2c] sm:$0xf]
      %v395 = vld [vmem:[%s315 + $0x30] sm:$0xf]
      %v396 = vld [vmem:[%s315 + $0x34] sm:$0xf]
      %v397 = vld [vmem:[%s315 + $0x38] sm:$0xf]
      %v398 = vld [vmem:[%s315 + $0x3c] sm:$0xf]
      %v399 = vld [vmem:[%s315 + $0x40] sm:$0xf]
      %v400 = vld [vmem:[%s315 + $0x44] sm:$0xf]
      %v401 = vld [vmem:[%s315 + $0x48] sm:$0xf]
      %v402 = vld [vmem:[%s315 + $0x4c] sm:$0xf]
      %v403 = vld [vmem:[%s315 + $0x50] sm:$0xf]
      %v404 = vld [vmem:[%s315 + $0x54] sm:$0xf]
      %v405 = vld [vmem:[%s315 + $0x58] sm:$0xf]
      %v406 = vld [vmem:[%s315 + $0x5c] sm:$0xf]
      %v407 = vld [vmem:[%s315 + $0x60] sm:$0xf]
      %v408 = vld [vmem:[%s315 + $0x64] sm:$0xf]
      %v409 = vld [vmem:[%s315 + $0x68] sm:$0xf]
      %v410 = vld [vmem:[%s315 + $0x6c] sm:$0xf]
      %v411 = vld [vmem:[%s315 + $0x70] sm:$0xf]
      %v412 = vld [vmem:[%s315 + $0x74] sm:$0xf]
      %v413 = vld [vmem:[%s315 + $0x78] sm:$0xf]
      %v414 = vld [vmem:[%s315 + $0x7c] sm:$0xf]
      %v415 = vld [vmem:[%s320] sm:$0xf]
      %v416 = vld [vmem:[%s320 + $0x4] sm:$0xf]
      %v417 = vld [vmem:[%s320 + $0x8] sm:$0xf]
      %v418 = vld [vmem:[%s320 + $0xc] sm:$0xf]
      %v419 = vld [vmem:[%s320 + $0x10] sm:$0xf]
      %v420 = vld [vmem:[%s320 + $0x14] sm:$0xf]
      %v421 = vld [vmem:[%s320 + $0x18] sm:$0xf]
      %v422 = vld [vmem:[%s320 + $0x1c] sm:$0xf]
      %v423 = vld [vmem:[%s320 + $0x20] sm:$0xf]
      %v424 = vld [vmem:[%s320 + $0x24] sm:$0xf]
      %v425 = vld [vmem:[%s320 + $0x28] sm:$0xf]
      %v426 = vld [vmem:[%s320 + $0x2c] sm:$0xf]
      %v427 = vld [vmem:[%s320 + $0x30] sm:$0xf]
      %v428 = vld [vmem:[%s320 + $0x34] sm:$0xf]
      %v429 = vld [vmem:[%s320 + $0x38] sm:$0xf]
      %v430 = vld [vmem:[%s320 + $0x3c] sm:$0xf]
      %v431 = vld [vmem:[%s320 + $0x40] sm:$0xf]
      %v432 = vld [vmem:[%s320 + $0x44] sm:$0xf]
      %v433 = vld [vmem:[%s320 + $0x48] sm:$0xf]
      %v434 = vld [vmem:[%s320 + $0x4c] sm:$0xf]
      %v435 = vld [vmem:[%s320 + $0x50] sm:$0xf]
      %v436 = vld [vmem:[%s320 + $0x54] sm:$0xf]
      %v437 = vld [vmem:[%s320 + $0x58] sm:$0xf]
      %v438 = vld [vmem:[%s320 + $0x5c] sm:$0xf]
      %v439 = vld [vmem:[%s320 + $0x60] sm:$0xf]
      %v440 = vld [vmem:[%s320 + $0x64] sm:$0xf]
      %v441 = vld [vmem:[%s320 + $0x68] sm:$0xf]
      %v442 = vld [vmem:[%s320 + $0x6c] sm:$0xf]
      %v443 = vld [vmem:[%s320 + $0x70] sm:$0xf]
      %v444 = vld [vmem:[%s320 + $0x74] sm:$0xf]
      %v445 = vld [vmem:[%s320 + $0x78] sm:$0xf]
      %v446 = vld [vmem:[%s320 + $0x7c] sm:$0xf]
      %v479 = vunpack.c.l.b16 %v383
      %v480 = vunpack.c.l.b16 %v384
      %v481 = vunpack.c.l.b16 %v385
      %v482 = vunpack.c.l.b16 %v386
      %v483 = vunpack.c.l.b16 %v387
      %v484 = vunpack.c.l.b16 %v388
      %v485 = vunpack.c.l.b16 %v389
      %v486 = vunpack.c.l.b16 %v390
      %v487 = vunpack.c.l.b16 %v391
      %v488 = vunpack.c.l.b16 %v392
      %v489 = vunpack.c.l.b16 %v393
      %v490 = vunpack.c.l.b16 %v394
      %v491 = vunpack.c.l.b16 %v395
      %v492 = vunpack.c.l.b16 %v396
      %v493 = vunpack.c.l.b16 %v397
      %v494 = vunpack.c.l.b16 %v398
      %v495 = vunpack.c.l.b16 %v399
      %v496 = vunpack.c.l.b16 %v400
      %v497 = vunpack.c.l.b16 %v401
      %v498 = vunpack.c.l.b16 %v402
      %v499 = vunpack.c.l.b16 %v403
      %v500 = vunpack.c.l.b16 %v404
      %v501 = vunpack.c.l.b16 %v405
      %v502 = vunpack.c.l.b16 %v406
      %v503 = vunpack.c.l.b16 %v407
      %v504 = vunpack.c.l.b16 %v408
      %v505 = vunpack.c.l.b16 %v409
      %v506 = vunpack.c.l.b16 %v410
      %v507 = vunpack.c.l.b16 %v411
      %v508 = vunpack.c.l.b16 %v412
      %v509 = vunpack.c.l.b16 %v413
      %v510 = vunpack.c.l.b16 %v414
      %v511 = vpack.c.b16 %v480, %v479
      %v512 = vpack.c.b16 %v482, %v481
      %v513 = vpack.c.b16 %v484, %v483
      %v514 = vpack.c.b16 %v486, %v485
      %v515 = vpack.c.b16 %v488, %v487
      %v516 = vpack.c.b16 %v490, %v489
      %v517 = vpack.c.b16 %v492, %v491
      %v518 = vpack.c.b16 %v494, %v493
      %v519 = vpack.c.b16 %v496, %v495
      %v520 = vpack.c.b16 %v498, %v497
      %v521 = vpack.c.b16 %v500, %v499
      %v522 = vpack.c.b16 %v502, %v501
      %v523 = vpack.c.b16 %v504, %v503
      %v524 = vpack.c.b16 %v506, %v505
      %v525 = vpack.c.b16 %v508, %v507
      %v526 = vpack.c.b16 %v510, %v509
      %v559 = vunpack.c.l.b16 %v415
      %v560 = vunpack.c.l.b16 %v416
      %v561 = vunpack.c.l.b16 %v417
      %v562 = vunpack.c.l.b16 %v418
      %v563 = vunpack.c.l.b16 %v419
      %v564 = vunpack.c.l.b16 %v420
      %v565 = vunpack.c.l.b16 %v421
      %v566 = vunpack.c.l.b16 %v422
      %v567 = vunpack.c.l.b16 %v423
      %v568 = vunpack.c.l.b16 %v424
      %v569 = vunpack.c.l.b16 %v425
      %v570 = vunpack.c.l.b16 %v426
      %v571 = vunpack.c.l.b16 %v427
      %v572 = vunpack.c.l.b16 %v428
      %v573 = vunpack.c.l.b16 %v429
      %v574 = vunpack.c.l.b16 %v430
      %v575 = vunpack.c.l.b16 %v431
      %v576 = vunpack.c.l.b16 %v432
      %v577 = vunpack.c.l.b16 %v433
      %v578 = vunpack.c.l.b16 %v434
      %v579 = vunpack.c.l.b16 %v435
      %v580 = vunpack.c.l.b16 %v436
      %v581 = vunpack.c.l.b16 %v437
      %v582 = vunpack.c.l.b16 %v438
      %v583 = vunpack.c.l.b16 %v439
      %v584 = vunpack.c.l.b16 %v440
      %v585 = vunpack.c.l.b16 %v441
      %v586 = vunpack.c.l.b16 %v442
      %v587 = vunpack.c.l.b16 %v443
      %v588 = vunpack.c.l.b16 %v444
      %v589 = vunpack.c.l.b16 %v445
      %v590 = vunpack.c.l.b16 %v446
      %v591 = vpack.c.b16 %v560, %v559
      %v592 = vpack.c.b16 %v562, %v561
      %v593 = vpack.c.b16 %v564, %v563
      %v594 = vpack.c.b16 %v566, %v565
      %v595 = vpack.c.b16 %v568, %v567
      %v596 = vpack.c.b16 %v570, %v569
      %v597 = vpack.c.b16 %v572, %v571
      %v598 = vpack.c.b16 %v574, %v573
      %v599 = vpack.c.b16 %v576, %v575
      %v600 = vpack.c.b16 %v578, %v577
      %v601 = vpack.c.b16 %v580, %v579
      %v602 = vpack.c.b16 %v582, %v581
      %v603 = vpack.c.b16 %v584, %v583
      %v604 = vpack.c.b16 %v586, %v585
      %v605 = vpack.c.b16 %v588, %v587
      %v606 = vpack.c.b16 %v590, %v589
      %607 = vrot.lane.b32.xlu0 %v591, 4
      %v608 = vpop.permute.xlu0 %607
      %609 = vrot.lane.b32.xlu0 %v592, 4
      %v610 = vpop.permute.xlu0 %609
      %611 = vrot.lane.b32.xlu0 %v593, 4
      %v612 = vpop.permute.xlu0 %611
      %613 = vrot.lane.b32.xlu0 %v594, 4
      %v614 = vpop.permute.xlu0 %613
      %615 = vrot.lane.b32.xlu0 %v595, 4
      %v616 = vpop.permute.xlu0 %615
      %617 = vrot.lane.b32.xlu0 %v596, 4
      %v618 = vpop.permute.xlu0 %617
      %619 = vrot.lane.b32.xlu0 %v597, 4
      %v620 = vpop.permute.xlu0 %619
      %621 = vrot.lane.b32.xlu0 %v598, 4
      %v622 = vpop.permute.xlu0 %621
      %623 = vrot.lane.b32.xlu0 %v599, 4
      %v624 = vpop.permute.xlu0 %623
      %625 = vrot.lane.b32.xlu0 %v600, 4
      %v626 = vpop.permute.xlu0 %625
      %627 = vrot.lane.b32.xlu0 %v601, 4
      %v628 = vpop.permute.xlu0 %627
      %629 = vrot.lane.b32.xlu0 %v602, 4
      %v630 = vpop.permute.xlu0 %629
      %631 = vrot.lane.b32.xlu0 %v603, 4
      %v632 = vpop.permute.xlu0 %631
      %633 = vrot.lane.b32.xlu0 %v604, 4
      %v634 = vpop.permute.xlu0 %633
      %635 = vrot.lane.b32.xlu0 %v605, 4
      %v636 = vpop.permute.xlu0 %635
      %637 = vrot.lane.b32.xlu0 %v606, 4
      %v638 = vpop.permute.xlu0 %637
      %vm639 = vcmask 31744
      %v642 = vsel %vm639, %v511, %v608
      %v646 = vsel %vm639, %v512, %v610
      %v650 = vsel %vm639, %v513, %v612
      %v654 = vsel %vm639, %v514, %v614
      %v658 = vsel %vm639, %v515, %v616
      %v662 = vsel %vm639, %v516, %v618
      %v666 = vsel %vm639, %v517, %v620
      %v670 = vsel %vm639, %v518, %v622
      %v674 = vsel %vm639, %v519, %v624
      %v678 = vsel %vm639, %v520, %v626
      %v682 = vsel %vm639, %v521, %v628
      %v686 = vsel %vm639, %v522, %v630
      %v690 = vsel %vm639, %v523, %v632
      %v694 = vsel %vm639, %v524, %v634
      %v698 = vsel %vm639, %v525, %v636
      %v702 = vsel %vm639, %v526, %v638
      %v704 = vunpack.c.l.bf16 %v642
      %v705 = vunpack.c.h.bf16 %v642
      %v706 = vunpack.c.l.bf16 %v646
      %v707 = vunpack.c.h.bf16 %v646
      %v708 = vunpack.c.l.bf16 %v650
      %v709 = vunpack.c.h.bf16 %v650
      %v710 = vunpack.c.l.bf16 %v654
      %v711 = vunpack.c.h.bf16 %v654
      %v712 = vunpack.c.l.bf16 %v658
      %v713 = vunpack.c.h.bf16 %v658
      %v714 = vunpack.c.l.bf16 %v662
      %v715 = vunpack.c.h.bf16 %v662
      %v716 = vunpack.c.l.bf16 %v666
      %v717 = vunpack.c.h.bf16 %v666
      %v718 = vunpack.c.l.bf16 %v670
      %v719 = vunpack.c.h.bf16 %v670
      %v720 = vunpack.c.l.bf16 %v674
      %v721 = vunpack.c.h.bf16 %v674
      %v722 = vunpack.c.l.bf16 %v678
      %v723 = vunpack.c.h.bf16 %v678
      %v724 = vunpack.c.l.bf16 %v682
      %v725 = vunpack.c.h.bf16 %v682
      %v726 = vunpack.c.l.bf16 %v686
      %v727 = vunpack.c.h.bf16 %v686
      %v728 = vunpack.c.l.bf16 %v690
      %v729 = vunpack.c.h.bf16 %v690
      %v730 = vunpack.c.l.bf16 %v694
      %v731 = vunpack.c.h.bf16 %v694
      %v732 = vunpack.c.l.bf16 %v698
      %v733 = vunpack.c.h.bf16 %v698
      %v734 = vunpack.c.l.bf16 %v702
      %v735 = vunpack.c.h.bf16 %v702
      %s736 = scalar_lea.vmem [#allocation2], 24
      %737 = vst.msk [vmem:[%s736 + $0x1] sm:$0xff] %vm327, %v704
      %738 = vst.msk [vmem:[%s736 + $0x9] sm:$0xff] %vm327, %v705
      %739 = vst.msk [vmem:[%s736 + $0x19] sm:$0xff] %vm327, %v706
      %740 = vst.msk [vmem:[%s736 + $0x21] sm:$0xff] %vm327, %v707
      %741 = vst.msk [vmem:[%s736 + $0x31] sm:$0xff] %vm327, %v708
      %742 = vst.msk [vmem:[%s736 + $0x39] sm:$0xff] %vm327, %v709
      %743 = vst.msk [vmem:[%s736 + $0x49] sm:$0xff] %vm327, %v710
      %744 = vst.msk [vmem:[%s736 + $0x51] sm:$0xff] %vm327, %v711
      %745 = vst.msk [vmem:[%s736 + $0x61] sm:$0xff] %vm327, %v712
      %746 = vst.msk [vmem:[%s736 + $0x69] sm:$0xff] %vm327, %v713
      %747 = vst.msk [vmem:[%s736 + $0x79] sm:$0xff] %vm327, %v714
      %748 = vst.msk [vmem:[%s736 + $0x81] sm:$0xff] %vm327, %v715
      %749 = vst.msk [vmem:[%s736 + $0x91] sm:$0xff] %vm327, %v716
      %750 = vst.msk [vmem:[%s736 + $0x99] sm:$0xff] %vm327, %v717
      %751 = vst.msk [vmem:[%s736 + $0xa9] sm:$0xff] %vm327, %v718
      %752 = vst.msk [vmem:[%s736 + $0xb1] sm:$0xff] %vm327, %v719
      %753 = vst.msk [vmem:[%s736 + $0xc1] sm:$0xff] %vm327, %v720
      %754 = vst.msk [vmem:[%s736 + $0xc9] sm:$0xff] %vm327, %v721
      %755 = vst.msk [vmem:[%s736 + $0xd9] sm:$0xff] %vm327, %v722
      %756 = vst.msk [vmem:[%s736 + $0xe1] sm:$0xff] %vm327, %v723
      %757 = vst.msk [vmem:[%s736 + $0xf1] sm:$0xff] %vm327, %v724
      %758 = vst.msk [vmem:[%s736 + $0xf9] sm:$0xff] %vm327, %v725
      %759 = vst.msk [vmem:[%s736 + $0x109] sm:$0xff] %vm327, %v726
      %760 = vst.msk [vmem:[%s736 + $0x111] sm:$0xff] %vm327, %v727
      %761 = vst.msk [vmem:[%s736 + $0x121] sm:$0xff] %vm327, %v728
      %762 = vst.msk [vmem:[%s736 + $0x129] sm:$0xff] %vm327, %v729
      %763 = vst.msk [vmem:[%s736 + $0x139] sm:$0xff] %vm327, %v730
      %764 = vst.msk [vmem:[%s736 + $0x141] sm:$0xff] %vm327, %v731
      %765 = vst.msk [vmem:[%s736 + $0x151] sm:$0xff] %vm327, %v732
      %766 = vst.msk [vmem:[%s736 + $0x159] sm:$0xff] %vm327, %v733
      %767 = vst.msk [vmem:[%s736 + $0x169] sm:$0xff] %vm327, %v734
      %768 = vst.msk [vmem:[%s736 + $0x171] sm:$0xff] %vm327, %v735
      %v769 = vld [vmem:[#allocation2] sm:$0xff]
      %v770 = vld [vmem:[#allocation2 + $0x8] sm:$0xff]
      %v771 = vld [vmem:[#allocation2 + $0x18] sm:$0xff]
      %v772 = vld [vmem:[#allocation2 + $0x20] sm:$0xff]
      %v773 = vld [vmem:[#allocation2 + $0x30] sm:$0xff]
      %v774 = vld [vmem:[#allocation2 + $0x38] sm:$0xff]
      %v775 = vld [vmem:[#allocation2 + $0x48] sm:$0xff]
      %v776 = vld [vmem:[#allocation2 + $0x50] sm:$0xff]
      %v777 = vld [vmem:[#allocation2 + $0x60] sm:$0xff]
      %v778 = vld [vmem:[#allocation2 + $0x68] sm:$0xff]
      %v779 = vld [vmem:[#allocation2 + $0x78] sm:$0xff]
      %v780 = vld [vmem:[#allocation2 + $0x80] sm:$0xff]
      %v781 = vld [vmem:[#allocation2 + $0x90] sm:$0xff]
      %v782 = vld [vmem:[#allocation2 + $0x98] sm:$0xff]
      %v783 = vld [vmem:[#allocation2 + $0xa8] sm:$0xff]
      %v784 = vld [vmem:[#allocation2 + $0xb0] sm:$0xff]
      %v785 = vld [vmem:[#allocation2 + $0xc0] sm:$0xff]
      %v786 = vld [vmem:[#allocation2 + $0xc8] sm:$0xff]
      %v787 = vld [vmem:[#allocation2 + $0xd8] sm:$0xff]
      %v788 = vld [vmem:[#allocation2 + $0xe0] sm:$0xff]
      %v789 = vld [vmem:[#allocation2 + $0xf0] sm:$0xff]
      %v790 = vld [vmem:[#allocation2 + $0xf8] sm:$0xff]
      %v791 = vld [vmem:[#allocation2 + $0x108] sm:$0xff]
      %v792 = vld [vmem:[#allocation2 + $0x110] sm:$0xff]
      %v793 = vld [vmem:[#allocation2 + $0x120] sm:$0xff]
      %v794 = vld [vmem:[#allocation2 + $0x128] sm:$0xff]
      %v795 = vld [vmem:[#allocation2 + $0x138] sm:$0xff]
      %v796 = vld [vmem:[#allocation2 + $0x140] sm:$0xff]
      %v797 = vld [vmem:[#allocation2 + $0x150] sm:$0xff]
      %v798 = vld [vmem:[#allocation2 + $0x158] sm:$0xff]
      %v799 = vld [vmem:[#allocation2 + $0x168] sm:$0xff]
      %v800 = vld [vmem:[#allocation2 + $0x170] sm:$0xff]
      %v801 = vld [vmem:[#allocation2 + $0x1] sm:$0xff]
      %v802 = vld [vmem:[#allocation2 + $0x9] sm:$0xff]
      %v803 = vld [vmem:[#allocation2 + $0x19] sm:$0xff]
      %v804 = vld [vmem:[#allocation2 + $0x21] sm:$0xff]
      %v805 = vld [vmem:[#allocation2 + $0x31] sm:$0xff]
      %v806 = vld [vmem:[#allocation2 + $0x39] sm:$0xff]
      %v807 = vld [vmem:[#allocation2 + $0x49] sm:$0xff]
      %v808 = vld [vmem:[#allocation2 + $0x51] sm:$0xff]
      %v809 = vld [vmem:[#allocation2 + $0x61] sm:$0xff]
      %v810 = vld [vmem:[#allocation2 + $0x69] sm:$0xff]
      %v811 = vld [vmem:[#allocation2 + $0x79] sm:$0xff]
      %v812 = vld [vmem:[#allocation2 + $0x81] sm:$0xff]
      %v813 = vld [vmem:[#allocation2 + $0x91] sm:$0xff]
      %v814 = vld [vmem:[#allocation2 + $0x99] sm:$0xff]
      %v815 = vld [vmem:[#allocation2 + $0xa9] sm:$0xff]
      %v816 = vld [vmem:[#allocation2 + $0xb1] sm:$0xff]
      %v817 = vld [vmem:[#allocation2 + $0xc1] sm:$0xff]
      %v818 = vld [vmem:[#allocation2 + $0xc9] sm:$0xff]
      %v819 = vld [vmem:[#allocation2 + $0xd9] sm:$0xff]
      %v820 = vld [vmem:[#allocation2 + $0xe1] sm:$0xff]
      %v821 = vld [vmem:[#allocation2 + $0xf1] sm:$0xff]
      %v822 = vld [vmem:[#allocation2 + $0xf9] sm:$0xff]
      %v823 = vld [vmem:[#allocation2 + $0x109] sm:$0xff]
      %v824 = vld [vmem:[#allocation2 + $0x111] sm:$0xff]
      %v825 = vld [vmem:[#allocation2 + $0x121] sm:$0xff]
      %v826 = vld [vmem:[#allocation2 + $0x129] sm:$0xff]
      %v827 = vld [vmem:[#allocation2 + $0x139] sm:$0xff]
      %v828 = vld [vmem:[#allocation2 + $0x141] sm:$0xff]
      %v829 = vld [vmem:[#allocation2 + $0x151] sm:$0xff]
      %v830 = vld [vmem:[#allocation2 + $0x159] sm:$0xff]
      %v831 = vld [vmem:[#allocation2 + $0x169] sm:$0xff]
      %v832 = vld [vmem:[#allocation2 + $0x171] sm:$0xff]
      %v833 = vld [vmem:[#allocation2 + $0x2] sm:$0xff]
      %v834 = vld [vmem:[#allocation2 + $0xa] sm:$0xff]
      %v835 = vld [vmem:[#allocation2 + $0x1a] sm:$0xff]
      %v836 = vld [vmem:[#allocation2 + $0x22] sm:$0xff]
      %v837 = vld [vmem:[#allocation2 + $0x32] sm:$0xff]
      %v838 = vld [vmem:[#allocation2 + $0x3a] sm:$0xff]
      %v839 = vld [vmem:[#allocation2 + $0x4a] sm:$0xff]
      %v840 = vld [vmem:[#allocation2 + $0x52] sm:$0xff]
      %v841 = vld [vmem:[#allocation2 + $0x62] sm:$0xff]
      %v842 = vld [vmem:[#allocation2 + $0x6a] sm:$0xff]
      %v843 = vld [vmem:[#allocation2 + $0x7a] sm:$0xff]
      %v844 = vld [vmem:[#allocation2 + $0x82] sm:$0xff]
      %v845 = vld [vmem:[#allocation2 + $0x92] sm:$0xff]
      %v846 = vld [vmem:[#allocation2 + $0x9a] sm:$0xff]
      %v847 = vld [vmem:[#allocation2 + $0xaa] sm:$0xff]
      %v848 = vld [vmem:[#allocation2 + $0xb2] sm:$0xff]
      %v849 = vld [vmem:[#allocation2 + $0xc2] sm:$0xff]
      %v850 = vld [vmem:[#allocation2 + $0xca] sm:$0xff]
      %v851 = vld [vmem:[#allocation2 + $0xda] sm:$0xff]
      %v852 = vld [vmem:[#allocation2 + $0xe2] sm:$0xff]
      %v853 = vld [vmem:[#allocation2 + $0xf2] sm:$0xff]
      %v854 = vld [vmem:[#allocation2 + $0xfa] sm:$0xff]
      %v855 = vld [vmem:[#allocation2 + $0x10a] sm:$0xff]
      %v856 = vld [vmem:[#allocation2 + $0x112] sm:$0xff]
      %v857 = vld [vmem:[#allocation2 + $0x122] sm:$0xff]
      %v858 = vld [vmem:[#allocation2 + $0x12a] sm:$0xff]
      %v859 = vld [vmem:[#allocation2 + $0x13a] sm:$0xff]
      %v860 = vld [vmem:[#allocation2 + $0x142] sm:$0xff]
      %v861 = vld [vmem:[#allocation2 + $0x152] sm:$0xff]
      %v862 = vld [vmem:[#allocation2 + $0x15a] sm:$0xff]
      %v863 = vld [vmem:[#allocation2 + $0x16a] sm:$0xff]
      %v864 = vld [vmem:[#allocation2 + $0x172] sm:$0xff]
      %v865 = vld [vmem:[%s736] sm:$0xff]
      %v866 = vld [vmem:[%s736 + $0x8] sm:$0xff]
      %v867 = vld [vmem:[%s736 + $0x18] sm:$0xff]
      %v868 = vld [vmem:[%s736 + $0x20] sm:$0xff]
      %v869 = vld [vmem:[%s736 + $0x30] sm:$0xff]
      %v870 = vld [vmem:[%s736 + $0x38] sm:$0xff]
      %v871 = vld [vmem:[%s736 + $0x48] sm:$0xff]
      %v872 = vld [vmem:[%s736 + $0x50] sm:$0xff]
      %v873 = vld [vmem:[%s736 + $0x60] sm:$0xff]
      %v874 = vld [vmem:[%s736 + $0x68] sm:$0xff]
      %v875 = vld [vmem:[%s736 + $0x78] sm:$0xff]
      %v876 = vld [vmem:[%s736 + $0x80] sm:$0xff]
      %v877 = vld [vmem:[%s736 + $0x90] sm:$0xff]
      %v878 = vld [vmem:[%s736 + $0x98] sm:$0xff]
      %v879 = vld [vmem:[%s736 + $0xa8] sm:$0xff]
      %v880 = vld [vmem:[%s736 + $0xb0] sm:$0xff]
      %v881 = vld [vmem:[%s736 + $0xc0] sm:$0xff]
      %v882 = vld [vmem:[%s736 + $0xc8] sm:$0xff]
      %v883 = vld [vmem:[%s736 + $0xd8] sm:$0xff]
      %v884 = vld [vmem:[%s736 + $0xe0] sm:$0xff]
      %v885 = vld [vmem:[%s736 + $0xf0] sm:$0xff]
      %v886 = vld [vmem:[%s736 + $0xf8] sm:$0xff]
      %v887 = vld [vmem:[%s736 + $0x108] sm:$0xff]
      %v888 = vld [vmem:[%s736 + $0x110] sm:$0xff]
      %v889 = vld [vmem:[%s736 + $0x120] sm:$0xff]
      %v890 = vld [vmem:[%s736 + $0x128] sm:$0xff]
      %v891 = vld [vmem:[%s736 + $0x138] sm:$0xff]
      %v892 = vld [vmem:[%s736 + $0x140] sm:$0xff]
      %v893 = vld [vmem:[%s736 + $0x150] sm:$0xff]
      %v894 = vld [vmem:[%s736 + $0x158] sm:$0xff]
      %v895 = vld [vmem:[%s736 + $0x168] sm:$0xff]
      %v896 = vld [vmem:[%s736 + $0x170] sm:$0xff]
      %v897 = vld [vmem:[%s736 + $0x1] sm:$0xff]
      %v898 = vld [vmem:[%s736 + $0x9] sm:$0xff]
      %v899 = vld [vmem:[%s736 + $0x19] sm:$0xff]
      %v900 = vld [vmem:[%s736 + $0x21] sm:$0xff]
      %v901 = vld [vmem:[%s736 + $0x31] sm:$0xff]
      %v902 = vld [vmem:[%s736 + $0x39] sm:$0xff]
      %v903 = vld [vmem:[%s736 + $0x49] sm:$0xff]
      %v904 = vld [vmem:[%s736 + $0x51] sm:$0xff]
      %v905 = vld [vmem:[%s736 + $0x61] sm:$0xff]
      %v906 = vld [vmem:[%s736 + $0x69] sm:$0xff]
      %v907 = vld [vmem:[%s736 + $0x79] sm:$0xff]
      %v908 = vld [vmem:[%s736 + $0x81] sm:$0xff]
      %v909 = vld [vmem:[%s736 + $0x91] sm:$0xff]
      %v910 = vld [vmem:[%s736 + $0x99] sm:$0xff]
      %v911 = vld [vmem:[%s736 + $0xa9] sm:$0xff]
      %v912 = vld [vmem:[%s736 + $0xb1] sm:$0xff]
      %v913 = vld [vmem:[%s736 + $0xc1] sm:$0xff]
      %v914 = vld [vmem:[%s736 + $0xc9] sm:$0xff]
      %v915 = vld [vmem:[%s736 + $0xd9] sm:$0xff]
      %v916 = vld [vmem:[%s736 + $0xe1] sm:$0xff]
      %v917 = vld [vmem:[%s736 + $0xf1] sm:$0xff]
      %v918 = vld [vmem:[%s736 + $0xf9] sm:$0xff]
      %v919 = vld [vmem:[%s736 + $0x109] sm:$0xff]
      %v920 = vld [vmem:[%s736 + $0x111] sm:$0xff]
      %v921 = vld [vmem:[%s736 + $0x121] sm:$0xff]
      %v922 = vld [vmem:[%s736 + $0x129] sm:$0xff]
      %v923 = vld [vmem:[%s736 + $0x139] sm:$0xff]
      %v924 = vld [vmem:[%s736 + $0x141] sm:$0xff]
      %v925 = vld [vmem:[%s736 + $0x151] sm:$0xff]
      %v926 = vld [vmem:[%s736 + $0x159] sm:$0xff]
      %v927 = vld [vmem:[%s736 + $0x169] sm:$0xff]
      %v928 = vld [vmem:[%s736 + $0x171] sm:$0xff]
      %v929 = vld [vmem:[%s736 + $0x2] sm:$0xff]
      %v930 = vld [vmem:[%s736 + $0xa] sm:$0xff]
      %v931 = vld [vmem:[%s736 + $0x1a] sm:$0xff]
      %v932 = vld [vmem:[%s736 + $0x22] sm:$0xff]
      %v933 = vld [vmem:[%s736 + $0x32] sm:$0xff]
      %v934 = vld [vmem:[%s736 + $0x3a] sm:$0xff]
      %v935 = vld [vmem:[%s736 + $0x4a] sm:$0xff]
      %v936 = vld [vmem:[%s736 + $0x52] sm:$0xff]
      %v937 = vld [vmem:[%s736 + $0x62] sm:$0xff]
      %v938 = vld [vmem:[%s736 + $0x6a] sm:$0xff]
      %v939 = vld [vmem:[%s736 + $0x7a] sm:$0xff]
      %v940 = vld [vmem:[%s736 + $0x82] sm:$0xff]
      %v941 = vld [vmem:[%s736 + $0x92] sm:$0xff]
      %v942 = vld [vmem:[%s736 + $0x9a] sm:$0xff]
      %v943 = vld [vmem:[%s736 + $0xaa] sm:$0xff]
      %v944 = vld [vmem:[%s736 + $0xb2] sm:$0xff]
      %v945 = vld [vmem:[%s736 + $0xc2] sm:$0xff]
      %v946 = vld [vmem:[%s736 + $0xca] sm:$0xff]
      %v947 = vld [vmem:[%s736 + $0xda] sm:$0xff]
      %v948 = vld [vmem:[%s736 + $0xe2] sm:$0xff]
      %v949 = vld [vmem:[%s736 + $0xf2] sm:$0xff]
      %v950 = vld [vmem:[%s736 + $0xfa] sm:$0xff]
      %v951 = vld [vmem:[%s736 + $0x10a] sm:$0xff]
      %v952 = vld [vmem:[%s736 + $0x112] sm:$0xff]
      %v953 = vld [vmem:[%s736 + $0x122] sm:$0xff]
      %v954 = vld [vmem:[%s736 + $0x12a] sm:$0xff]
      %v955 = vld [vmem:[%s736 + $0x13a] sm:$0xff]
      %v956 = vld [vmem:[%s736 + $0x142] sm:$0xff]
      %v957 = vld [vmem:[%s736 + $0x152] sm:$0xff]
      %v958 = vld [vmem:[%s736 + $0x15a] sm:$0xff]
      %v959 = vld [vmem:[%s736 + $0x16a] sm:$0xff]
      %v960 = vld [vmem:[%s736 + $0x172] sm:$0xff]
      %s961 = scalar_lea.vmem [#allocation2], 48
      %v962 = vld [vmem:[%s961] sm:$0xff]
      %v963 = vld [vmem:[%s961 + $0x8] sm:$0xff]
      %v964 = vld [vmem:[%s961 + $0x18] sm:$0xff]
      %v965 = vld [vmem:[%s961 + $0x20] sm:$0xff]
      %v966 = vld [vmem:[%s961 + $0x30] sm:$0xff]
      %v967 = vld [vmem:[%s961 + $0x38] sm:$0xff]
      %v968 = vld [vmem:[%s961 + $0x48] sm:$0xff]
      %v969 = vld [vmem:[%s961 + $0x50] sm:$0xff]
      %v970 = vld [vmem:[%s961 + $0x60] sm:$0xff]
      %v971 = vld [vmem:[%s961 + $0x68] sm:$0xff]
      %v972 = vld [vmem:[%s961 + $0x78] sm:$0xff]
      %v973 = vld [vmem:[%s961 + $0x80] sm:$0xff]
      %v974 = vld [vmem:[%s961 + $0x90] sm:$0xff]
      %v975 = vld [vmem:[%s961 + $0x98] sm:$0xff]
      %v976 = vld [vmem:[%s961 + $0xa8] sm:$0xff]
      %v977 = vld [vmem:[%s961 + $0xb0] sm:$0xff]
      %v978 = vld [vmem:[%s961 + $0xc0] sm:$0xff]
      %v979 = vld [vmem:[%s961 + $0xc8] sm:$0xff]
      %v980 = vld [vmem:[%s961 + $0xd8] sm:$0xff]
      %v981 = vld [vmem:[%s961 + $0xe0] sm:$0xff]
      %v982 = vld [vmem:[%s961 + $0xf0] sm:$0xff]
      %v983 = vld [vmem:[%s961 + $0xf8] sm:$0xff]
      %v984 = vld [vmem:[%s961 + $0x108] sm:$0xff]
      %v985 = vld [vmem:[%s961 + $0x110] sm:$0xff]
      %v986 = vld [vmem:[%s961 + $0x120] sm:$0xff]
      %v987 = vld [vmem:[%s961 + $0x128] sm:$0xff]
      %v988 = vld [vmem:[%s961 + $0x138] sm:$0xff]
      %v989 = vld [vmem:[%s961 + $0x140] sm:$0xff]
      %v990 = vld [vmem:[%s961 + $0x150] sm:$0xff]
      %v991 = vld [vmem:[%s961 + $0x158] sm:$0xff]
      %v992 = vld [vmem:[%s961 + $0x168] sm:$0xff]
      %v993 = vld [vmem:[%s961 + $0x170] sm:$0xff]
      %v994 = vld [vmem:[%s961 + $0x1] sm:$0xff]
      %v995 = vld [vmem:[%s961 + $0x9] sm:$0xff]
      %v996 = vld [vmem:[%s961 + $0x19] sm:$0xff]
      %v997 = vld [vmem:[%s961 + $0x21] sm:$0xff]
      %v998 = vld [vmem:[%s961 + $0x31] sm:$0xff]
      %v999 = vld [vmem:[%s961 + $0x39] sm:$0xff]
      %v1000 = vld [vmem:[%s961 + $0x49] sm:$0xff]
      %v1001 = vld [vmem:[%s961 + $0x51] sm:$0xff]
      %v1002 = vld [vmem:[%s961 + $0x61] sm:$0xff]
      %v1003 = vld [vmem:[%s961 + $0x69] sm:$0xff]
      %v1004 = vld [vmem:[%s961 + $0x79] sm:$0xff]
      %v1005 = vld [vmem:[%s961 + $0x81] sm:$0xff]
      %v1006 = vld [vmem:[%s961 + $0x91] sm:$0xff]
      %v1007 = vld [vmem:[%s961 + $0x99] sm:$0xff]
      %v1008 = vld [vmem:[%s961 + $0xa9] sm:$0xff]
      %v1009 = vld [vmem:[%s961 + $0xb1] sm:$0xff]
      %v1010 = vld [vmem:[%s961 + $0xc1] sm:$0xff]
      %v1011 = vld [vmem:[%s961 + $0xc9] sm:$0xff]
      %v1012 = vld [vmem:[%s961 + $0xd9] sm:$0xff]
      %v1013 = vld [vmem:[%s961 + $0xe1] sm:$0xff]
      %v1014 = vld [vmem:[%s961 + $0xf1] sm:$0xff]
      %v1015 = vld [vmem:[%s961 + $0xf9] sm:$0xff]
      %v1016 = vld [vmem:[%s961 + $0x109] sm:$0xff]
      %v1017 = vld [vmem:[%s961 + $0x111] sm:$0xff]
      %v1018 = vld [vmem:[%s961 + $0x121] sm:$0xff]
      %v1019 = vld [vmem:[%s961 + $0x129] sm:$0xff]
      %v1020 = vld [vmem:[%s961 + $0x139] sm:$0xff]
      %v1021 = vld [vmem:[%s961 + $0x141] sm:$0xff]
      %v1022 = vld [vmem:[%s961 + $0x151] sm:$0xff]
      %v1023 = vld [vmem:[%s961 + $0x159] sm:$0xff]
      %v1024 = vld [vmem:[%s961 + $0x169] sm:$0xff]
      %v1025 = vld [vmem:[%s961 + $0x171] sm:$0xff]
      %v1026 = vld [vmem:[%s961 + $0x2] sm:$0xff]
      %v1027 = vld [vmem:[%s961 + $0xa] sm:$0xff]
      %v1028 = vld [vmem:[%s961 + $0x1a] sm:$0xff]
      %v1029 = vld [vmem:[%s961 + $0x22] sm:$0xff]
      %v1030 = vld [vmem:[%s961 + $0x32] sm:$0xff]
      %v1031 = vld [vmem:[%s961 + $0x3a] sm:$0xff]
      %v1032 = vld [vmem:[%s961 + $0x4a] sm:$0xff]
      %v1033 = vld [vmem:[%s961 + $0x52] sm:$0xff]
      %v1034 = vld [vmem:[%s961 + $0x62] sm:$0xff]
      %v1035 = vld [vmem:[%s961 + $0x6a] sm:$0xff]
      %v1036 = vld [vmem:[%s961 + $0x7a] sm:$0xff]
      %v1037 = vld [vmem:[%s961 + $0x82] sm:$0xff]
      %v1038 = vld [vmem:[%s961 + $0x92] sm:$0xff]
      %v1039 = vld [vmem:[%s961 + $0x9a] sm:$0xff]
      %v1040 = vld [vmem:[%s961 + $0xaa] sm:$0xff]
      %v1041 = vld [vmem:[%s961 + $0xb2] sm:$0xff]
      %v1042 = vld [vmem:[%s961 + $0xc2] sm:$0xff]
      %v1043 = vld [vmem:[%s961 + $0xca] sm:$0xff]
      %v1044 = vld [vmem:[%s961 + $0xda] sm:$0xff]
      %v1045 = vld [vmem:[%s961 + $0xe2] sm:$0xff]
      %v1046 = vld [vmem:[%s961 + $0xf2] sm:$0xff]
      %v1047 = vld [vmem:[%s961 + $0xfa] sm:$0xff]
      %v1048 = vld [vmem:[%s961 + $0x10a] sm:$0xff]
      %v1049 = vld [vmem:[%s961 + $0x112] sm:$0xff]
      %v1050 = vld [vmem:[%s961 + $0x122] sm:$0xff]
      %v1051 = vld [vmem:[%s961 + $0x12a] sm:$0xff]
      %v1052 = vld [vmem:[%s961 + $0x13a] sm:$0xff]
      %v1053 = vld [vmem:[%s961 + $0x142] sm:$0xff]
      %v1054 = vld [vmem:[%s961 + $0x152] sm:$0xff]
      %v1055 = vld [vmem:[%s961 + $0x15a] sm:$0xff]
      %v1056 = vld [vmem:[%s961 + $0x16a] sm:$0xff]
      %v1057 = vld [vmem:[%s961 + $0x172] sm:$0xff]
      %1090 = vrot.lane.b32.xlu0 %v801, 8
      %v1091 = vpop.permute.xlu0 %1090
      %1092 = vrot.lane.b32.xlu0 %v802, 8
      %v1093 = vpop.permute.xlu0 %1092
      %1094 = vrot.lane.b32.xlu0 %v803, 8
      %v1095 = vpop.permute.xlu0 %1094
      %1096 = vrot.lane.b32.xlu0 %v804, 8
      %v1097 = vpop.permute.xlu0 %1096
      %1098 = vrot.lane.b32.xlu0 %v805, 8
      %v1099 = vpop.permute.xlu0 %1098
      %1100 = vrot.lane.b32.xlu0 %v806, 8
      %v1101 = vpop.permute.xlu0 %1100
      %1102 = vrot.lane.b32.xlu0 %v807, 8
      %v1103 = vpop.permute.xlu0 %1102
      %1104 = vrot.lane.b32.xlu0 %v808, 8
      %v1105 = vpop.permute.xlu0 %1104
      %1106 = vrot.lane.b32.xlu0 %v809, 8
      %v1107 = vpop.permute.xlu0 %1106
      %1108 = vrot.lane.b32.xlu0 %v810, 8
      %v1109 = vpop.permute.xlu0 %1108
      %1110 = vrot.lane.b32.xlu0 %v811, 8
      %v1111 = vpop.permute.xlu0 %1110
      %1112 = vrot.lane.b32.xlu0 %v812, 8
      %v1113 = vpop.permute.xlu0 %1112
      %1114 = vrot.lane.b32.xlu0 %v813, 8
      %v1115 = vpop.permute.xlu0 %1114
      %1116 = vrot.lane.b32.xlu0 %v814, 8
      %v1117 = vpop.permute.xlu0 %1116
      %1118 = vrot.lane.b32.xlu0 %v815, 8
      %v1119 = vpop.permute.xlu0 %1118
      %1120 = vrot.lane.b32.xlu0 %v816, 8
      %v1121 = vpop.permute.xlu0 %1120
      %1122 = vrot.lane.b32.xlu0 %v817, 8
      %v1123 = vpop.permute.xlu0 %1122
      %1124 = vrot.lane.b32.xlu0 %v818, 8
      %v1125 = vpop.permute.xlu0 %1124
      %1126 = vrot.lane.b32.xlu0 %v819, 8
      %v1127 = vpop.permute.xlu0 %1126
      %1128 = vrot.lane.b32.xlu0 %v820, 8
      %v1129 = vpop.permute.xlu0 %1128
      %1130 = vrot.lane.b32.xlu0 %v821, 8
      %v1131 = vpop.permute.xlu0 %1130
      %1132 = vrot.lane.b32.xlu0 %v822, 8
      %v1133 = vpop.permute.xlu0 %1132
      %1134 = vrot.lane.b32.xlu0 %v823, 8
      %v1135 = vpop.permute.xlu0 %1134
      %1136 = vrot.lane.b32.xlu0 %v824, 8
      %v1137 = vpop.permute.xlu0 %1136
      %1138 = vrot.lane.b32.xlu0 %v825, 8
      %v1139 = vpop.permute.xlu0 %1138
      %1140 = vrot.lane.b32.xlu0 %v826, 8
      %v1141 = vpop.permute.xlu0 %1140
      %1142 = vrot.lane.b32.xlu0 %v827, 8
      %v1143 = vpop.permute.xlu0 %1142
      %1144 = vrot.lane.b32.xlu0 %v828, 8
      %v1145 = vpop.permute.xlu0 %1144
      %1146 = vrot.lane.b32.xlu0 %v829, 8
      %v1147 = vpop.permute.xlu0 %1146
      %1148 = vrot.lane.b32.xlu0 %v830, 8
      %v1149 = vpop.permute.xlu0 %1148
      %1150 = vrot.lane.b32.xlu0 %v831, 8
      %v1151 = vpop.permute.xlu0 %1150
      %1152 = vrot.lane.b32.xlu0 %v832, 8
      %v1153 = vpop.permute.xlu0 %1152
      %1218 = vrot.lane.b32.xlu0 %v833, 16
      %v1219 = vpop.permute.xlu0 %1218
      %1220 = vrot.lane.b32.xlu0 %v834, 16
      %v1221 = vpop.permute.xlu0 %1220
      %1222 = vrot.lane.b32.xlu0 %v835, 16
      %v1223 = vpop.permute.xlu0 %1222
      %1224 = vrot.lane.b32.xlu0 %v836, 16
      %v1225 = vpop.permute.xlu0 %1224
      %1226 = vrot.lane.b32.xlu0 %v837, 16
      %v1227 = vpop.permute.xlu0 %1226
      %1228 = vrot.lane.b32.xlu0 %v838, 16
      %v1229 = vpop.permute.xlu0 %1228
      %1230 = vrot.lane.b32.xlu0 %v839, 16
      %v1231 = vpop.permute.xlu0 %1230
      %1232 = vrot.lane.b32.xlu0 %v840, 16
      %v1233 = vpop.permute.xlu0 %1232
      %1234 = vrot.lane.b32.xlu0 %v841, 16
      %v1235 = vpop.permute.xlu0 %1234
      %1236 = vrot.lane.b32.xlu0 %v842, 16
      %v1237 = vpop.permute.xlu0 %1236
      %1238 = vrot.lane.b32.xlu0 %v843, 16
      %v1239 = vpop.permute.xlu0 %1238
      %1240 = vrot.lane.b32.xlu0 %v844, 16
      %v1241 = vpop.permute.xlu0 %1240
      %1242 = vrot.lane.b32.xlu0 %v845, 16
      %v1243 = vpop.permute.xlu0 %1242
      %1244 = vrot.lane.b32.xlu0 %v846, 16
      %v1245 = vpop.permute.xlu0 %1244
      %1246 = vrot.lane.b32.xlu0 %v847, 16
      %v1247 = vpop.permute.xlu0 %1246
      %1248 = vrot.lane.b32.xlu0 %v848, 16
      %v1249 = vpop.permute.xlu0 %1248
      %1250 = vrot.lane.b32.xlu0 %v849, 16
      %v1251 = vpop.permute.xlu0 %1250
      %1252 = vrot.lane.b32.xlu0 %v850, 16
      %v1253 = vpop.permute.xlu0 %1252
      %1254 = vrot.lane.b32.xlu0 %v851, 16
      %v1255 = vpop.permute.xlu0 %1254
      %1256 = vrot.lane.b32.xlu0 %v852, 16
      %v1257 = vpop.permute.xlu0 %1256
      %1258 = vrot.lane.b32.xlu0 %v853, 16
      %v1259 = vpop.permute.xlu0 %1258
      %1260 = vrot.lane.b32.xlu0 %v854, 16
      %v1261 = vpop.permute.xlu0 %1260
      %1262 = vrot.lane.b32.xlu0 %v855, 16
      %v1263 = vpop.permute.xlu0 %1262
      %1264 = vrot.lane.b32.xlu0 %v856, 16
      %v1265 = vpop.permute.xlu0 %1264
      %1266 = vrot.lane.b32.xlu0 %v857, 16
      %v1267 = vpop.permute.xlu0 %1266
      %1268 = vrot.lane.b32.xlu0 %v858, 16
      %v1269 = vpop.permute.xlu0 %1268
      %1270 = vrot.lane.b32.xlu0 %v859, 16
      %v1271 = vpop.permute.xlu0 %1270
      %1272 = vrot.lane.b32.xlu0 %v860, 16
      %v1273 = vpop.permute.xlu0 %1272
      %1274 = vrot.lane.b32.xlu0 %v861, 16
      %v1275 = vpop.permute.xlu0 %1274
      %1276 = vrot.lane.b32.xlu0 %v862, 16
      %v1277 = vpop.permute.xlu0 %1276
      %1278 = vrot.lane.b32.xlu0 %v863, 16
      %v1279 = vpop.permute.xlu0 %1278
      %1280 = vrot.lane.b32.xlu0 %v864, 16
      %v1281 = vpop.permute.xlu0 %1280
      %1346 = vrot.lane.b32.xlu0 %v865, 24
      %v1347 = vpop.permute.xlu0 %1346
      %1348 = vrot.lane.b32.xlu0 %v866, 24
      %v1349 = vpop.permute.xlu0 %1348
      %1350 = vrot.lane.b32.xlu0 %v867, 24
      %v1351 = vpop.permute.xlu0 %1350
      %1352 = vrot.lane.b32.xlu0 %v868, 24
      %v1353 = vpop.permute.xlu0 %1352
      %1354 = vrot.lane.b32.xlu0 %v869, 24
      %v1355 = vpop.permute.xlu0 %1354
      %1356 = vrot.lane.b32.xlu0 %v870, 24
      %v1357 = vpop.permute.xlu0 %1356
      %1358 = vrot.lane.b32.xlu0 %v871, 24
      %v1359 = vpop.permute.xlu0 %1358
      %1360 = vrot.lane.b32.xlu0 %v872, 24
      %v1361 = vpop.permute.xlu0 %1360
      %1362 = vrot.lane.b32.xlu0 %v873, 24
      %v1363 = vpop.permute.xlu0 %1362
      %1364 = vrot.lane.b32.xlu0 %v874, 24
      %v1365 = vpop.permute.xlu0 %1364
      %1366 = vrot.lane.b32.xlu0 %v875, 24
      %v1367 = vpop.permute.xlu0 %1366
      %1368 = vrot.lane.b32.xlu0 %v876, 24
      %v1369 = vpop.permute.xlu0 %1368
      %1370 = vrot.lane.b32.xlu0 %v877, 24
      %v1371 = vpop.permute.xlu0 %1370
      %1372 = vrot.lane.b32.xlu0 %v878, 24
      %v1373 = vpop.permute.xlu0 %1372
      %1374 = vrot.lane.b32.xlu0 %v879, 24
      %v1375 = vpop.permute.xlu0 %1374
      %1376 = vrot.lane.b32.xlu0 %v880, 24
      %v1377 = vpop.permute.xlu0 %1376
      %1378 = vrot.lane.b32.xlu0 %v881, 24
      %v1379 = vpop.permute.xlu0 %1378
      %1380 = vrot.lane.b32.xlu0 %v882, 24
      %v1381 = vpop.permute.xlu0 %1380
      %1382 = vrot.lane.b32.xlu0 %v883, 24
      %v1383 = vpop.permute.xlu0 %1382
      %1384 = vrot.lane.b32.xlu0 %v884, 24
      %v1385 = vpop.permute.xlu0 %1384
      %1386 = vrot.lane.b32.xlu0 %v885, 24
      %v1387 = vpop.permute.xlu0 %1386
      %1388 = vrot.lane.b32.xlu0 %v886, 24
      %v1389 = vpop.permute.xlu0 %1388
      %1390 = vrot.lane.b32.xlu0 %v887, 24
      %v1391 = vpop.permute.xlu0 %1390
      %1392 = vrot.lane.b32.xlu0 %v888, 24
      %v1393 = vpop.permute.xlu0 %1392
      %1394 = vrot.lane.b32.xlu0 %v889, 24
      %v1395 = vpop.permute.xlu0 %1394
      %1396 = vrot.lane.b32.xlu0 %v890, 24
      %v1397 = vpop.permute.xlu0 %1396
      %1398 = vrot.lane.b32.xlu0 %v891, 24
      %v1399 = vpop.permute.xlu0 %1398
      %1400 = vrot.lane.b32.xlu0 %v892, 24
      %v1401 = vpop.permute.xlu0 %1400
      %1402 = vrot.lane.b32.xlu0 %v893, 24
      %v1403 = vpop.permute.xlu0 %1402
      %1404 = vrot.lane.b32.xlu0 %v894, 24
      %v1405 = vpop.permute.xlu0 %1404
      %1406 = vrot.lane.b32.xlu0 %v895, 24
      %v1407 = vpop.permute.xlu0 %1406
      %1408 = vrot.lane.b32.xlu0 %v896, 24
      %v1409 = vpop.permute.xlu0 %1408
      %1474 = vrot.lane.b32.xlu0 %v897, 32
      %v1475 = vpop.permute.xlu0 %1474
      %1476 = vrot.lane.b32.xlu0 %v898, 32
      %v1477 = vpop.permute.xlu0 %1476
      %1478 = vrot.lane.b32.xlu0 %v899, 32
      %v1479 = vpop.permute.xlu0 %1478
      %1480 = vrot.lane.b32.xlu0 %v900, 32
      %v1481 = vpop.permute.xlu0 %1480
      %1482 = vrot.lane.b32.xlu0 %v901, 32
      %v1483 = vpop.permute.xlu0 %1482
      %1484 = vrot.lane.b32.xlu0 %v902, 32
      %v1485 = vpop.permute.xlu0 %1484
      %1486 = vrot.lane.b32.xlu0 %v903, 32
      %v1487 = vpop.permute.xlu0 %1486
      %1488 = vrot.lane.b32.xlu0 %v904, 32
      %v1489 = vpop.permute.xlu0 %1488
      %1490 = vrot.lane.b32.xlu0 %v905, 32
      %v1491 = vpop.permute.xlu0 %1490
      %1492 = vrot.lane.b32.xlu0 %v906, 32
      %v1493 = vpop.permute.xlu0 %1492
      %1494 = vrot.lane.b32.xlu0 %v907, 32
      %v1495 = vpop.permute.xlu0 %1494
      %1496 = vrot.lane.b32.xlu0 %v908, 32
      %v1497 = vpop.permute.xlu0 %1496
      %1498 = vrot.lane.b32.xlu0 %v909, 32
      %v1499 = vpop.permute.xlu0 %1498
      %1500 = vrot.lane.b32.xlu0 %v910, 32
      %v1501 = vpop.permute.xlu0 %1500
      %1502 = vrot.lane.b32.xlu0 %v911, 32
      %v1503 = vpop.permute.xlu0 %1502
      %1504 = vrot.lane.b32.xlu0 %v912, 32
      %v1505 = vpop.permute.xlu0 %1504
      %1506 = vrot.lane.b32.xlu0 %v913, 32
      %v1507 = vpop.permute.xlu0 %1506
      %1508 = vrot.lane.b32.xlu0 %v914, 32
      %v1509 = vpop.permute.xlu0 %1508
      %1510 = vrot.lane.b32.xlu0 %v915, 32
      %v1511 = vpop.permute.xlu0 %1510
      %1512 = vrot.lane.b32.xlu0 %v916, 32
      %v1513 = vpop.permute.xlu0 %1512
      %1514 = vrot.lane.b32.xlu0 %v917, 32
      %v1515 = vpop.permute.xlu0 %1514
      %1516 = vrot.lane.b32.xlu0 %v918, 32
      %v1517 = vpop.permute.xlu0 %1516
      %1518 = vrot.lane.b32.xlu0 %v919, 32
      %v1519 = vpop.permute.xlu0 %1518
      %1520 = vrot.lane.b32.xlu0 %v920, 32
      %v1521 = vpop.permute.xlu0 %1520
      %1522 = vrot.lane.b32.xlu0 %v921, 32
      %v1523 = vpop.permute.xlu0 %1522
      %1524 = vrot.lane.b32.xlu0 %v922, 32
      %v1525 = vpop.permute.xlu0 %1524
      %1526 = vrot.lane.b32.xlu0 %v923, 32
      %v1527 = vpop.permute.xlu0 %1526
      %1528 = vrot.lane.b32.xlu0 %v924, 32
      %v1529 = vpop.permute.xlu0 %1528
      %1530 = vrot.lane.b32.xlu0 %v925, 32
      %v1531 = vpop.permute.xlu0 %1530
      %1532 = vrot.lane.b32.xlu0 %v926, 32
      %v1533 = vpop.permute.xlu0 %1532
      %1534 = vrot.lane.b32.xlu0 %v927, 32
      %v1535 = vpop.permute.xlu0 %1534
      %1536 = vrot.lane.b32.xlu0 %v928, 32
      %v1537 = vpop.permute.xlu0 %1536
      %1602 = vrot.lane.b32.xlu0 %v929, 40
      %v1603 = vpop.permute.xlu0 %1602
      %1604 = vrot.lane.b32.xlu0 %v930, 40
      %v1605 = vpop.permute.xlu0 %1604
      %1606 = vrot.lane.b32.xlu0 %v931, 40
      %v1607 = vpop.permute.xlu0 %1606
      %1608 = vrot.lane.b32.xlu0 %v932, 40
      %v1609 = vpop.permute.xlu0 %1608
      %1610 = vrot.lane.b32.xlu0 %v933, 40
      %v1611 = vpop.permute.xlu0 %1610
      %1612 = vrot.lane.b32.xlu0 %v934, 40
      %v1613 = vpop.permute.xlu0 %1612
      %1614 = vrot.lane.b32.xlu0 %v935, 40
      %v1615 = vpop.permute.xlu0 %1614
      %1616 = vrot.lane.b32.xlu0 %v936, 40
      %v1617 = vpop.permute.xlu0 %1616
      %1618 = vrot.lane.b32.xlu0 %v937, 40
      %v1619 = vpop.permute.xlu0 %1618
      %1620 = vrot.lane.b32.xlu0 %v938, 40
      %v1621 = vpop.permute.xlu0 %1620
      %1622 = vrot.lane.b32.xlu0 %v939, 40
      %v1623 = vpop.permute.xlu0 %1622
      %1624 = vrot.lane.b32.xlu0 %v940, 40
      %v1625 = vpop.permute.xlu0 %1624
      %1626 = vrot.lane.b32.xlu0 %v941, 40
      %v1627 = vpop.permute.xlu0 %1626
      %1628 = vrot.lane.b32.xlu0 %v942, 40
      %v1629 = vpop.permute.xlu0 %1628
      %1630 = vrot.lane.b32.xlu0 %v943, 40
      %v1631 = vpop.permute.xlu0 %1630
      %1632 = vrot.lane.b32.xlu0 %v944, 40
      %v1633 = vpop.permute.xlu0 %1632
      %1634 = vrot.lane.b32.xlu0 %v945, 40
      %v1635 = vpop.permute.xlu0 %1634
      %1636 = vrot.lane.b32.xlu0 %v946, 40
      %v1637 = vpop.permute.xlu0 %1636
      %1638 = vrot.lane.b32.xlu0 %v947, 40
      %v1639 = vpop.permute.xlu0 %1638
      %1640 = vrot.lane.b32.xlu0 %v948, 40
      %v1641 = vpop.permute.xlu0 %1640
      %1642 = vrot.lane.b32.xlu0 %v949, 40
      %v1643 = vpop.permute.xlu0 %1642
      %1644 = vrot.lane.b32.xlu0 %v950, 40
      %v1645 = vpop.permute.xlu0 %1644
      %1646 = vrot.lane.b32.xlu0 %v951, 40
      %v1647 = vpop.permute.xlu0 %1646
      %1648 = vrot.lane.b32.xlu0 %v952, 40
      %v1649 = vpop.permute.xlu0 %1648
      %1650 = vrot.lane.b32.xlu0 %v953, 40
      %v1651 = vpop.permute.xlu0 %1650
      %1652 = vrot.lane.b32.xlu0 %v954, 40
      %v1653 = vpop.permute.xlu0 %1652
      %1654 = vrot.lane.b32.xlu0 %v955, 40
      %v1655 = vpop.permute.xlu0 %1654
      %1656 = vrot.lane.b32.xlu0 %v956, 40
      %v1657 = vpop.permute.xlu0 %1656
      %1658 = vrot.lane.b32.xlu0 %v957, 40
      %v1659 = vpop.permute.xlu0 %1658
      %1660 = vrot.lane.b32.xlu0 %v958, 40
      %v1661 = vpop.permute.xlu0 %1660
      %1662 = vrot.lane.b32.xlu0 %v959, 40
      %v1663 = vpop.permute.xlu0 %1662
      %1664 = vrot.lane.b32.xlu0 %v960, 40
      %v1665 = vpop.permute.xlu0 %1664
      %1730 = vrot.lane.b32.xlu0 %v962, 48
      %v1731 = vpop.permute.xlu0 %1730
      %1732 = vrot.lane.b32.xlu0 %v963, 48
      %v1733 = vpop.permute.xlu0 %1732
      %1734 = vrot.lane.b32.xlu0 %v964, 48
      %v1735 = vpop.permute.xlu0 %1734
      %1736 = vrot.lane.b32.xlu0 %v965, 48
      %v1737 = vpop.permute.xlu0 %1736
      %1738 = vrot.lane.b32.xlu0 %v966, 48
      %v1739 = vpop.permute.xlu0 %1738
      %1740 = vrot.lane.b32.xlu0 %v967, 48
      %v1741 = vpop.permute.xlu0 %1740
      %1742 = vrot.lane.b32.xlu0 %v968, 48
      %v1743 = vpop.permute.xlu0 %1742
      %1744 = vrot.lane.b32.xlu0 %v969, 48
      %v1745 = vpop.permute.xlu0 %1744
      %1746 = vrot.lane.b32.xlu0 %v970, 48
      %v1747 = vpop.permute.xlu0 %1746
      %1748 = vrot.lane.b32.xlu0 %v971, 48
      %v1749 = vpop.permute.xlu0 %1748
      %1750 = vrot.lane.b32.xlu0 %v972, 48
      %v1751 = vpop.permute.xlu0 %1750
      %1752 = vrot.lane.b32.xlu0 %v973, 48
      %v1753 = vpop.permute.xlu0 %1752
      %1754 = vrot.lane.b32.xlu0 %v974, 48
      %v1755 = vpop.permute.xlu0 %1754
      %1756 = vrot.lane.b32.xlu0 %v975, 48
      %v1757 = vpop.permute.xlu0 %1756
      %1758 = vrot.lane.b32.xlu0 %v976, 48
      %v1759 = vpop.permute.xlu0 %1758
      %1760 = vrot.lane.b32.xlu0 %v977, 48
      %v1761 = vpop.permute.xlu0 %1760
      %1762 = vrot.lane.b32.xlu0 %v978, 48
      %v1763 = vpop.permute.xlu0 %1762
      %1764 = vrot.lane.b32.xlu0 %v979, 48
      %v1765 = vpop.permute.xlu0 %1764
      %1766 = vrot.lane.b32.xlu0 %v980, 48
      %v1767 = vpop.permute.xlu0 %1766
      %1768 = vrot.lane.b32.xlu0 %v981, 48
      %v1769 = vpop.permute.xlu0 %1768
      %1770 = vrot.lane.b32.xlu0 %v982, 48
      %v1771 = vpop.permute.xlu0 %1770
      %1772 = vrot.lane.b32.xlu0 %v983, 48
      %v1773 = vpop.permute.xlu0 %1772
      %1774 = vrot.lane.b32.xlu0 %v984, 48
      %v1775 = vpop.permute.xlu0 %1774
      %1776 = vrot.lane.b32.xlu0 %v985, 48
      %v1777 = vpop.permute.xlu0 %1776
      %1778 = vrot.lane.b32.xlu0 %v986, 48
      %v1779 = vpop.permute.xlu0 %1778
      %1780 = vrot.lane.b32.xlu0 %v987, 48
      %v1781 = vpop.permute.xlu0 %1780
      %1782 = vrot.lane.b32.xlu0 %v988, 48
      %v1783 = vpop.permute.xlu0 %1782
      %1784 = vrot.lane.b32.xlu0 %v989, 48
      %v1785 = vpop.permute.xlu0 %1784
      %1786 = vrot.lane.b32.xlu0 %v990, 48
      %v1787 = vpop.permute.xlu0 %1786
      %1788 = vrot.lane.b32.xlu0 %v991, 48
      %v1789 = vpop.permute.xlu0 %1788
      %1790 = vrot.lane.b32.xlu0 %v992, 48
      %v1791 = vpop.permute.xlu0 %1790
      %1792 = vrot.lane.b32.xlu0 %v993, 48
      %v1793 = vpop.permute.xlu0 %1792
      %1858 = vrot.lane.b32.xlu0 %v994, 56
      %v1859 = vpop.permute.xlu0 %1858
      %1860 = vrot.lane.b32.xlu0 %v995, 56
      %v1861 = vpop.permute.xlu0 %1860
      %1862 = vrot.lane.b32.xlu0 %v996, 56
      %v1863 = vpop.permute.xlu0 %1862
      %1864 = vrot.lane.b32.xlu0 %v997, 56
      %v1865 = vpop.permute.xlu0 %1864
      %1866 = vrot.lane.b32.xlu0 %v998, 56
      %v1867 = vpop.permute.xlu0 %1866
      %1868 = vrot.lane.b32.xlu0 %v999, 56
      %v1869 = vpop.permute.xlu0 %1868
      %1870 = vrot.lane.b32.xlu0 %v1000, 56
      %v1871 = vpop.permute.xlu0 %1870
      %1872 = vrot.lane.b32.xlu0 %v1001, 56
      %v1873 = vpop.permute.xlu0 %1872
      %1874 = vrot.lane.b32.xlu0 %v1002, 56
      %v1875 = vpop.permute.xlu0 %1874
      %1876 = vrot.lane.b32.xlu0 %v1003, 56
      %v1877 = vpop.permute.xlu0 %1876
      %1878 = vrot.lane.b32.xlu0 %v1004, 56
      %v1879 = vpop.permute.xlu0 %1878
      %1880 = vrot.lane.b32.xlu0 %v1005, 56
      %v1881 = vpop.permute.xlu0 %1880
      %1882 = vrot.lane.b32.xlu0 %v1006, 56
      %v1883 = vpop.permute.xlu0 %1882
      %1884 = vrot.lane.b32.xlu0 %v1007, 56
      %v1885 = vpop.permute.xlu0 %1884
      %1886 = vrot.lane.b32.xlu0 %v1008, 56
      %v1887 = vpop.permute.xlu0 %1886
      %1888 = vrot.lane.b32.xlu0 %v1009, 56
      %v1889 = vpop.permute.xlu0 %1888
      %1890 = vrot.lane.b32.xlu0 %v1010, 56
      %v1891 = vpop.permute.xlu0 %1890
      %1892 = vrot.lane.b32.xlu0 %v1011, 56
      %v1893 = vpop.permute.xlu0 %1892
      %1894 = vrot.lane.b32.xlu0 %v1012, 56
      %v1895 = vpop.permute.xlu0 %1894
      %1896 = vrot.lane.b32.xlu0 %v1013, 56
      %v1897 = vpop.permute.xlu0 %1896
      %1898 = vrot.lane.b32.xlu0 %v1014, 56
      %v1899 = vpop.permute.xlu0 %1898
      %1900 = vrot.lane.b32.xlu0 %v1015, 56
      %v1901 = vpop.permute.xlu0 %1900
      %1902 = vrot.lane.b32.xlu0 %v1016, 56
      %v1903 = vpop.permute.xlu0 %1902
      %1904 = vrot.lane.b32.xlu0 %v1017, 56
      %v1905 = vpop.permute.xlu0 %1904
      %1906 = vrot.lane.b32.xlu0 %v1018, 56
      %v1907 = vpop.permute.xlu0 %1906
      %1908 = vrot.lane.b32.xlu0 %v1019, 56
      %v1909 = vpop.permute.xlu0 %1908
      %1910 = vrot.lane.b32.xlu0 %v1020, 56
      %v1911 = vpop.permute.xlu0 %1910
      %1912 = vrot.lane.b32.xlu0 %v1021, 56
      %v1913 = vpop.permute.xlu0 %1912
      %1914 = vrot.lane.b32.xlu0 %v1022, 56
      %v1915 = vpop.permute.xlu0 %1914
      %1916 = vrot.lane.b32.xlu0 %v1023, 56
      %v1917 = vpop.permute.xlu0 %1916
      %1918 = vrot.lane.b32.xlu0 %v1024, 56
      %v1919 = vpop.permute.xlu0 %1918
      %1920 = vrot.lane.b32.xlu0 %v1025, 56
      %v1921 = vpop.permute.xlu0 %1920
      %1986 = vrot.lane.b32.xlu0 %v1026, 64
      %v1987 = vpop.permute.xlu0 %1986
      %1988 = vrot.lane.b32.xlu0 %v1027, 64
      %v1989 = vpop.permute.xlu0 %1988
      %1990 = vrot.lane.b32.xlu0 %v1028, 64
      %v1991 = vpop.permute.xlu0 %1990
      %1992 = vrot.lane.b32.xlu0 %v1029, 64
      %v1993 = vpop.permute.xlu0 %1992
      %1994 = vrot.lane.b32.xlu0 %v1030, 64
      %v1995 = vpop.permute.xlu0 %1994
      %1996 = vrot.lane.b32.xlu0 %v1031, 64
      %v1997 = vpop.permute.xlu0 %1996
      %1998 = vrot.lane.b32.xlu0 %v1032, 64
      %v1999 = vpop.permute.xlu0 %1998
      %2000 = vrot.lane.b32.xlu0 %v1033, 64
      %v2001 = vpop.permute.xlu0 %2000
      %2002 = vrot.lane.b32.xlu0 %v1034, 64
      %v2003 = vpop.permute.xlu0 %2002
      %2004 = vrot.lane.b32.xlu0 %v1035, 64
      %v2005 = vpop.permute.xlu0 %2004
      %2006 = vrot.lane.b32.xlu0 %v1036, 64
      %v2007 = vpop.permute.xlu0 %2006
      %2008 = vrot.lane.b32.xlu0 %v1037, 64
      %v2009 = vpop.permute.xlu0 %2008
      %2010 = vrot.lane.b32.xlu0 %v1038, 64
      %v2011 = vpop.permute.xlu0 %2010
      %2012 = vrot.lane.b32.xlu0 %v1039, 64
      %v2013 = vpop.permute.xlu0 %2012
      %2014 = vrot.lane.b32.xlu0 %v1040, 64
      %v2015 = vpop.permute.xlu0 %2014
      %2016 = vrot.lane.b32.xlu0 %v1041, 64
      %v2017 = vpop.permute.xlu0 %2016
      %2018 = vrot.lane.b32.xlu0 %v1042, 64
      %v2019 = vpop.permute.xlu0 %2018
      %2020 = vrot.lane.b32.xlu0 %v1043, 64
      %v2021 = vpop.permute.xlu0 %2020
      %2022 = vrot.lane.b32.xlu0 %v1044, 64
      %v2023 = vpop.permute.xlu0 %2022
      %2024 = vrot.lane.b32.xlu0 %v1045, 64
      %v2025 = vpop.permute.xlu0 %2024
      %2026 = vrot.lane.b32.xlu0 %v1046, 64
      %v2027 = vpop.permute.xlu0 %2026
      %2028 = vrot.lane.b32.xlu0 %v1047, 64
      %v2029 = vpop.permute.xlu0 %2028
      %2030 = vrot.lane.b32.xlu0 %v1048, 64
      %v2031 = vpop.permute.xlu0 %2030
      %2032 = vrot.lane.b32.xlu0 %v1049, 64
      %v2033 = vpop.permute.xlu0 %2032
      %2034 = vrot.lane.b32.xlu0 %v1050, 64
      %v2035 = vpop.permute.xlu0 %2034
      %2036 = vrot.lane.b32.xlu0 %v1051, 64
      %v2037 = vpop.permute.xlu0 %2036
      %2038 = vrot.lane.b32.xlu0 %v1052, 64
      %v2039 = vpop.permute.xlu0 %2038
      %2040 = vrot.lane.b32.xlu0 %v1053, 64
      %v2041 = vpop.permute.xlu0 %2040
      %2042 = vrot.lane.b32.xlu0 %v1054, 64
      %v2043 = vpop.permute.xlu0 %2042
      %2044 = vrot.lane.b32.xlu0 %v1055, 64
      %v2045 = vpop.permute.xlu0 %2044
      %2046 = vrot.lane.b32.xlu0 %v1056, 64
      %v2047 = vpop.permute.xlu0 %2046
      %2048 = vrot.lane.b32.xlu0 %v1057, 64
      %v2049 = vpop.permute.xlu0 %2048
      %v2082 = vsel %vm327, %v769, %v1091
      %v2083 = vsel %vm327, %v770, %v1093
      %v2084 = vsel %vm327, %v771, %v1095
      %v2085 = vsel %vm327, %v772, %v1097
      %v2086 = vsel %vm327, %v773, %v1099
      %v2087 = vsel %vm327, %v774, %v1101
      %v2088 = vsel %vm327, %v775, %v1103
      %v2089 = vsel %vm327, %v776, %v1105
      %v2090 = vsel %vm327, %v777, %v1107
      %v2091 = vsel %vm327, %v778, %v1109
      %v2092 = vsel %vm327, %v779, %v1111
      %v2093 = vsel %vm327, %v780, %v1113
      %v2094 = vsel %vm327, %v781, %v1115
      %v2095 = vsel %vm327, %v782, %v1117
      %v2096 = vsel %vm327, %v783, %v1119
      %v2097 = vsel %vm327, %v784, %v1121
      %v2098 = vsel %vm327, %v785, %v1123
      %v2099 = vsel %vm327, %v786, %v1125
      %v2100 = vsel %vm327, %v787, %v1127
      %v2101 = vsel %vm327, %v788, %v1129
      %v2102 = vsel %vm327, %v789, %v1131
      %v2103 = vsel %vm327, %v790, %v1133
      %v2104 = vsel %vm327, %v791, %v1135
      %v2105 = vsel %vm327, %v792, %v1137
      %v2106 = vsel %vm327, %v793, %v1139
      %v2107 = vsel %vm327, %v794, %v1141
      %v2108 = vsel %vm327, %v795, %v1143
      %v2109 = vsel %vm327, %v796, %v1145
      %v2110 = vsel %vm327, %v797, %v1147
      %v2111 = vsel %vm327, %v798, %v1149
      %v2112 = vsel %vm327, %v799, %v1151
      %v2113 = vsel %vm327, %v800, %v1153
      %vm2114 = vcmask 130048
      %v2115 = vsel %vm2114, %v2082, %v1219
      %v2116 = vsel %vm2114, %v2083, %v1221
      %v2117 = vsel %vm2114, %v2084, %v1223
      %v2118 = vsel %vm2114, %v2085, %v1225
      %v2119 = vsel %vm2114, %v2086, %v1227
      %v2120 = vsel %vm2114, %v2087, %v1229
      %v2121 = vsel %vm2114, %v2088, %v1231
      %v2122 = vsel %vm2114, %v2089, %v1233
      %v2123 = vsel %vm2114, %v2090, %v1235
      %v2124 = vsel %vm2114, %v2091, %v1237
      %v2125 = vsel %vm2114, %v2092, %v1239
      %v2126 = vsel %vm2114, %v2093, %v1241
      %v2127 = vsel %vm2114, %v2094, %v1243
      %v2128 = vsel %vm2114, %v2095, %v1245
      %v2129 = vsel %vm2114, %v2096, %v1247
      %v2130 = vsel %vm2114, %v2097, %v1249
      %v2131 = vsel %vm2114, %v2098, %v1251
      %v2132 = vsel %vm2114, %v2099, %v1253
      %v2133 = vsel %vm2114, %v2100, %v1255
      %v2134 = vsel %vm2114, %v2101, %v1257
      %v2135 = vsel %vm2114, %v2102, %v1259
      %v2136 = vsel %vm2114, %v2103, %v1261
      %v2137 = vsel %vm2114, %v2104, %v1263
      %v2138 = vsel %vm2114, %v2105, %v1265
      %v2139 = vsel %vm2114, %v2106, %v1267
      %v2140 = vsel %vm2114, %v2107, %v1269
      %v2141 = vsel %vm2114, %v2108, %v1271
      %v2142 = vsel %vm2114, %v2109, %v1273
      %v2143 = vsel %vm2114, %v2110, %v1275
      %v2144 = vsel %vm2114, %v2111, %v1277
      %v2145 = vsel %vm2114, %v2112, %v1279
      %v2146 = vsel %vm2114, %v2113, %v1281
      %vm2147 = vcmask 195584
      %v2148 = vsel %vm2147, %v2115, %v1347
      %v2149 = vsel %vm2147, %v2116, %v1349
      %v2150 = vsel %vm2147, %v2117, %v1351
      %v2151 = vsel %vm2147, %v2118, %v1353
      %v2152 = vsel %vm2147, %v2119, %v1355
      %v2153 = vsel %vm2147, %v2120, %v1357
      %v2154 = vsel %vm2147, %v2121, %v1359
      %v2155 = vsel %vm2147, %v2122, %v1361
      %v2156 = vsel %vm2147, %v2123, %v1363
      %v2157 = vsel %vm2147, %v2124, %v1365
      %v2158 = vsel %vm2147, %v2125, %v1367
      %v2159 = vsel %vm2147, %v2126, %v1369
      %v2160 = vsel %vm2147, %v2127, %v1371
      %v2161 = vsel %vm2147, %v2128, %v1373
      %v2162 = vsel %vm2147, %v2129, %v1375
      %v2163 = vsel %vm2147, %v2130, %v1377
      %v2164 = vsel %vm2147, %v2131, %v1379
      %v2165 = vsel %vm2147, %v2132, %v1381
      %v2166 = vsel %vm2147, %v2133, %v1383
      %v2167 = vsel %vm2147, %v2134, %v1385
      %v2168 = vsel %vm2147, %v2135, %v1387
      %v2169 = vsel %vm2147, %v2136, %v1389
      %v2170 = vsel %vm2147, %v2137, %v1391
      %v2171 = vsel %vm2147, %v2138, %v1393
      %v2172 = vsel %vm2147, %v2139, %v1395
      %v2173 = vsel %vm2147, %v2140, %v1397
      %v2174 = vsel %vm2147, %v2141, %v1399
      %v2175 = vsel %vm2147, %v2142, %v1401
      %v2176 = vsel %vm2147, %v2143, %v1403
      %v2177 = vsel %vm2147, %v2144, %v1405
      %v2178 = vsel %vm2147, %v2145, %v1407
      %v2179 = vsel %vm2147, %v2146, %v1409
      %vm2180 = vcmask 261120
      %v2181 = vsel %vm2180, %v2148, %v1475
      %v2182 = vsel %vm2180, %v2149, %v1477
      %v2183 = vsel %vm2180, %v2150, %v1479
      %v2184 = vsel %vm2180, %v2151, %v1481
      %v2185 = vsel %vm2180, %v2152, %v1483
      %v2186 = vsel %vm2180, %v2153, %v1485
      %v2187 = vsel %vm2180, %v2154, %v1487
      %v2188 = vsel %vm2180, %v2155, %v1489
      %v2189 = vsel %vm2180, %v2156, %v1491
      %v2190 = vsel %vm2180, %v2157, %v1493
      %v2191 = vsel %vm2180, %v2158, %v1495
      %v2192 = vsel %vm2180, %v2159, %v1497
      %v2193 = vsel %vm2180, %v2160, %v1499
      %v2194 = vsel %vm2180, %v2161, %v1501
      %v2195 = vsel %vm2180, %v2162, %v1503
      %v2196 = vsel %vm2180, %v2163, %v1505
      %v2197 = vsel %vm2180, %v2164, %v1507
      %v2198 = vsel %vm2180, %v2165, %v1509
      %v2199 = vsel %vm2180, %v2166, %v1511
      %v2200 = vsel %vm2180, %v2167, %v1513
      %v2201 = vsel %vm2180, %v2168, %v1515
      %v2202 = vsel %vm2180, %v2169, %v1517
      %v2203 = vsel %vm2180, %v2170, %v1519
      %v2204 = vsel %vm2180, %v2171, %v1521
      %v2205 = vsel %vm2180, %v2172, %v1523
      %v2206 = vsel %vm2180, %v2173, %v1525
      %v2207 = vsel %vm2180, %v2174, %v1527
      %v2208 = vsel %vm2180, %v2175, %v1529
      %v2209 = vsel %vm2180, %v2176, %v1531
      %v2210 = vsel %vm2180, %v2177, %v1533
      %v2211 = vsel %vm2180, %v2178, %v1535
      %v2212 = vsel %vm2180, %v2179, %v1537
      %vm2213 = vcmask 326656
      %v2214 = vsel %vm2213, %v2181, %v1603
      %v2215 = vsel %vm2213, %v2182, %v1605
      %v2216 = vsel %vm2213, %v2183, %v1607
      %v2217 = vsel %vm2213, %v2184, %v1609
      %v2218 = vsel %vm2213, %v2185, %v1611
      %v2219 = vsel %vm2213, %v2186, %v1613
      %v2220 = vsel %vm2213, %v2187, %v1615
      %v2221 = vsel %vm2213, %v2188, %v1617
      %v2222 = vsel %vm2213, %v2189, %v1619
      %v2223 = vsel %vm2213, %v2190, %v1621
      %v2224 = vsel %vm2213, %v2191, %v1623
      %v2225 = vsel %vm2213, %v2192, %v1625
      %v2226 = vsel %vm2213, %v2193, %v1627
      %v2227 = vsel %vm2213, %v2194, %v1629
      %v2228 = vsel %vm2213, %v2195, %v1631
      %v2229 = vsel %vm2213, %v2196, %v1633
      %v2230 = vsel %vm2213, %v2197, %v1635
      %v2231 = vsel %vm2213, %v2198, %v1637
      %v2232 = vsel %vm2213, %v2199, %v1639
      %v2233 = vsel %vm2213, %v2200, %v1641
      %v2234 = vsel %vm2213, %v2201, %v1643
      %v2235 = vsel %vm2213, %v2202, %v1645
      %v2236 = vsel %vm2213, %v2203, %v1647
      %v2237 = vsel %vm2213, %v2204, %v1649
      %v2238 = vsel %vm2213, %v2205, %v1651
      %v2239 = vsel %vm2213, %v2206, %v1653
      %v2240 = vsel %vm2213, %v2207, %v1655
      %v2241 = vsel %vm2213, %v2208, %v1657
      %v2242 = vsel %vm2213, %v2209, %v1659
      %v2243 = vsel %vm2213, %v2210, %v1661
      %v2244 = vsel %vm2213, %v2211, %v1663
      %v2245 = vsel %vm2213, %v2212, %v1665
      %vm2246 = vcmask 392192
      %v2247 = vsel %vm2246, %v2214, %v1731
      %v2248 = vsel %vm2246, %v2215, %v1733
      %v2249 = vsel %vm2246, %v2216, %v1735
      %v2250 = vsel %vm2246, %v2217, %v1737
      %v2251 = vsel %vm2246, %v2218, %v1739
      %v2252 = vsel %vm2246, %v2219, %v1741
      %v2253 = vsel %vm2246, %v2220, %v1743
      %v2254 = vsel %vm2246, %v2221, %v1745
      %v2255 = vsel %vm2246, %v2222, %v1747
      %v2256 = vsel %vm2246, %v2223, %v1749
      %v2257 = vsel %vm2246, %v2224, %v1751
      %v2258 = vsel %vm2246, %v2225, %v1753
      %v2259 = vsel %vm2246, %v2226, %v1755
      %v2260 = vsel %vm2246, %v2227, %v1757
      %v2261 = vsel %vm2246, %v2228, %v1759
      %v2262 = vsel %vm2246, %v2229, %v1761
      %v2263 = vsel %vm2246, %v2230, %v1763
      %v2264 = vsel %vm2246, %v2231, %v1765
      %v2265 = vsel %vm2246, %v2232, %v1767
      %v2266 = vsel %vm2246, %v2233, %v1769
      %v2267 = vsel %vm2246, %v2234, %v1771
      %v2268 = vsel %vm2246, %v2235, %v1773
      %v2269 = vsel %vm2246, %v2236, %v1775
      %v2270 = vsel %vm2246, %v2237, %v1777
      %v2271 = vsel %vm2246, %v2238, %v1779
      %v2272 = vsel %vm2246, %v2239, %v1781
      %v2273 = vsel %vm2246, %v2240, %v1783
      %v2274 = vsel %vm2246, %v2241, %v1785
      %v2275 = vsel %vm2246, %v2242, %v1787
      %v2276 = vsel %vm2246, %v2243, %v1789
      %v2277 = vsel %vm2246, %v2244, %v1791
      %v2278 = vsel %vm2246, %v2245, %v1793
      %vm2279 = vcmask 457728
      %v2280 = vsel %vm2279, %v2247, %v1859
      %v2281 = vsel %vm2279, %v2248, %v1861
      %v2282 = vsel %vm2279, %v2249, %v1863
      %v2283 = vsel %vm2279, %v2250, %v1865
      %v2284 = vsel %vm2279, %v2251, %v1867
      %v2285 = vsel %vm2279, %v2252, %v1869
      %v2286 = vsel %vm2279, %v2253, %v1871
      %v2287 = vsel %vm2279, %v2254, %v1873
      %v2288 = vsel %vm2279, %v2255, %v1875
      %v2289 = vsel %vm2279, %v2256, %v1877
      %v2290 = vsel %vm2279, %v2257, %v1879
      %v2291 = vsel %vm2279, %v2258, %v1881
      %v2292 = vsel %vm2279, %v2259, %v1883
      %v2293 = vsel %vm2279, %v2260, %v1885
      %v2294 = vsel %vm2279, %v2261, %v1887
      %v2295 = vsel %vm2279, %v2262, %v1889
      %v2296 = vsel %vm2279, %v2263, %v1891
      %v2297 = vsel %vm2279, %v2264, %v1893
      %v2298 = vsel %vm2279, %v2265, %v1895
      %v2299 = vsel %vm2279, %v2266, %v1897
      %v2300 = vsel %vm2279, %v2267, %v1899
      %v2301 = vsel %vm2279, %v2268, %v1901
      %v2302 = vsel %vm2279, %v2269, %v1903
      %v2303 = vsel %vm2279, %v2270, %v1905
      %v2304 = vsel %vm2279, %v2271, %v1907
      %v2305 = vsel %vm2279, %v2272, %v1909
      %v2306 = vsel %vm2279, %v2273, %v1911
      %v2307 = vsel %vm2279, %v2274, %v1913
      %v2308 = vsel %vm2279, %v2275, %v1915
      %v2309 = vsel %vm2279, %v2276, %v1917
      %v2310 = vsel %vm2279, %v2277, %v1919
      %v2311 = vsel %vm2279, %v2278, %v1921
      %vm2312 = vcmask 523264
      %v2313 = vsel %vm2312, %v2280, %v1987
      %v2314 = vsel %vm2312, %v2281, %v1989
      %v2315 = vsel %vm2312, %v2282, %v1991
      %v2316 = vsel %vm2312, %v2283, %v1993
      %v2317 = vsel %vm2312, %v2284, %v1995
      %v2318 = vsel %vm2312, %v2285, %v1997
      %v2319 = vsel %vm2312, %v2286, %v1999
      %v2320 = vsel %vm2312, %v2287, %v2001
      %v2321 = vsel %vm2312, %v2288, %v2003
      %v2322 = vsel %vm2312, %v2289, %v2005
      %v2323 = vsel %vm2312, %v2290, %v2007
      %v2324 = vsel %vm2312, %v2291, %v2009
      %v2325 = vsel %vm2312, %v2292, %v2011
      %v2326 = vsel %vm2312, %v2293, %v2013
      %v2327 = vsel %vm2312, %v2294, %v2015
      %v2328 = vsel %vm2312, %v2295, %v2017
      %v2329 = vsel %vm2312, %v2296, %v2019
      %v2330 = vsel %vm2312, %v2297, %v2021
      %v2331 = vsel %vm2312, %v2298, %v2023
      %v2332 = vsel %vm2312, %v2299, %v2025
      %v2333 = vsel %vm2312, %v2300, %v2027
      %v2334 = vsel %vm2312, %v2301, %v2029
      %v2335 = vsel %vm2312, %v2302, %v2031
      %v2336 = vsel %vm2312, %v2303, %v2033
      %v2337 = vsel %vm2312, %v2304, %v2035
      %v2338 = vsel %vm2312, %v2305, %v2037
      %v2339 = vsel %vm2312, %v2306, %v2039
      %v2340 = vsel %vm2312, %v2307, %v2041
      %v2341 = vsel %vm2312, %v2308, %v2043
      %v2342 = vsel %vm2312, %v2309, %v2045
      %v2343 = vsel %vm2312, %v2310, %v2047
      %v2344 = vsel %vm2312, %v2311, %v2049
      %v2345 = vpack.c.bf16 %v2314, %v2313
      %v2346 = vpack.c.bf16 %v2316, %v2315
      %v2347 = vpack.c.bf16 %v2318, %v2317
      %v2348 = vpack.c.bf16 %v2320, %v2319
      %v2349 = vpack.c.bf16 %v2322, %v2321
      %v2350 = vpack.c.bf16 %v2324, %v2323
      %v2351 = vpack.c.bf16 %v2326, %v2325
      %v2352 = vpack.c.bf16 %v2328, %v2327
      %v2353 = vpack.c.bf16 %v2330, %v2329
      %v2354 = vpack.c.bf16 %v2332, %v2331
      %v2355 = vpack.c.bf16 %v2334, %v2333
      %v2356 = vpack.c.bf16 %v2336, %v2335
      %v2357 = vpack.c.bf16 %v2338, %v2337
      %v2358 = vpack.c.bf16 %v2340, %v2339
      %v2359 = vpack.c.bf16 %v2342, %v2341
      %v2360 = vpack.c.bf16 %v2344, %v2343
      %v2361 = vld [vmem:[%s2] sm:$0xf]
      %v2362 = vld [vmem:[%s2 + $0x4] sm:$0xf]
      %v2363 = vld [vmem:[%s2 + $0x8] sm:$0xf]
      %v2364 = vld [vmem:[%s2 + $0xc] sm:$0xf]
      %v2365 = vld [vmem:[%s2 + $0x10] sm:$0xf]
      %v2366 = vld [vmem:[%s2 + $0x14] sm:$0xf]
      %v2367 = vld [vmem:[%s2 + $0x18] sm:$0xf]
      %v2368 = vld [vmem:[%s2 + $0x1c] sm:$0xf]
      %v2369 = vld [vmem:[%s2 + $0x20] sm:$0xf]
      %v2379 = vunpack.c.l.b16 %v2361
      %v2380 = vunpack.c.l.b16 %v2362
      %v2381 = vunpack.c.l.b16 %v2363
      %v2382 = vunpack.c.l.b16 %v2364
      %v2383 = vunpack.c.l.b16 %v2365
      %v2384 = vunpack.c.l.b16 %v2366
      %v2385 = vunpack.c.l.b16 %v2367
      %v2386 = vunpack.c.l.b16 %v2368
      %v2387 = vunpack.c.l.b16 %v2369
      %v2388 = vpack.c.b16 %v2380, %v2379
      %v2389 = vpack.c.b16 %v2382, %v2381
      %v2390 = vpack.c.b16 %v2384, %v2383
      %v2391 = vpack.c.b16 %v2386, %v2385
      %v2392 = vpack.c.b16 %v2387, %v2387
      %vm2397 = vcmask 588800
      %v2399 = vsel %vm2397, %v2345, 0
      %v2402 = vsel %vm2397, %v2346, 0
      %v2405 = vsel %vm2397, %v2347, 0
      %v2408 = vsel %vm2397, %v2348, 0
      %v2411 = vsel %vm2397, %v2349, 0
      %v2414 = vsel %vm2397, %v2350, 0
      %v2417 = vsel %vm2397, %v2351, 0
      %v2420 = vsel %vm2397, %v2352, 0
      %v2423 = vsel %vm2397, %v2353, 0
      %v2426 = vsel %vm2397, %v2354, 0
      %v2429 = vsel %vm2397, %v2355, 0
      %v2432 = vsel %vm2397, %v2356, 0
      %v2435 = vsel %vm2397, %v2357, 0
      %v2438 = vsel %vm2397, %v2358, 0
      %v2441 = vsel %vm2397, %v2359, 0
      %v2444 = vsel %vm2397, %v2360, 0
      %vm2446 = vcmask 1043456
      %v2448 = vsel %vm2446, %v2392, 0
      %2450 = vmatprep.subr.bf16.mxu0 0
      %2451 = vmatpush1.bf16.msra.mxu0 0
      %2452 = vmatprep.subr.bf16.mxu0 0
      %2453 = vmatpush1.bf16.msra.mxu0 0
      %2454 = vmatprep.subr.bf16.mxu0 0
      %2455 = vmatpush1.bf16.msra.mxu0 0
      %2456 = vmatprep.subr.bf16.mxu0 0
      %2457 = vmatpush1.bf16.msra.mxu0 %v2448
      %2458 = vmatprep.subr.bf16.mxu0 0
      %2459 = vmatpush1.bf16.msra.mxu0 %v2391
      %2460 = vmatprep.subr.bf16.mxu0 0
      %2461 = vmatpush1.bf16.msra.mxu0 %v2390
      %2462 = vmatprep.subr.bf16.mxu0 0
      %2463 = vmatpush1.bf16.msra.mxu0 %v2389
      %2464 = vmatprep.subr.bf16.mxu0 0
      %2465 = vmatpush1.bf16.msra.mxu0 %v2388
      %2466 = vmatprep.subr.bf16.mxu0 0
      %2467 = vmatpush2.bf16.msra.mxu0 0
      %2468 = vmatprep.subr.bf16.mxu0 0
      %2469 = vmatpush2.bf16.msra.mxu0 0
      %2470 = vmatprep.subr.bf16.mxu0 0
      %2471 = vmatpush2.bf16.msra.mxu0 0
      %2472 = vmatprep.subr.bf16.mxu0 0
      %2473 = vmatpush2.bf16.msra.mxu0 0
      %2474 = vmatprep.subr.bf16.mxu0 0
      %2475 = vmatpush2.bf16.msra.mxu0 0
      %2476 = vmatprep.subr.bf16.mxu0 0
      %2477 = vmatpush2.bf16.msra.mxu0 0
      %2478 = vmatprep.subr.bf16.mxu0 0
      %2479 = vmatpush2.bf16.msra.mxu0 0
      %2480 = vmatprep.subr.bf16.mxu0 0
      %2481 = vmatpush2.bf16.msra.mxu0 0
      %2482 = vmatprep.mubr.bf16.mxu0 0
      %2483 = vmatmul.mubr.bf16.gmra.mxu0 %v2399
      %v2484 = vpop.f32.mrf.mxu0
      %v2485 = vadd.f32 0.0, %v2484
      %v2486 = vpop.f32.mrf.mxu0
      %v2487 = vpop.f32.mrf.mxu0
      %v2488 = vadd.f32 0.0, %v2487
      %v2489 = vpop.f32.mrf.mxu0
      %2490 = vmatprep.mubr.bf16.mxu0 0
      %2491 = vmatmul.mubr.bf16.gmra.mxu0 %v2402
      %v2492 = vpop.f32.mrf.mxu0
      %v2493 = vadd.f32 0.0, %v2492
      %v2494 = vpop.f32.mrf.mxu0
      %v2495 = vpop.f32.mrf.mxu0
      %v2496 = vadd.f32 0.0, %v2495
      %v2497 = vpop.f32.mrf.mxu0
      %2498 = vmatprep.mubr.bf16.mxu0 0
      %2499 = vmatmul.mubr.bf16.gmra.mxu0 %v2405
      %v2500 = vpop.f32.mrf.mxu0
      %v2501 = vadd.f32 0.0, %v2500
      %v2502 = vpop.f32.mrf.mxu0
      %v2503 = vpop.f32.mrf.mxu0
      %v2504 = vadd.f32 0.0, %v2503
      %v2505 = vpop.f32.mrf.mxu0
      %2506 = vmatprep.mubr.bf16.mxu0 0
      %2507 = vmatmul.mubr.bf16.gmra.mxu0 %v2408
      %v2508 = vpop.f32.mrf.mxu0
      %v2509 = vadd.f32 0.0, %v2508
      %v2510 = vpop.f32.mrf.mxu0
      %v2511 = vpop.f32.mrf.mxu0
      %v2512 = vadd.f32 0.0, %v2511
      %v2513 = vpop.f32.mrf.mxu0
      %2514 = vmatprep.mubr.bf16.mxu0 0
      %2515 = vmatmul.mubr.bf16.gmra.mxu0 %v2411
      %v2516 = vpop.f32.mrf.mxu0
      %v2517 = vadd.f32 0.0, %v2516
      %v2518 = vpop.f32.mrf.mxu0
      %v2519 = vpop.f32.mrf.mxu0
      %v2520 = vadd.f32 0.0, %v2519
      %v2521 = vpop.f32.mrf.mxu0
      %2522 = vmatprep.mubr.bf16.mxu0 0
      %2523 = vmatmul.mubr.bf16.gmra.mxu0 %v2414
      %v2524 = vpop.f32.mrf.mxu0
      %v2525 = vadd.f32 0.0, %v2524
      %v2526 = vpop.f32.mrf.mxu0
      %v2527 = vpop.f32.mrf.mxu0
      %v2528 = vadd.f32 0.0, %v2527
      %v2529 = vpop.f32.mrf.mxu0
      %2530 = vmatprep.mubr.bf16.mxu0 0
      %2531 = vmatmul.mubr.bf16.gmra.mxu0 %v2417
      %v2532 = vpop.f32.mrf.mxu0
      %v2533 = vadd.f32 0.0, %v2532
      %v2534 = vpop.f32.mrf.mxu0
      %v2535 = vpop.f32.mrf.mxu0
      %v2536 = vadd.f32 0.0, %v2535
      %v2537 = vpop.f32.mrf.mxu0
      %2538 = vmatprep.mubr.bf16.mxu0 0
      %2539 = vmatmul.mubr.bf16.gmra.mxu0 %v2420
      %v2540 = vpop.f32.mrf.mxu0
      %v2541 = vadd.f32 0.0, %v2540
      %v2542 = vpop.f32.mrf.mxu0
      %v2543 = vpop.f32.mrf.mxu0
      %v2544 = vadd.f32 0.0, %v2543
      %v2545 = vpop.f32.mrf.mxu0
      %2546 = vmatprep.mubr.bf16.mxu0 0
      %2547 = vmatmul.mubr.bf16.gmra.mxu0 %v2423
      %v2548 = vpop.f32.mrf.mxu0
      %v2549 = vadd.f32 0.0, %v2548
      %v2550 = vpop.f32.mrf.mxu0
      %v2551 = vpop.f32.mrf.mxu0
      %v2552 = vadd.f32 0.0, %v2551
      %v2553 = vpop.f32.mrf.mxu0
      %2554 = vmatprep.mubr.bf16.mxu0 0
      %2555 = vmatmul.mubr.bf16.gmra.mxu0 %v2426
      %v2556 = vpop.f32.mrf.mxu0
      %v2557 = vadd.f32 0.0, %v2556
      %v2558 = vpop.f32.mrf.mxu0
      %v2559 = vpop.f32.mrf.mxu0
      %v2560 = vadd.f32 0.0, %v2559
      %v2561 = vpop.f32.mrf.mxu0
      %2562 = vmatprep.mubr.bf16.mxu0 0
      %2563 = vmatmul.mubr.bf16.gmra.mxu0 %v2429
      %v2564 = vpop.f32.mrf.mxu0
      %v2565 = vadd.f32 0.0, %v2564
      %v2566 = vpop.f32.mrf.mxu0
      %v2567 = vpop.f32.mrf.mxu0
      %v2568 = vadd.f32 0.0, %v2567
      %v2569 = vpop.f32.mrf.mxu0
      %2570 = vmatprep.mubr.bf16.mxu0 0
      %2571 = vmatmul.mubr.bf16.gmra.mxu0 %v2432
      %v2572 = vpop.f32.mrf.mxu0
      %v2573 = vadd.f32 0.0, %v2572
      %v2574 = vpop.f32.mrf.mxu0
      %v2575 = vpop.f32.mrf.mxu0
      %v2576 = vadd.f32 0.0, %v2575
      %v2577 = vpop.f32.mrf.mxu0
      %2578 = vmatprep.mubr.bf16.mxu0 0
      %2579 = vmatmul.mubr.bf16.gmra.mxu0 %v2435
      %v2580 = vpop.f32.mrf.mxu0
      %v2581 = vadd.f32 0.0, %v2580
      %v2582 = vpop.f32.mrf.mxu0
      %v2583 = vpop.f32.mrf.mxu0
      %v2584 = vadd.f32 0.0, %v2583
      %v2585 = vpop.f32.mrf.mxu0
      %2586 = vmatprep.mubr.bf16.mxu0 0
      %2587 = vmatmul.mubr.bf16.gmra.mxu0 %v2438
      %v2588 = vpop.f32.mrf.mxu0
      %v2589 = vadd.f32 0.0, %v2588
      %v2590 = vpop.f32.mrf.mxu0
      %v2591 = vpop.f32.mrf.mxu0
      %v2592 = vadd.f32 0.0, %v2591
      %v2593 = vpop.f32.mrf.mxu0
      %2594 = vmatprep.mubr.bf16.mxu0 0
      %2595 = vmatmul.mubr.bf16.gmra.mxu0 %v2441
      %v2596 = vpop.f32.mrf.mxu0
      %v2597 = vadd.f32 0.0, %v2596
      %v2598 = vpop.f32.mrf.mxu0
      %v2599 = vpop.f32.mrf.mxu0
      %v2600 = vadd.f32 0.0, %v2599
      %v2601 = vpop.f32.mrf.mxu0
      %2602 = vmatprep.mubr.bf16.mxu0 0
      %2603 = vmatmul.mubr.bf16.gmra.mxu0 %v2444
      %v2604 = vpop.f32.mrf.mxu0
      %v2605 = vadd.f32 0.0, %v2604
      %v2606 = vpop.f32.mrf.mxu0
      %v2607 = vpop.f32.mrf.mxu0
      %v2608 = vadd.f32 0.0, %v2607
      %v2609 = vpop.f32.mrf.mxu0
      %2610 = vdwg.mxu0
      %v2611 = vld [vmem:[%s3] sm:$0x1]
      %v2613 = vlaneseq
      %v2614 = vshrl.u32 %v2613, 7
      %v2615 = vsub.s32 0, %v2614
      %v2616 = vrot.slane %v2611, %v2615
      %v2618 = vmul.f32 %v2485, %v2616
      %v2619 = vmul.f32 %v2488, %v2616
      %v2620 = vmul.f32 %v2493, %v2616
      %v2621 = vmul.f32 %v2496, %v2616
      %v2622 = vmul.f32 %v2501, %v2616
      %v2623 = vmul.f32 %v2504, %v2616
      %v2624 = vmul.f32 %v2509, %v2616
      %v2625 = vmul.f32 %v2512, %v2616
      %v2626 = vmul.f32 %v2517, %v2616
      %v2627 = vmul.f32 %v2520, %v2616
      %v2628 = vmul.f32 %v2525, %v2616
      %v2629 = vmul.f32 %v2528, %v2616
      %v2630 = vmul.f32 %v2533, %v2616
      %v2631 = vmul.f32 %v2536, %v2616
      %v2632 = vmul.f32 %v2541, %v2616
      %v2633 = vmul.f32 %v2544, %v2616
      %v2634 = vmul.f32 %v2549, %v2616
      %v2635 = vmul.f32 %v2552, %v2616
      %v2636 = vmul.f32 %v2557, %v2616
      %v2637 = vmul.f32 %v2560, %v2616
      %v2638 = vmul.f32 %v2565, %v2616
      %v2639 = vmul.f32 %v2568, %v2616
      %v2640 = vmul.f32 %v2573, %v2616
      %v2641 = vmul.f32 %v2576, %v2616
      %v2642 = vmul.f32 %v2581, %v2616
      %v2643 = vmul.f32 %v2584, %v2616
      %v2644 = vmul.f32 %v2589, %v2616
      %v2645 = vmul.f32 %v2592, %v2616
      %v2646 = vmul.f32 %v2597, %v2616
      %v2647 = vmul.f32 %v2600, %v2616
      %v2648 = vmul.f32 %v2605, %v2616
      %v2649 = vmul.f32 %v2608, %v2616
      %v2650 = vld [vmem:[%s4] sm:$0x1]
      %v2652 = vlaneseq
      %v2653 = vshrl.u32 %v2652, 7
      %v2654 = vsub.s32 0, %v2653
      %v2655 = vrot.slane %v2650, %v2654
      %v2657 = vadd.f32 %v2618, %v2655
      %v2658 = vadd.f32 %v2619, %v2655
      %v2659 = vadd.f32 %v2620, %v2655
      %v2660 = vadd.f32 %v2621, %v2655
      %v2661 = vadd.f32 %v2622, %v2655
      %v2662 = vadd.f32 %v2623, %v2655
      %v2663 = vadd.f32 %v2624, %v2655
      %v2664 = vadd.f32 %v2625, %v2655
      %v2665 = vadd.f32 %v2626, %v2655
      %v2666 = vadd.f32 %v2627, %v2655
      %v2667 = vadd.f32 %v2628, %v2655
      %v2668 = vadd.f32 %v2629, %v2655
      %v2669 = vadd.f32 %v2630, %v2655
      %v2670 = vadd.f32 %v2631, %v2655
      %v2671 = vadd.f32 %v2632, %v2655
      %v2672 = vadd.f32 %v2633, %v2655
      %v2673 = vadd.f32 %v2634, %v2655
      %v2674 = vadd.f32 %v2635, %v2655
      %v2675 = vadd.f32 %v2636, %v2655
      %v2676 = vadd.f32 %v2637, %v2655
      %v2677 = vadd.f32 %v2638, %v2655
      %v2678 = vadd.f32 %v2639, %v2655
      %v2679 = vadd.f32 %v2640, %v2655
      %v2680 = vadd.f32 %v2641, %v2655
      %v2681 = vadd.f32 %v2642, %v2655
      %v2682 = vadd.f32 %v2643, %v2655
      %v2683 = vadd.f32 %v2644, %v2655
      %v2684 = vadd.f32 %v2645, %v2655
      %v2685 = vadd.f32 %v2646, %v2655
      %v2686 = vadd.f32 %v2647, %v2655
      %v2687 = vadd.f32 %v2648, %v2655
      %v2688 = vadd.f32 %v2649, %v2655
      %v2689 = vmax.f32 %v2657, 0.0
      %v2690 = vmax.f32 %v2658, 0.0
      %v2691 = vmax.f32 %v2659, 0.0
      %v2692 = vmax.f32 %v2660, 0.0
      %v2693 = vmax.f32 %v2661, 0.0
      %v2694 = vmax.f32 %v2662, 0.0
      %v2695 = vmax.f32 %v2663, 0.0
      %v2696 = vmax.f32 %v2664, 0.0
      %v2697 = vmax.f32 %v2665, 0.0
      %v2698 = vmax.f32 %v2666, 0.0
      %v2699 = vmax.f32 %v2667, 0.0
      %v2700 = vmax.f32 %v2668, 0.0
      %v2701 = vmax.f32 %v2669, 0.0
      %v2702 = vmax.f32 %v2670, 0.0
      %v2703 = vmax.f32 %v2671, 0.0
      %v2704 = vmax.f32 %v2672, 0.0
      %v2705 = vmax.f32 %v2673, 0.0
      %v2706 = vmax.f32 %v2674, 0.0
      %v2707 = vmax.f32 %v2675, 0.0
      %v2708 = vmax.f32 %v2676, 0.0
      %v2709 = vmax.f32 %v2677, 0.0
      %v2710 = vmax.f32 %v2678, 0.0
      %v2711 = vmax.f32 %v2679, 0.0
      %v2712 = vmax.f32 %v2680, 0.0
      %v2713 = vmax.f32 %v2681, 0.0
      %v2714 = vmax.f32 %v2682, 0.0
      %v2715 = vmax.f32 %v2683, 0.0
      %v2716 = vmax.f32 %v2684, 0.0
      %v2717 = vmax.f32 %v2685, 0.0
      %v2718 = vmax.f32 %v2686, 0.0
      %v2719 = vmax.f32 %v2687, 0.0
      %v2720 = vmax.f32 %v2688, 0.0
      %2721 = vst.msk [vmem:[#allocation3] sm:$0xff] %vm327, 0.0
      %2722 = vst.msk [vmem:[#allocation3 + $0x8] sm:$0xff] %vm327, 0.0
      %2723 = vst.msk [vmem:[#allocation3 + $0x10] sm:$0x3] %vm330, 0.0
      %2724 = vst.msk [vmem:[#allocation3 + $0x18] sm:$0xff] %vm327, 0.0
      %2725 = vst.msk [vmem:[#allocation3 + $0x20] sm:$0xff] %vm327, 0.0
      %2726 = vst.msk [vmem:[#allocation3 + $0x28] sm:$0x3] %vm330, 0.0
      %2727 = vst.msk [vmem:[#allocation3 + $0x30] sm:$0xff] %vm327, 0.0
      %2728 = vst.msk [vmem:[#allocation3 + $0x38] sm:$0xff] %vm327, 0.0
      %2729 = vst.msk [vmem:[#allocation3 + $0x40] sm:$0x3] %vm330, 0.0
      %2730 = vst.msk [vmem:[#allocation3 + $0x48] sm:$0xff] %vm327, 0.0
      %2731 = vst.msk [vmem:[#allocation3 + $0x50] sm:$0xff] %vm327, 0.0
      %2732 = vst.msk [vmem:[#allocation3 + $0x58] sm:$0x3] %vm330, 0.0
      %2733 = vst.msk [vmem:[#allocation3 + $0x60] sm:$0xff] %vm327, 0.0
      %2734 = vst.msk [vmem:[#allocation3 + $0x68] sm:$0xff] %vm327, 0.0
      %2735 = vst.msk [vmem:[#allocation3 + $0x70] sm:$0x3] %vm330, 0.0
      %2736 = vst.msk [vmem:[#allocation3 + $0x78] sm:$0xff] %vm327, 0.0
      %2737 = vst.msk [vmem:[#allocation3 + $0x80] sm:$0xff] %vm327, 0.0
      %2738 = vst.msk [vmem:[#allocation3 + $0x88] sm:$0x3] %vm330, 0.0
      %2739 = vst.msk [vmem:[#allocation3 + $0x90] sm:$0xff] %vm327, 0.0
      %2740 = vst.msk [vmem:[#allocation3 + $0x98] sm:$0xff] %vm327, 0.0
      %2741 = vst.msk [vmem:[#allocation3 + $0xa0] sm:$0x3] %vm330, 0.0
      %2742 = vst.msk [vmem:[#allocation3 + $0xa8] sm:$0xff] %vm327, 0.0
      %2743 = vst.msk [vmem:[#allocation3 + $0xb0] sm:$0xff] %vm327, 0.0
      %2744 = vst.msk [vmem:[#allocation3 + $0xb8] sm:$0x3] %vm330, 0.0
      %2745 = vst.msk [vmem:[#allocation3 + $0xc0] sm:$0xff] %vm327, 0.0
      %2746 = vst.msk [vmem:[#allocation3 + $0xc8] sm:$0xff] %vm327, 0.0
      %2747 = vst.msk [vmem:[#allocation3 + $0xd0] sm:$0x3] %vm330, 0.0
      %2748 = vst.msk [vmem:[#allocation3 + $0xd8] sm:$0xff] %vm327, 0.0
      %2749 = vst.msk [vmem:[#allocation3 + $0xe0] sm:$0xff] %vm327, 0.0
      %2750 = vst.msk [vmem:[#allocation3 + $0xe8] sm:$0x3] %vm330, 0.0
      %2751 = vst.msk [vmem:[#allocation3 + $0xf0] sm:$0xff] %vm327, 0.0
      %2752 = vst.msk [vmem:[#allocation3 + $0xf8] sm:$0xff] %vm327, 0.0
      %2753 = vst.msk [vmem:[#allocation3 + $0x100] sm:$0x3] %vm330, 0.0
      %2754 = vst.msk [vmem:[#allocation3 + $0x108] sm:$0xff] %vm327, 0.0
      %2755 = vst.msk [vmem:[#allocation3 + $0x110] sm:$0xff] %vm327, 0.0
      %2756 = vst.msk [vmem:[#allocation3 + $0x118] sm:$0x3] %vm330, 0.0
      %2757 = vst.msk [vmem:[#allocation3 + $0x120] sm:$0xff] %vm327, 0.0
      %2758 = vst.msk [vmem:[#allocation3 + $0x128] sm:$0xff] %vm327, 0.0
      %2759 = vst.msk [vmem:[#allocation3 + $0x130] sm:$0x3] %vm330, 0.0
      %2760 = vst.msk [vmem:[#allocation3 + $0x138] sm:$0xff] %vm327, 0.0
      %2761 = vst.msk [vmem:[#allocation3 + $0x140] sm:$0xff] %vm327, 0.0
      %2762 = vst.msk [vmem:[#allocation3 + $0x148] sm:$0x3] %vm330, 0.0
      %2763 = vst.msk [vmem:[#allocation3 + $0x150] sm:$0xff] %vm327, 0.0
      %2764 = vst.msk [vmem:[#allocation3 + $0x158] sm:$0xff] %vm327, 0.0
      %2765 = vst.msk [vmem:[#allocation3 + $0x160] sm:$0x3] %vm330, 0.0
      %2766 = vst.msk [vmem:[#allocation3 + $0x168] sm:$0xff] %vm327, 0.0
      %2767 = vst.msk [vmem:[#allocation3 + $0x170] sm:$0xff] %vm327, 0.0
      %2768 = vst.msk [vmem:[#allocation3 + $0x178] sm:$0x3] %vm330, 0.0
      %2769 = vst.msk [vmem:[#allocation3 + $0x180] sm:$0xff] %vm327, 0.0
      %2770 = vst.msk [vmem:[#allocation3 + $0x188] sm:$0xff] %vm327, 0.0
      %2771 = vst.msk [vmem:[#allocation3 + $0x190] sm:$0x3] %vm330, 0.0
      %2772 = vst.msk [vmem:[#allocation3 + $0x198] sm:$0xff] %vm327, 0.0
      %2773 = vst.msk [vmem:[#allocation3 + $0x1a0] sm:$0xff] %vm327, 0.0
      %2774 = vst.msk [vmem:[#allocation3 + $0x1a8] sm:$0x3] %vm330, 0.0
      %s2775 = scalar_lea.vmem [#allocation3], 24
      %2776 = vst.msk [vmem:[%s2775 + $0x1] sm:$0xff] %vm327, %v2689
      %2777 = vst.msk [vmem:[%s2775 + $0x9] sm:$0xff] %vm327, %v2690
      %2778 = vst.msk [vmem:[%s2775 + $0x19] sm:$0xff] %vm327, %v2691
      %2779 = vst.msk [vmem:[%s2775 + $0x21] sm:$0xff] %vm327, %v2692
      %2780 = vst.msk [vmem:[%s2775 + $0x31] sm:$0xff] %vm327, %v2693
      %2781 = vst.msk [vmem:[%s2775 + $0x39] sm:$0xff] %vm327, %v2694
      %2782 = vst.msk [vmem:[%s2775 + $0x49] sm:$0xff] %vm327, %v2695
      %2783 = vst.msk [vmem:[%s2775 + $0x51] sm:$0xff] %vm327, %v2696
      %2784 = vst.msk [vmem:[%s2775 + $0x61] sm:$0xff] %vm327, %v2697
      %2785 = vst.msk [vmem:[%s2775 + $0x69] sm:$0xff] %vm327, %v2698
      %2786 = vst.msk [vmem:[%s2775 + $0x79] sm:$0xff] %vm327, %v2699
      %2787 = vst.msk [vmem:[%s2775 + $0x81] sm:$0xff] %vm327, %v2700
      %2788 = vst.msk [vmem:[%s2775 + $0x91] sm:$0xff] %vm327, %v2701
      %2789 = vst.msk [vmem:[%s2775 + $0x99] sm:$0xff] %vm327, %v2702
      %2790 = vst.msk [vmem:[%s2775 + $0xa9] sm:$0xff] %vm327, %v2703
      %2791 = vst.msk [vmem:[%s2775 + $0xb1] sm:$0xff] %vm327, %v2704
      %2792 = vst.msk [vmem:[%s2775 + $0xc1] sm:$0xff] %vm327, %v2705
      %2793 = vst.msk [vmem:[%s2775 + $0xc9] sm:$0xff] %vm327, %v2706
      %2794 = vst.msk [vmem:[%s2775 + $0xd9] sm:$0xff] %vm327, %v2707
      %2795 = vst.msk [vmem:[%s2775 + $0xe1] sm:$0xff] %vm327, %v2708
      %2796 = vst.msk [vmem:[%s2775 + $0xf1] sm:$0xff] %vm327, %v2709
      %2797 = vst.msk [vmem:[%s2775 + $0xf9] sm:$0xff] %vm327, %v2710
      %2798 = vst.msk [vmem:[%s2775 + $0x109] sm:$0xff] %vm327, %v2711
      %2799 = vst.msk [vmem:[%s2775 + $0x111] sm:$0xff] %vm327, %v2712
      %2800 = vst.msk [vmem:[%s2775 + $0x121] sm:$0xff] %vm327, %v2713
      %2801 = vst.msk [vmem:[%s2775 + $0x129] sm:$0xff] %vm327, %v2714
      %2802 = vst.msk [vmem:[%s2775 + $0x139] sm:$0xff] %vm327, %v2715
      %2803 = vst.msk [vmem:[%s2775 + $0x141] sm:$0xff] %vm327, %v2716
      %2804 = vst.msk [vmem:[%s2775 + $0x151] sm:$0xff] %vm327, %v2717
      %2805 = vst.msk [vmem:[%s2775 + $0x159] sm:$0xff] %vm327, %v2718
      %2806 = vst.msk [vmem:[%s2775 + $0x169] sm:$0xff] %vm327, %v2719
      %2807 = vst.msk [vmem:[%s2775 + $0x171] sm:$0xff] %vm327, %v2720
      %v2808 = vld [vmem:[%s5] sm:$0xf]
      %v2809 = vld [vmem:[#allocation3] sm:$0xff]
      %v2810 = vld [vmem:[#allocation3 + $0x8] sm:$0xff]
      %v2811 = vld [vmem:[#allocation3 + $0x18] sm:$0xff]
      %v2812 = vld [vmem:[#allocation3 + $0x20] sm:$0xff]
      %v2813 = vld [vmem:[#allocation3 + $0x30] sm:$0xff]
      %v2814 = vld [vmem:[#allocation3 + $0x38] sm:$0xff]
      %v2815 = vld [vmem:[#allocation3 + $0x48] sm:$0xff]
      %v2816 = vld [vmem:[#allocation3 + $0x50] sm:$0xff]
      %v2817 = vld [vmem:[#allocation3 + $0x60] sm:$0xff]
      %v2818 = vld [vmem:[#allocation3 + $0x68] sm:$0xff]
      %v2819 = vld [vmem:[#allocation3 + $0x78] sm:$0xff]
      %v2820 = vld [vmem:[#allocation3 + $0x80] sm:$0xff]
      %v2821 = vld [vmem:[#allocation3 + $0x90] sm:$0xff]
      %v2822 = vld [vmem:[#allocation3 + $0x98] sm:$0xff]
      %v2823 = vld [vmem:[#allocation3 + $0xa8] sm:$0xff]
      %v2824 = vld [vmem:[#allocation3 + $0xb0] sm:$0xff]
      %v2825 = vld [vmem:[#allocation3 + $0xc0] sm:$0xff]
      %v2826 = vld [vmem:[#allocation3 + $0xc8] sm:$0xff]
      %v2827 = vld [vmem:[#allocation3 + $0xd8] sm:$0xff]
      %v2828 = vld [vmem:[#allocation3 + $0xe0] sm:$0xff]
      %v2829 = vld [vmem:[#allocation3 + $0xf0] sm:$0xff]
      %v2830 = vld [vmem:[#allocation3 + $0xf8] sm:$0xff]
      %v2831 = vld [vmem:[#allocation3 + $0x108] sm:$0xff]
      %v2832 = vld [vmem:[#allocation3 + $0x110] sm:$0xff]
      %v2833 = vld [vmem:[#allocation3 + $0x120] sm:$0xff]
      %v2834 = vld [vmem:[#allocation3 + $0x128] sm:$0xff]
      %v2835 = vld [vmem:[#allocation3 + $0x138] sm:$0xff]
      %v2836 = vld [vmem:[#allocation3 + $0x140] sm:$0xff]
      %v2837 = vld [vmem:[#allocation3 + $0x150] sm:$0xff]
      %v2838 = vld [vmem:[#allocation3 + $0x158] sm:$0xff]
      %v2839 = vld [vmem:[#allocation3 + $0x168] sm:$0xff]
      %v2840 = vld [vmem:[#allocation3 + $0x170] sm:$0xff]
      %v2841 = vld [vmem:[#allocation3 + $0x1] sm:$0xff]
      %v2842 = vld [vmem:[#allocation3 + $0x9] sm:$0xff]
      %v2843 = vld [vmem:[#allocation3 + $0x19] sm:$0xff]
      %v2844 = vld [vmem:[#allocation3 + $0x21] sm:$0xff]
      %v2845 = vld [vmem:[#allocation3 + $0x31] sm:$0xff]
      %v2846 = vld [vmem:[#allocation3 + $0x39] sm:$0xff]
      %v2847 = vld [vmem:[#allocation3 + $0x49] sm:$0xff]
      %v2848 = vld [vmem:[#allocation3 + $0x51] sm:$0xff]
      %v2849 = vld [vmem:[#allocation3 + $0x61] sm:$0xff]
      %v2850 = vld [vmem:[#allocation3 + $0x69] sm:$0xff]
      %v2851 = vld [vmem:[#allocation3 + $0x79] sm:$0xff]
      %v2852 = vld [vmem:[#allocation3 + $0x81] sm:$0xff]
      %v2853 = vld [vmem:[#allocation3 + $0x91] sm:$0xff]
      %v2854 = vld [vmem:[#allocation3 + $0x99] sm:$0xff]
      %v2855 = vld [vmem:[#allocation3 + $0xa9] sm:$0xff]
      %v2856 = vld [vmem:[#allocation3 + $0xb1] sm:$0xff]
      %v2857 = vld [vmem:[#allocation3 + $0xc1] sm:$0xff]
      %v2858 = vld [vmem:[#allocation3 + $0xc9] sm:$0xff]
      %v2859 = vld [vmem:[#allocation3 + $0xd9] sm:$0xff]
      %v2860 = vld [vmem:[#allocation3 + $0xe1] sm:$0xff]
      %v2861 = vld [vmem:[#allocation3 + $0xf1] sm:$0xff]
      %v2862 = vld [vmem:[#allocation3 + $0xf9] sm:$0xff]
      %v2863 = vld [vmem:[#allocation3 + $0x109] sm:$0xff]
      %v2864 = vld [vmem:[#allocation3 + $0x111] sm:$0xff]
      %v2865 = vld [vmem:[#allocation3 + $0x121] sm:$0xff]
      %v2866 = vld [vmem:[#allocation3 + $0x129] sm:$0xff]
      %v2867 = vld [vmem:[#allocation3 + $0x139] sm:$0xff]
      %v2868 = vld [vmem:[#allocation3 + $0x141] sm:$0xff]
      %v2869 = vld [vmem:[#allocation3 + $0x151] sm:$0xff]
      %v2870 = vld [vmem:[#allocation3 + $0x159] sm:$0xff]
      %v2871 = vld [vmem:[#allocation3 + $0x169] sm:$0xff]
      %v2872 = vld [vmem:[#allocation3 + $0x171] sm:$0xff]
      %v2873 = vld [vmem:[#allocation3 + $0x2] sm:$0xff]
      %v2874 = vld [vmem:[#allocation3 + $0xa] sm:$0xff]
      %v2875 = vld [vmem:[#allocation3 + $0x1a] sm:$0xff]
      %v2876 = vld [vmem:[#allocation3 + $0x22] sm:$0xff]
      %v2877 = vld [vmem:[#allocation3 + $0x32] sm:$0xff]
      %v2878 = vld [vmem:[#allocation3 + $0x3a] sm:$0xff]
      %v2879 = vld [vmem:[#allocation3 + $0x4a] sm:$0xff]
      %v2880 = vld [vmem:[#allocation3 + $0x52] sm:$0xff]
      %v2881 = vld [vmem:[#allocation3 + $0x62] sm:$0xff]
      %v2882 = vld [vmem:[#allocation3 + $0x6a] sm:$0xff]
      %v2883 = vld [vmem:[#allocation3 + $0x7a] sm:$0xff]
      %v2884 = vld [vmem:[#allocation3 + $0x82] sm:$0xff]
      %v2885 = vld [vmem:[#allocation3 + $0x92] sm:$0xff]
      %v2886 = vld [vmem:[#allocation3 + $0x9a] sm:$0xff]
      %v2887 = vld [vmem:[#allocation3 + $0xaa] sm:$0xff]
      %v2888 = vld [vmem:[#allocation3 + $0xb2] sm:$0xff]
      %v2889 = vld [vmem:[#allocation3 + $0xc2] sm:$0xff]
      %v2890 = vld [vmem:[#allocation3 + $0xca] sm:$0xff]
      %v2891 = vld [vmem:[#allocation3 + $0xda] sm:$0xff]
      %v2892 = vld [vmem:[#allocation3 + $0xe2] sm:$0xff]
      %v2893 = vld [vmem:[#allocation3 + $0xf2] sm:$0xff]
      %v2894 = vld [vmem:[#allocation3 + $0xfa] sm:$0xff]
      %v2895 = vld [vmem:[#allocation3 + $0x10a] sm:$0xff]
      %v2896 = vld [vmem:[#allocation3 + $0x112] sm:$0xff]
      %v2897 = vld [vmem:[#allocation3 + $0x122] sm:$0xff]
      %v2898 = vld [vmem:[#allocation3 + $0x12a] sm:$0xff]
      %v2899 = vld [vmem:[#allocation3 + $0x13a] sm:$0xff]
      %v2900 = vld [vmem:[#allocation3 + $0x142] sm:$0xff]
      %v2901 = vld [vmem:[#allocation3 + $0x152] sm:$0xff]
      %v2902 = vld [vmem:[#allocation3 + $0x15a] sm:$0xff]
      %v2903 = vld [vmem:[#allocation3 + $0x16a] sm:$0xff]
      %v2904 = vld [vmem:[#allocation3 + $0x172] sm:$0xff]
      %v2905 = vld [vmem:[%s2775] sm:$0xff]
      %v2906 = vld [vmem:[%s2775 + $0x8] sm:$0xff]
      %v2907 = vld [vmem:[%s2775 + $0x18] sm:$0xff]
      %v2908 = vld [vmem:[%s2775 + $0x20] sm:$0xff]
      %v2909 = vld [vmem:[%s2775 + $0x30] sm:$0xff]
      %v2910 = vld [vmem:[%s2775 + $0x38] sm:$0xff]
      %v2911 = vld [vmem:[%s2775 + $0x48] sm:$0xff]
      %v2912 = vld [vmem:[%s2775 + $0x50] sm:$0xff]
      %v2913 = vld [vmem:[%s2775 + $0x60] sm:$0xff]
      %v2914 = vld [vmem:[%s2775 + $0x68] sm:$0xff]
      %v2915 = vld [vmem:[%s2775 + $0x78] sm:$0xff]
      %v2916 = vld [vmem:[%s2775 + $0x80] sm:$0xff]
      %v2917 = vld [vmem:[%s2775 + $0x90] sm:$0xff]
      %v2918 = vld [vmem:[%s2775 + $0x98] sm:$0xff]
      %v2919 = vld [vmem:[%s2775 + $0xa8] sm:$0xff]
      %v2920 = vld [vmem:[%s2775 + $0xb0] sm:$0xff]
      %v2921 = vld [vmem:[%s2775 + $0xc0] sm:$0xff]
      %v2922 = vld [vmem:[%s2775 + $0xc8] sm:$0xff]
      %v2923 = vld [vmem:[%s2775 + $0xd8] sm:$0xff]
      %v2924 = vld [vmem:[%s2775 + $0xe0] sm:$0xff]
      %v2925 = vld [vmem:[%s2775 + $0xf0] sm:$0xff]
      %v2926 = vld [vmem:[%s2775 + $0xf8] sm:$0xff]
      %v2927 = vld [vmem:[%s2775 + $0x108] sm:$0xff]
      %v2928 = vld [vmem:[%s2775 + $0x110] sm:$0xff]
      %v2929 = vld [vmem:[%s2775 + $0x120] sm:$0xff]
      %v2930 = vld [vmem:[%s2775 + $0x128] sm:$0xff]
      %v2931 = vld [vmem:[%s2775 + $0x138] sm:$0xff]
      %v2932 = vld [vmem:[%s2775 + $0x140] sm:$0xff]
      %v2933 = vld [vmem:[%s2775 + $0x150] sm:$0xff]
      %v2934 = vld [vmem:[%s2775 + $0x158] sm:$0xff]
      %v2935 = vld [vmem:[%s2775 + $0x168] sm:$0xff]
      %v2936 = vld [vmem:[%s2775 + $0x170] sm:$0xff]
      %v2937 = vld [vmem:[%s2775 + $0x1] sm:$0xff]
      %v2938 = vld [vmem:[%s2775 + $0x9] sm:$0xff]
      %v2939 = vld [vmem:[%s2775 + $0x19] sm:$0xff]
      %v2940 = vld [vmem:[%s2775 + $0x21] sm:$0xff]
      %v2941 = vld [vmem:[%s2775 + $0x31] sm:$0xff]
      %v2942 = vld [vmem:[%s2775 + $0x39] sm:$0xff]
      %v2943 = vld [vmem:[%s2775 + $0x49] sm:$0xff]
      %v2944 = vld [vmem:[%s2775 + $0x51] sm:$0xff]
      %v2945 = vld [vmem:[%s2775 + $0x61] sm:$0xff]
      %v2946 = vld [vmem:[%s2775 + $0x69] sm:$0xff]
      %v2947 = vld [vmem:[%s2775 + $0x79] sm:$0xff]
      %v2948 = vld [vmem:[%s2775 + $0x81] sm:$0xff]
      %v2949 = vld [vmem:[%s2775 + $0x91] sm:$0xff]
      %v2950 = vld [vmem:[%s2775 + $0x99] sm:$0xff]
      %v2951 = vld [vmem:[%s2775 + $0xa9] sm:$0xff]
      %v2952 = vld [vmem:[%s2775 + $0xb1] sm:$0xff]
      %v2953 = vld [vmem:[%s2775 + $0xc1] sm:$0xff]
      %v2954 = vld [vmem:[%s2775 + $0xc9] sm:$0xff]
      %v2955 = vld [vmem:[%s2775 + $0xd9] sm:$0xff]
      %v2956 = vld [vmem:[%s2775 + $0xe1] sm:$0xff]
      %v2957 = vld [vmem:[%s2775 + $0xf1] sm:$0xff]
      %v2958 = vld [vmem:[%s2775 + $0xf9] sm:$0xff]
      %v2959 = vld [vmem:[%s2775 + $0x109] sm:$0xff]
      %v2960 = vld [vmem:[%s2775 + $0x111] sm:$0xff]
      %v2961 = vld [vmem:[%s2775 + $0x121] sm:$0xff]
      %v2962 = vld [vmem:[%s2775 + $0x129] sm:$0xff]
      %v2963 = vld [vmem:[%s2775 + $0x139] sm:$0xff]
      %v2964 = vld [vmem:[%s2775 + $0x141] sm:$0xff]
      %v2965 = vld [vmem:[%s2775 + $0x151] sm:$0xff]
      %v2966 = vld [vmem:[%s2775 + $0x159] sm:$0xff]
      %v2967 = vld [vmem:[%s2775 + $0x169] sm:$0xff]
      %v2968 = vld [vmem:[%s2775 + $0x171] sm:$0xff]
      %v2969 = vld [vmem:[%s2775 + $0x2] sm:$0xff]
      %v2970 = vld [vmem:[%s2775 + $0xa] sm:$0xff]
      %v2971 = vld [vmem:[%s2775 + $0x1a] sm:$0xff]
      %v2972 = vld [vmem:[%s2775 + $0x22] sm:$0xff]
      %v2973 = vld [vmem:[%s2775 + $0x32] sm:$0xff]
      %v2974 = vld [vmem:[%s2775 + $0x3a] sm:$0xff]
      %v2975 = vld [vmem:[%s2775 + $0x4a] sm:$0xff]
      %v2976 = vld [vmem:[%s2775 + $0x52] sm:$0xff]
      %v2977 = vld [vmem:[%s2775 + $0x62] sm:$0xff]
      %v2978 = vld [vmem:[%s2775 + $0x6a] sm:$0xff]
      %v2979 = vld [vmem:[%s2775 + $0x7a] sm:$0xff]
      %v2980 = vld [vmem:[%s2775 + $0x82] sm:$0xff]
      %v2981 = vld [vmem:[%s2775 + $0x92] sm:$0xff]
      %v2982 = vld [vmem:[%s2775 + $0x9a] sm:$0xff]
      %v2983 = vld [vmem:[%s2775 + $0xaa] sm:$0xff]
      %v2984 = vld [vmem:[%s2775 + $0xb2] sm:$0xff]
      %v2985 = vld [vmem:[%s2775 + $0xc2] sm:$0xff]
      %v2986 = vld [vmem:[%s2775 + $0xca] sm:$0xff]
      %v2987 = vld [vmem:[%s2775 + $0xda] sm:$0xff]
      %v2988 = vld [vmem:[%s2775 + $0xe2] sm:$0xff]
      %v2989 = vld [vmem:[%s2775 + $0xf2] sm:$0xff]
      %v2990 = vld [vmem:[%s2775 + $0xfa] sm:$0xff]
      %v2991 = vld [vmem:[%s2775 + $0x10a] sm:$0xff]
      %v2992 = vld [vmem:[%s2775 + $0x112] sm:$0xff]
      %v2993 = vld [vmem:[%s2775 + $0x122] sm:$0xff]
      %v2994 = vld [vmem:[%s2775 + $0x12a] sm:$0xff]
      %v2995 = vld [vmem:[%s2775 + $0x13a] sm:$0xff]
      %v2996 = vld [vmem:[%s2775 + $0x142] sm:$0xff]
      %v2997 = vld [vmem:[%s2775 + $0x152] sm:$0xff]
      %v2998 = vld [vmem:[%s2775 + $0x15a] sm:$0xff]
      %v2999 = vld [vmem:[%s2775 + $0x16a] sm:$0xff]
      %v3000 = vld [vmem:[%s2775 + $0x172] sm:$0xff]
      %s3001 = scalar_lea.vmem [#allocation3], 48
      %v3002 = vld [vmem:[%s3001] sm:$0xff]
      %v3003 = vld [vmem:[%s3001 + $0x8] sm:$0xff]
      %v3004 = vld [vmem:[%s3001 + $0x18] sm:$0xff]
      %v3005 = vld [vmem:[%s3001 + $0x20] sm:$0xff]
      %v3006 = vld [vmem:[%s3001 + $0x30] sm:$0xff]
      %v3007 = vld [vmem:[%s3001 + $0x38] sm:$0xff]
      %v3008 = vld [vmem:[%s3001 + $0x48] sm:$0xff]
      %v3009 = vld [vmem:[%s3001 + $0x50] sm:$0xff]
      %v3010 = vld [vmem:[%s3001 + $0x60] sm:$0xff]
      %v3011 = vld [vmem:[%s3001 + $0x68] sm:$0xff]
      %v3012 = vld [vmem:[%s3001 + $0x78] sm:$0xff]
      %v3013 = vld [vmem:[%s3001 + $0x80] sm:$0xff]
      %v3014 = vld [vmem:[%s3001 + $0x90] sm:$0xff]
      %v3015 = vld [vmem:[%s3001 + $0x98] sm:$0xff]
      %v3016 = vld [vmem:[%s3001 + $0xa8] sm:$0xff]
      %v3017 = vld [vmem:[%s3001 + $0xb0] sm:$0xff]
      %v3018 = vld [vmem:[%s3001 + $0xc0] sm:$0xff]
      %v3019 = vld [vmem:[%s3001 + $0xc8] sm:$0xff]
      %v3020 = vld [vmem:[%s3001 + $0xd8] sm:$0xff]
      %v3021 = vld [vmem:[%s3001 + $0xe0] sm:$0xff]
      %v3022 = vld [vmem:[%s3001 + $0xf0] sm:$0xff]
      %v3023 = vld [vmem:[%s3001 + $0xf8] sm:$0xff]
      %v3024 = vld [vmem:[%s3001 + $0x108] sm:$0xff]
      %v3025 = vld [vmem:[%s3001 + $0x110] sm:$0xff]
      %v3026 = vld [vmem:[%s3001 + $0x120] sm:$0xff]
      %v3027 = vld [vmem:[%s3001 + $0x128] sm:$0xff]
      %v3028 = vld [vmem:[%s3001 + $0x138] sm:$0xff]
      %v3029 = vld [vmem:[%s3001 + $0x140] sm:$0xff]
      %v3030 = vld [vmem:[%s3001 + $0x150] sm:$0xff]
      %v3031 = vld [vmem:[%s3001 + $0x158] sm:$0xff]
      %v3032 = vld [vmem:[%s3001 + $0x168] sm:$0xff]
      %v3033 = vld [vmem:[%s3001 + $0x170] sm:$0xff]
      %v3034 = vld [vmem:[%s3001 + $0x1] sm:$0xff]
      %v3035 = vld [vmem:[%s3001 + $0x9] sm:$0xff]
      %v3036 = vld [vmem:[%s3001 + $0x19] sm:$0xff]
      %v3037 = vld [vmem:[%s3001 + $0x21] sm:$0xff]
      %v3038 = vld [vmem:[%s3001 + $0x31] sm:$0xff]
      %v3039 = vld [vmem:[%s3001 + $0x39] sm:$0xff]
      %v3040 = vld [vmem:[%s3001 + $0x49] sm:$0xff]
      %v3041 = vld [vmem:[%s3001 + $0x51] sm:$0xff]
      %v3042 = vld [vmem:[%s3001 + $0x61] sm:$0xff]
      %v3043 = vld [vmem:[%s3001 + $0x69] sm:$0xff]
      %v3044 = vld [vmem:[%s3001 + $0x79] sm:$0xff]
      %v3045 = vld [vmem:[%s3001 + $0x81] sm:$0xff]
      %v3046 = vld [vmem:[%s3001 + $0x91] sm:$0xff]
      %v3047 = vld [vmem:[%s3001 + $0x99] sm:$0xff]
      %v3048 = vld [vmem:[%s3001 + $0xa9] sm:$0xff]
      %v3049 = vld [vmem:[%s3001 + $0xb1] sm:$0xff]
      %v3050 = vld [vmem:[%s3001 + $0xc1] sm:$0xff]
      %v3051 = vld [vmem:[%s3001 + $0xc9] sm:$0xff]
      %v3052 = vld [vmem:[%s3001 + $0xd9] sm:$0xff]
      %v3053 = vld [vmem:[%s3001 + $0xe1] sm:$0xff]
      %v3054 = vld [vmem:[%s3001 + $0xf1] sm:$0xff]
      %v3055 = vld [vmem:[%s3001 + $0xf9] sm:$0xff]
      %v3056 = vld [vmem:[%s3001 + $0x109] sm:$0xff]
      %v3057 = vld [vmem:[%s3001 + $0x111] sm:$0xff]
      %v3058 = vld [vmem:[%s3001 + $0x121] sm:$0xff]
      %v3059 = vld [vmem:[%s3001 + $0x129] sm:$0xff]
      %v3060 = vld [vmem:[%s3001 + $0x139] sm:$0xff]
      %v3061 = vld [vmem:[%s3001 + $0x141] sm:$0xff]
      %v3062 = vld [vmem:[%s3001 + $0x151] sm:$0xff]
      %v3063 = vld [vmem:[%s3001 + $0x159] sm:$0xff]
      %v3064 = vld [vmem:[%s3001 + $0x169] sm:$0xff]
      %v3065 = vld [vmem:[%s3001 + $0x171] sm:$0xff]
      %v3066 = vld [vmem:[%s3001 + $0x2] sm:$0xff]
      %v3067 = vld [vmem:[%s3001 + $0xa] sm:$0xff]
      %v3068 = vld [vmem:[%s3001 + $0x1a] sm:$0xff]
      %v3069 = vld [vmem:[%s3001 + $0x22] sm:$0xff]
      %v3070 = vld [vmem:[%s3001 + $0x32] sm:$0xff]
      %v3071 = vld [vmem:[%s3001 + $0x3a] sm:$0xff]
      %v3072 = vld [vmem:[%s3001 + $0x4a] sm:$0xff]
      %v3073 = vld [vmem:[%s3001 + $0x52] sm:$0xff]
      %v3074 = vld [vmem:[%s3001 + $0x62] sm:$0xff]
      %v3075 = vld [vmem:[%s3001 + $0x6a] sm:$0xff]
      %v3076 = vld [vmem:[%s3001 + $0x7a] sm:$0xff]
      %v3077 = vld [vmem:[%s3001 + $0x82] sm:$0xff]
      %v3078 = vld [vmem:[%s3001 + $0x92] sm:$0xff]
      %v3079 = vld [vmem:[%s3001 + $0x9a] sm:$0xff]
      %v3080 = vld [vmem:[%s3001 + $0xaa] sm:$0xff]
      %v3081 = vld [vmem:[%s3001 + $0xb2] sm:$0xff]
      %v3082 = vld [vmem:[%s3001 + $0xc2] sm:$0xff]
      %v3083 = vld [vmem:[%s3001 + $0xca] sm:$0xff]
      %v3084 = vld [vmem:[%s3001 + $0xda] sm:$0xff]
      %v3085 = vld [vmem:[%s3001 + $0xe2] sm:$0xff]
      %v3086 = vld [vmem:[%s3001 + $0xf2] sm:$0xff]
      %v3087 = vld [vmem:[%s3001 + $0xfa] sm:$0xff]
      %v3088 = vld [vmem:[%s3001 + $0x10a] sm:$0xff]
      %v3089 = vld [vmem:[%s3001 + $0x112] sm:$0xff]
      %v3090 = vld [vmem:[%s3001 + $0x122] sm:$0xff]
      %v3091 = vld [vmem:[%s3001 + $0x12a] sm:$0xff]
      %v3092 = vld [vmem:[%s3001 + $0x13a] sm:$0xff]
      %v3093 = vld [vmem:[%s3001 + $0x142] sm:$0xff]
      %v3094 = vld [vmem:[%s3001 + $0x152] sm:$0xff]
      %v3095 = vld [vmem:[%s3001 + $0x15a] sm:$0xff]
      %v3096 = vld [vmem:[%s3001 + $0x16a] sm:$0xff]
      %v3097 = vld [vmem:[%s3001 + $0x172] sm:$0xff]
      %3130 = vrot.lane.b32.xlu0 %v2841, 8
      %v3131 = vpop.permute.xlu0 %3130
      %3132 = vrot.lane.b32.xlu0 %v2842, 8
      %v3133 = vpop.permute.xlu0 %3132
      %3134 = vrot.lane.b32.xlu0 %v2843, 8
      %v3135 = vpop.permute.xlu0 %3134
      %3136 = vrot.lane.b32.xlu0 %v2844, 8
      %v3137 = vpop.permute.xlu0 %3136
      %3138 = vrot.lane.b32.xlu0 %v2845, 8
      %v3139 = vpop.permute.xlu0 %3138
      %3140 = vrot.lane.b32.xlu0 %v2846, 8
      %v3141 = vpop.permute.xlu0 %3140
      %3142 = vrot.lane.b32.xlu0 %v2847, 8
      %v3143 = vpop.permute.xlu0 %3142
      %3144 = vrot.lane.b32.xlu0 %v2848, 8
      %v3145 = vpop.permute.xlu0 %3144
      %3146 = vrot.lane.b32.xlu0 %v2849, 8
      %v3147 = vpop.permute.xlu0 %3146
      %3148 = vrot.lane.b32.xlu0 %v2850, 8
      %v3149 = vpop.permute.xlu0 %3148
      %3150 = vrot.lane.b32.xlu0 %v2851, 8
      %v3151 = vpop.permute.xlu0 %3150
      %3152 = vrot.lane.b32.xlu0 %v2852, 8
      %v3153 = vpop.permute.xlu0 %3152
      %3154 = vrot.lane.b32.xlu0 %v2853, 8
      %v3155 = vpop.permute.xlu0 %3154
      %3156 = vrot.lane.b32.xlu0 %v2854, 8
      %v3157 = vpop.permute.xlu0 %3156
      %3158 = vrot.lane.b32.xlu0 %v2855, 8
      %v3159 = vpop.permute.xlu0 %3158
      %3160 = vrot.lane.b32.xlu0 %v2856, 8
      %v3161 = vpop.permute.xlu0 %3160
      %3162 = vrot.lane.b32.xlu0 %v2857, 8
      %v3163 = vpop.permute.xlu0 %3162
      %3164 = vrot.lane.b32.xlu0 %v2858, 8
      %v3165 = vpop.permute.xlu0 %3164
      %3166 = vrot.lane.b32.xlu0 %v2859, 8
      %v3167 = vpop.permute.xlu0 %3166
      %3168 = vrot.lane.b32.xlu0 %v2860, 8
      %v3169 = vpop.permute.xlu0 %3168
      %3170 = vrot.lane.b32.xlu0 %v2861, 8
      %v3171 = vpop.permute.xlu0 %3170
      %3172 = vrot.lane.b32.xlu0 %v2862, 8
      %v3173 = vpop.permute.xlu0 %3172
      %3174 = vrot.lane.b32.xlu0 %v2863, 8
      %v3175 = vpop.permute.xlu0 %3174
      %3176 = vrot.lane.b32.xlu0 %v2864, 8
      %v3177 = vpop.permute.xlu0 %3176
      %3178 = vrot.lane.b32.xlu0 %v2865, 8
      %v3179 = vpop.permute.xlu0 %3178
      %3180 = vrot.lane.b32.xlu0 %v2866, 8
      %v3181 = vpop.permute.xlu0 %3180
      %3182 = vrot.lane.b32.xlu0 %v2867, 8
      %v3183 = vpop.permute.xlu0 %3182
      %3184 = vrot.lane.b32.xlu0 %v2868, 8
      %v3185 = vpop.permute.xlu0 %3184
      %3186 = vrot.lane.b32.xlu0 %v2869, 8
      %v3187 = vpop.permute.xlu0 %3186
      %3188 = vrot.lane.b32.xlu0 %v2870, 8
      %v3189 = vpop.permute.xlu0 %3188
      %3190 = vrot.lane.b32.xlu0 %v2871, 8
      %v3191 = vpop.permute.xlu0 %3190
      %3192 = vrot.lane.b32.xlu0 %v2872, 8
      %v3193 = vpop.permute.xlu0 %3192
      %3258 = vrot.lane.b32.xlu0 %v2873, 16
      %v3259 = vpop.permute.xlu0 %3258
      %3260 = vrot.lane.b32.xlu0 %v2874, 16
      %v3261 = vpop.permute.xlu0 %3260
      %3262 = vrot.lane.b32.xlu0 %v2875, 16
      %v3263 = vpop.permute.xlu0 %3262
      %3264 = vrot.lane.b32.xlu0 %v2876, 16
      %v3265 = vpop.permute.xlu0 %3264
      %3266 = vrot.lane.b32.xlu0 %v2877, 16
      %v3267 = vpop.permute.xlu0 %3266
      %3268 = vrot.lane.b32.xlu0 %v2878, 16
      %v3269 = vpop.permute.xlu0 %3268
      %3270 = vrot.lane.b32.xlu0 %v2879, 16
      %v3271 = vpop.permute.xlu0 %3270
      %3272 = vrot.lane.b32.xlu0 %v2880, 16
      %v3273 = vpop.permute.xlu0 %3272
      %3274 = vrot.lane.b32.xlu0 %v2881, 16
      %v3275 = vpop.permute.xlu0 %3274
      %3276 = vrot.lane.b32.xlu0 %v2882, 16
      %v3277 = vpop.permute.xlu0 %3276
      %3278 = vrot.lane.b32.xlu0 %v2883, 16
      %v3279 = vpop.permute.xlu0 %3278
      %3280 = vrot.lane.b32.xlu0 %v2884, 16
      %v3281 = vpop.permute.xlu0 %3280
      %3282 = vrot.lane.b32.xlu0 %v2885, 16
      %v3283 = vpop.permute.xlu0 %3282
      %3284 = vrot.lane.b32.xlu0 %v2886, 16
      %v3285 = vpop.permute.xlu0 %3284
      %3286 = vrot.lane.b32.xlu0 %v2887, 16
      %v3287 = vpop.permute.xlu0 %3286
      %3288 = vrot.lane.b32.xlu0 %v2888, 16
      %v3289 = vpop.permute.xlu0 %3288
      %3290 = vrot.lane.b32.xlu0 %v2889, 16
      %v3291 = vpop.permute.xlu0 %3290
      %3292 = vrot.lane.b32.xlu0 %v2890, 16
      %v3293 = vpop.permute.xlu0 %3292
      %3294 = vrot.lane.b32.xlu0 %v2891, 16
      %v3295 = vpop.permute.xlu0 %3294
      %3296 = vrot.lane.b32.xlu0 %v2892, 16
      %v3297 = vpop.permute.xlu0 %3296
      %3298 = vrot.lane.b32.xlu0 %v2893, 16
      %v3299 = vpop.permute.xlu0 %3298
      %3300 = vrot.lane.b32.xlu0 %v2894, 16
      %v3301 = vpop.permute.xlu0 %3300
      %3302 = vrot.lane.b32.xlu0 %v2895, 16
      %v3303 = vpop.permute.xlu0 %3302
      %3304 = vrot.lane.b32.xlu0 %v2896, 16
      %v3305 = vpop.permute.xlu0 %3304
      %3306 = vrot.lane.b32.xlu0 %v2897, 16
      %v3307 = vpop.permute.xlu0 %3306
      %3308 = vrot.lane.b32.xlu0 %v2898, 16
      %v3309 = vpop.permute.xlu0 %3308
      %3310 = vrot.lane.b32.xlu0 %v2899, 16
      %v3311 = vpop.permute.xlu0 %3310
      %3312 = vrot.lane.b32.xlu0 %v2900, 16
      %v3313 = vpop.permute.xlu0 %3312
      %3314 = vrot.lane.b32.xlu0 %v2901, 16
      %v3315 = vpop.permute.xlu0 %3314
      %3316 = vrot.lane.b32.xlu0 %v2902, 16
      %v3317 = vpop.permute.xlu0 %3316
      %3318 = vrot.lane.b32.xlu0 %v2903, 16
      %v3319 = vpop.permute.xlu0 %3318
      %3320 = vrot.lane.b32.xlu0 %v2904, 16
      %v3321 = vpop.permute.xlu0 %3320
      %3386 = vrot.lane.b32.xlu0 %v2905, 24
      %v3387 = vpop.permute.xlu0 %3386
      %3388 = vrot.lane.b32.xlu0 %v2906, 24
      %v3389 = vpop.permute.xlu0 %3388
      %3390 = vrot.lane.b32.xlu0 %v2907, 24
      %v3391 = vpop.permute.xlu0 %3390
      %3392 = vrot.lane.b32.xlu0 %v2908, 24
      %v3393 = vpop.permute.xlu0 %3392
      %3394 = vrot.lane.b32.xlu0 %v2909, 24
      %v3395 = vpop.permute.xlu0 %3394
      %3396 = vrot.lane.b32.xlu0 %v2910, 24
      %v3397 = vpop.permute.xlu0 %3396
      %3398 = vrot.lane.b32.xlu0 %v2911, 24
      %v3399 = vpop.permute.xlu0 %3398
      %3400 = vrot.lane.b32.xlu0 %v2912, 24
      %v3401 = vpop.permute.xlu0 %3400
      %3402 = vrot.lane.b32.xlu0 %v2913, 24
      %v3403 = vpop.permute.xlu0 %3402
      %3404 = vrot.lane.b32.xlu0 %v2914, 24
      %v3405 = vpop.permute.xlu0 %3404
      %3406 = vrot.lane.b32.xlu0 %v2915, 24
      %v3407 = vpop.permute.xlu0 %3406
      %3408 = vrot.lane.b32.xlu0 %v2916, 24
      %v3409 = vpop.permute.xlu0 %3408
      %3410 = vrot.lane.b32.xlu0 %v2917, 24
      %v3411 = vpop.permute.xlu0 %3410
      %3412 = vrot.lane.b32.xlu0 %v2918, 24
      %v3413 = vpop.permute.xlu0 %3412
      %3414 = vrot.lane.b32.xlu0 %v2919, 24
      %v3415 = vpop.permute.xlu0 %3414
      %3416 = vrot.lane.b32.xlu0 %v2920, 24
      %v3417 = vpop.permute.xlu0 %3416
      %3418 = vrot.lane.b32.xlu0 %v2921, 24
      %v3419 = vpop.permute.xlu0 %3418
      %3420 = vrot.lane.b32.xlu0 %v2922, 24
      %v3421 = vpop.permute.xlu0 %3420
      %3422 = vrot.lane.b32.xlu0 %v2923, 24
      %v3423 = vpop.permute.xlu0 %3422
      %3424 = vrot.lane.b32.xlu0 %v2924, 24
      %v3425 = vpop.permute.xlu0 %3424
      %3426 = vrot.lane.b32.xlu0 %v2925, 24
      %v3427 = vpop.permute.xlu0 %3426
      %3428 = vrot.lane.b32.xlu0 %v2926, 24
      %v3429 = vpop.permute.xlu0 %3428
      %3430 = vrot.lane.b32.xlu0 %v2927, 24
      %v3431 = vpop.permute.xlu0 %3430
      %3432 = vrot.lane.b32.xlu0 %v2928, 24
      %v3433 = vpop.permute.xlu0 %3432
      %3434 = vrot.lane.b32.xlu0 %v2929, 24
      %v3435 = vpop.permute.xlu0 %3434
      %3436 = vrot.lane.b32.xlu0 %v2930, 24
      %v3437 = vpop.permute.xlu0 %3436
      %3438 = vrot.lane.b32.xlu0 %v2931, 24
      %v3439 = vpop.permute.xlu0 %3438
      %3440 = vrot.lane.b32.xlu0 %v2932, 24
      %v3441 = vpop.permute.xlu0 %3440
      %3442 = vrot.lane.b32.xlu0 %v2933, 24
      %v3443 = vpop.permute.xlu0 %3442
      %3444 = vrot.lane.b32.xlu0 %v2934, 24
      %v3445 = vpop.permute.xlu0 %3444
      %3446 = vrot.lane.b32.xlu0 %v2935, 24
      %v3447 = vpop.permute.xlu0 %3446
      %3448 = vrot.lane.b32.xlu0 %v2936, 24
      %v3449 = vpop.permute.xlu0 %3448
      %3514 = vrot.lane.b32.xlu0 %v2937, 32
      %v3515 = vpop.permute.xlu0 %3514
      %3516 = vrot.lane.b32.xlu0 %v2938, 32
      %v3517 = vpop.permute.xlu0 %3516
      %3518 = vrot.lane.b32.xlu0 %v2939, 32
      %v3519 = vpop.permute.xlu0 %3518
      %3520 = vrot.lane.b32.xlu0 %v2940, 32
      %v3521 = vpop.permute.xlu0 %3520
      %3522 = vrot.lane.b32.xlu0 %v2941, 32
      %v3523 = vpop.permute.xlu0 %3522
      %3524 = vrot.lane.b32.xlu0 %v2942, 32
      %v3525 = vpop.permute.xlu0 %3524
      %3526 = vrot.lane.b32.xlu0 %v2943, 32
      %v3527 = vpop.permute.xlu0 %3526
      %3528 = vrot.lane.b32.xlu0 %v2944, 32
      %v3529 = vpop.permute.xlu0 %3528
      %3530 = vrot.lane.b32.xlu0 %v2945, 32
      %v3531 = vpop.permute.xlu0 %3530
      %3532 = vrot.lane.b32.xlu0 %v2946, 32
      %v3533 = vpop.permute.xlu0 %3532
      %3534 = vrot.lane.b32.xlu0 %v2947, 32
      %v3535 = vpop.permute.xlu0 %3534
      %3536 = vrot.lane.b32.xlu0 %v2948, 32
      %v3537 = vpop.permute.xlu0 %3536
      %3538 = vrot.lane.b32.xlu0 %v2949, 32
      %v3539 = vpop.permute.xlu0 %3538
      %3540 = vrot.lane.b32.xlu0 %v2950, 32
      %v3541 = vpop.permute.xlu0 %3540
      %3542 = vrot.lane.b32.xlu0 %v2951, 32
      %v3543 = vpop.permute.xlu0 %3542
      %3544 = vrot.lane.b32.xlu0 %v2952, 32
      %v3545 = vpop.permute.xlu0 %3544
      %3546 = vrot.lane.b32.xlu0 %v2953, 32
      %v3547 = vpop.permute.xlu0 %3546
      %3548 = vrot.lane.b32.xlu0 %v2954, 32
      %v3549 = vpop.permute.xlu0 %3548
      %3550 = vrot.lane.b32.xlu0 %v2955, 32
      %v3551 = vpop.permute.xlu0 %3550
      %3552 = vrot.lane.b32.xlu0 %v2956, 32
      %v3553 = vpop.permute.xlu0 %3552
      %3554 = vrot.lane.b32.xlu0 %v2957, 32
      %v3555 = vpop.permute.xlu0 %3554
      %3556 = vrot.lane.b32.xlu0 %v2958, 32
      %v3557 = vpop.permute.xlu0 %3556
      %3558 = vrot.lane.b32.xlu0 %v2959, 32
      %v3559 = vpop.permute.xlu0 %3558
      %3560 = vrot.lane.b32.xlu0 %v2960, 32
      %v3561 = vpop.permute.xlu0 %3560
      %3562 = vrot.lane.b32.xlu0 %v2961, 32
      %v3563 = vpop.permute.xlu0 %3562
      %3564 = vrot.lane.b32.xlu0 %v2962, 32
      %v3565 = vpop.permute.xlu0 %3564
      %3566 = vrot.lane.b32.xlu0 %v2963, 32
      %v3567 = vpop.permute.xlu0 %3566
      %3568 = vrot.lane.b32.xlu0 %v2964, 32
      %v3569 = vpop.permute.xlu0 %3568
      %3570 = vrot.lane.b32.xlu0 %v2965, 32
      %v3571 = vpop.permute.xlu0 %3570
      %3572 = vrot.lane.b32.xlu0 %v2966, 32
      %v3573 = vpop.permute.xlu0 %3572
      %3574 = vrot.lane.b32.xlu0 %v2967, 32
      %v3575 = vpop.permute.xlu0 %3574
      %3576 = vrot.lane.b32.xlu0 %v2968, 32
      %v3577 = vpop.permute.xlu0 %3576
      %3642 = vrot.lane.b32.xlu0 %v2969, 40
      %v3643 = vpop.permute.xlu0 %3642
      %3644 = vrot.lane.b32.xlu0 %v2970, 40
      %v3645 = vpop.permute.xlu0 %3644
      %3646 = vrot.lane.b32.xlu0 %v2971, 40
      %v3647 = vpop.permute.xlu0 %3646
      %3648 = vrot.lane.b32.xlu0 %v2972, 40
      %v3649 = vpop.permute.xlu0 %3648
      %3650 = vrot.lane.b32.xlu0 %v2973, 40
      %v3651 = vpop.permute.xlu0 %3650
      %3652 = vrot.lane.b32.xlu0 %v2974, 40
      %v3653 = vpop.permute.xlu0 %3652
      %3654 = vrot.lane.b32.xlu0 %v2975, 40
      %v3655 = vpop.permute.xlu0 %3654
      %3656 = vrot.lane.b32.xlu0 %v2976, 40
      %v3657 = vpop.permute.xlu0 %3656
      %3658 = vrot.lane.b32.xlu0 %v2977, 40
      %v3659 = vpop.permute.xlu0 %3658
      %3660 = vrot.lane.b32.xlu0 %v2978, 40
      %v3661 = vpop.permute.xlu0 %3660
      %3662 = vrot.lane.b32.xlu0 %v2979, 40
      %v3663 = vpop.permute.xlu0 %3662
      %3664 = vrot.lane.b32.xlu0 %v2980, 40
      %v3665 = vpop.permute.xlu0 %3664
      %3666 = vrot.lane.b32.xlu0 %v2981, 40
      %v3667 = vpop.permute.xlu0 %3666
      %3668 = vrot.lane.b32.xlu0 %v2982, 40
      %v3669 = vpop.permute.xlu0 %3668
      %3670 = vrot.lane.b32.xlu0 %v2983, 40
      %v3671 = vpop.permute.xlu0 %3670
      %3672 = vrot.lane.b32.xlu0 %v2984, 40
      %v3673 = vpop.permute.xlu0 %3672
      %3674 = vrot.lane.b32.xlu0 %v2985, 40
      %v3675 = vpop.permute.xlu0 %3674
      %3676 = vrot.lane.b32.xlu0 %v2986, 40
      %v3677 = vpop.permute.xlu0 %3676
      %3678 = vrot.lane.b32.xlu0 %v2987, 40
      %v3679 = vpop.permute.xlu0 %3678
      %3680 = vrot.lane.b32.xlu0 %v2988, 40
      %v3681 = vpop.permute.xlu0 %3680
      %3682 = vrot.lane.b32.xlu0 %v2989, 40
      %v3683 = vpop.permute.xlu0 %3682
      %3684 = vrot.lane.b32.xlu0 %v2990, 40
      %v3685 = vpop.permute.xlu0 %3684
      %3686 = vrot.lane.b32.xlu0 %v2991, 40
      %v3687 = vpop.permute.xlu0 %3686
      %3688 = vrot.lane.b32.xlu0 %v2992, 40
      %v3689 = vpop.permute.xlu0 %3688
      %3690 = vrot.lane.b32.xlu0 %v2993, 40
      %v3691 = vpop.permute.xlu0 %3690
      %3692 = vrot.lane.b32.xlu0 %v2994, 40
      %v3693 = vpop.permute.xlu0 %3692
      %3694 = vrot.lane.b32.xlu0 %v2995, 40
      %v3695 = vpop.permute.xlu0 %3694
      %3696 = vrot.lane.b32.xlu0 %v2996, 40
      %v3697 = vpop.permute.xlu0 %3696
      %3698 = vrot.lane.b32.xlu0 %v2997, 40
      %v3699 = vpop.permute.xlu0 %3698
      %3700 = vrot.lane.b32.xlu0 %v2998, 40
      %v3701 = vpop.permute.xlu0 %3700
      %3702 = vrot.lane.b32.xlu0 %v2999, 40
      %v3703 = vpop.permute.xlu0 %3702
      %3704 = vrot.lane.b32.xlu0 %v3000, 40
      %v3705 = vpop.permute.xlu0 %3704
      %3770 = vrot.lane.b32.xlu0 %v3002, 48
      %v3771 = vpop.permute.xlu0 %3770
      %3772 = vrot.lane.b32.xlu0 %v3003, 48
      %v3773 = vpop.permute.xlu0 %3772
      %3774 = vrot.lane.b32.xlu0 %v3004, 48
      %v3775 = vpop.permute.xlu0 %3774
      %3776 = vrot.lane.b32.xlu0 %v3005, 48
      %v3777 = vpop.permute.xlu0 %3776
      %3778 = vrot.lane.b32.xlu0 %v3006, 48
      %v3779 = vpop.permute.xlu0 %3778
      %3780 = vrot.lane.b32.xlu0 %v3007, 48
      %v3781 = vpop.permute.xlu0 %3780
      %3782 = vrot.lane.b32.xlu0 %v3008, 48
      %v3783 = vpop.permute.xlu0 %3782
      %3784 = vrot.lane.b32.xlu0 %v3009, 48
      %v3785 = vpop.permute.xlu0 %3784
      %3786 = vrot.lane.b32.xlu0 %v3010, 48
      %v3787 = vpop.permute.xlu0 %3786
      %3788 = vrot.lane.b32.xlu0 %v3011, 48
      %v3789 = vpop.permute.xlu0 %3788
      %3790 = vrot.lane.b32.xlu0 %v3012, 48
      %v3791 = vpop.permute.xlu0 %3790
      %3792 = vrot.lane.b32.xlu0 %v3013, 48
      %v3793 = vpop.permute.xlu0 %3792
      %3794 = vrot.lane.b32.xlu0 %v3014, 48
      %v3795 = vpop.permute.xlu0 %3794
      %3796 = vrot.lane.b32.xlu0 %v3015, 48
      %v3797 = vpop.permute.xlu0 %3796
      %3798 = vrot.lane.b32.xlu0 %v3016, 48
      %v3799 = vpop.permute.xlu0 %3798
      %3800 = vrot.lane.b32.xlu0 %v3017, 48
      %v3801 = vpop.permute.xlu0 %3800
      %3802 = vrot.lane.b32.xlu0 %v3018, 48
      %v3803 = vpop.permute.xlu0 %3802
      %3804 = vrot.lane.b32.xlu0 %v3019, 48
      %v3805 = vpop.permute.xlu0 %3804
      %3806 = vrot.lane.b32.xlu0 %v3020, 48
      %v3807 = vpop.permute.xlu0 %3806
      %3808 = vrot.lane.b32.xlu0 %v3021, 48
      %v3809 = vpop.permute.xlu0 %3808
      %3810 = vrot.lane.b32.xlu0 %v3022, 48
      %v3811 = vpop.permute.xlu0 %3810
      %3812 = vrot.lane.b32.xlu0 %v3023, 48
      %v3813 = vpop.permute.xlu0 %3812
      %3814 = vrot.lane.b32.xlu0 %v3024, 48
      %v3815 = vpop.permute.xlu0 %3814
      %3816 = vrot.lane.b32.xlu0 %v3025, 48
      %v3817 = vpop.permute.xlu0 %3816
      %3818 = vrot.lane.b32.xlu0 %v3026, 48
      %v3819 = vpop.permute.xlu0 %3818
      %3820 = vrot.lane.b32.xlu0 %v3027, 48
      %v3821 = vpop.permute.xlu0 %3820
      %3822 = vrot.lane.b32.xlu0 %v3028, 48
      %v3823 = vpop.permute.xlu0 %3822
      %3824 = vrot.lane.b32.xlu0 %v3029, 48
      %v3825 = vpop.permute.xlu0 %3824
      %3826 = vrot.lane.b32.xlu0 %v3030, 48
      %v3827 = vpop.permute.xlu0 %3826
      %3828 = vrot.lane.b32.xlu0 %v3031, 48
      %v3829 = vpop.permute.xlu0 %3828
      %3830 = vrot.lane.b32.xlu0 %v3032, 48
      %v3831 = vpop.permute.xlu0 %3830
      %3832 = vrot.lane.b32.xlu0 %v3033, 48
      %v3833 = vpop.permute.xlu0 %3832
      %3898 = vrot.lane.b32.xlu0 %v3034, 56
      %v3899 = vpop.permute.xlu0 %3898
      %3900 = vrot.lane.b32.xlu0 %v3035, 56
      %v3901 = vpop.permute.xlu0 %3900
      %3902 = vrot.lane.b32.xlu0 %v3036, 56
      %v3903 = vpop.permute.xlu0 %3902
      %3904 = vrot.lane.b32.xlu0 %v3037, 56
      %v3905 = vpop.permute.xlu0 %3904
      %3906 = vrot.lane.b32.xlu0 %v3038, 56
      %v3907 = vpop.permute.xlu0 %3906
      %3908 = vrot.lane.b32.xlu0 %v3039, 56
      %v3909 = vpop.permute.xlu0 %3908
      %3910 = vrot.lane.b32.xlu0 %v3040, 56
      %v3911 = vpop.permute.xlu0 %3910
      %3912 = vrot.lane.b32.xlu0 %v3041, 56
      %v3913 = vpop.permute.xlu0 %3912
      %3914 = vrot.lane.b32.xlu0 %v3042, 56
      %v3915 = vpop.permute.xlu0 %3914
      %3916 = vrot.lane.b32.xlu0 %v3043, 56
      %v3917 = vpop.permute.xlu0 %3916
      %3918 = vrot.lane.b32.xlu0 %v3044, 56
      %v3919 = vpop.permute.xlu0 %3918
      %3920 = vrot.lane.b32.xlu0 %v3045, 56
      %v3921 = vpop.permute.xlu0 %3920
      %3922 = vrot.lane.b32.xlu0 %v3046, 56
      %v3923 = vpop.permute.xlu0 %3922
      %3924 = vrot.lane.b32.xlu0 %v3047, 56
      %v3925 = vpop.permute.xlu0 %3924
      %3926 = vrot.lane.b32.xlu0 %v3048, 56
      %v3927 = vpop.permute.xlu0 %3926
      %3928 = vrot.lane.b32.xlu0 %v3049, 56
      %v3929 = vpop.permute.xlu0 %3928
      %3930 = vrot.lane.b32.xlu0 %v3050, 56
      %v3931 = vpop.permute.xlu0 %3930
      %3932 = vrot.lane.b32.xlu0 %v3051, 56
      %v3933 = vpop.permute.xlu0 %3932
      %3934 = vrot.lane.b32.xlu0 %v3052, 56
      %v3935 = vpop.permute.xlu0 %3934
      %3936 = vrot.lane.b32.xlu0 %v3053, 56
      %v3937 = vpop.permute.xlu0 %3936
      %3938 = vrot.lane.b32.xlu0 %v3054, 56
      %v3939 = vpop.permute.xlu0 %3938
      %3940 = vrot.lane.b32.xlu0 %v3055, 56
      %v3941 = vpop.permute.xlu0 %3940
      %3942 = vrot.lane.b32.xlu0 %v3056, 56
      %v3943 = vpop.permute.xlu0 %3942
      %3944 = vrot.lane.b32.xlu0 %v3057, 56
      %v3945 = vpop.permute.xlu0 %3944
      %3946 = vrot.lane.b32.xlu0 %v3058, 56
      %v3947 = vpop.permute.xlu0 %3946
      %3948 = vrot.lane.b32.xlu0 %v3059, 56
      %v3949 = vpop.permute.xlu0 %3948
      %3950 = vrot.lane.b32.xlu0 %v3060, 56
      %v3951 = vpop.permute.xlu0 %3950
      %3952 = vrot.lane.b32.xlu0 %v3061, 56
      %v3953 = vpop.permute.xlu0 %3952
      %3954 = vrot.lane.b32.xlu0 %v3062, 56
      %v3955 = vpop.permute.xlu0 %3954
      %3956 = vrot.lane.b32.xlu0 %v3063, 56
      %v3957 = vpop.permute.xlu0 %3956
      %3958 = vrot.lane.b32.xlu0 %v3064, 56
      %v3959 = vpop.permute.xlu0 %3958
      %3960 = vrot.lane.b32.xlu0 %v3065, 56
      %v3961 = vpop.permute.xlu0 %3960
      %4026 = vrot.lane.b32.xlu0 %v3066, 64
      %v4027 = vpop.permute.xlu0 %4026
      %4028 = vrot.lane.b32.xlu0 %v3067, 64
      %v4029 = vpop.permute.xlu0 %4028
      %4030 = vrot.lane.b32.xlu0 %v3068, 64
      %v4031 = vpop.permute.xlu0 %4030
      %4032 = vrot.lane.b32.xlu0 %v3069, 64
      %v4033 = vpop.permute.xlu0 %4032
      %4034 = vrot.lane.b32.xlu0 %v3070, 64
      %v4035 = vpop.permute.xlu0 %4034
      %4036 = vrot.lane.b32.xlu0 %v3071, 64
      %v4037 = vpop.permute.xlu0 %4036
      %4038 = vrot.lane.b32.xlu0 %v3072, 64
      %v4039 = vpop.permute.xlu0 %4038
      %4040 = vrot.lane.b32.xlu0 %v3073, 64
      %v4041 = vpop.permute.xlu0 %4040
      %4042 = vrot.lane.b32.xlu0 %v3074, 64
      %v4043 = vpop.permute.xlu0 %4042
      %4044 = vrot.lane.b32.xlu0 %v3075, 64
      %v4045 = vpop.permute.xlu0 %4044
      %4046 = vrot.lane.b32.xlu0 %v3076, 64
      %v4047 = vpop.permute.xlu0 %4046
      %4048 = vrot.lane.b32.xlu0 %v3077, 64
      %v4049 = vpop.permute.xlu0 %4048
      %4050 = vrot.lane.b32.xlu0 %v3078, 64
      %v4051 = vpop.permute.xlu0 %4050
      %4052 = vrot.lane.b32.xlu0 %v3079, 64
      %v4053 = vpop.permute.xlu0 %4052
      %4054 = vrot.lane.b32.xlu0 %v3080, 64
      %v4055 = vpop.permute.xlu0 %4054
      %4056 = vrot.lane.b32.xlu0 %v3081, 64
      %v4057 = vpop.permute.xlu0 %4056
      %4058 = vrot.lane.b32.xlu0 %v3082, 64
      %v4059 = vpop.permute.xlu0 %4058
      %4060 = vrot.lane.b32.xlu0 %v3083, 64
      %v4061 = vpop.permute.xlu0 %4060
      %4062 = vrot.lane.b32.xlu0 %v3084, 64
      %v4063 = vpop.permute.xlu0 %4062
      %4064 = vrot.lane.b32.xlu0 %v3085, 64
      %v4065 = vpop.permute.xlu0 %4064
      %4066 = vrot.lane.b32.xlu0 %v3086, 64
      %v4067 = vpop.permute.xlu0 %4066
      %4068 = vrot.lane.b32.xlu0 %v3087, 64
      %v4069 = vpop.permute.xlu0 %4068
      %4070 = vrot.lane.b32.xlu0 %v3088, 64
      %v4071 = vpop.permute.xlu0 %4070
      %4072 = vrot.lane.b32.xlu0 %v3089, 64
      %v4073 = vpop.permute.xlu0 %4072
      %4074 = vrot.lane.b32.xlu0 %v3090, 64
      %v4075 = vpop.permute.xlu0 %4074
      %4076 = vrot.lane.b32.xlu0 %v3091, 64
      %v4077 = vpop.permute.xlu0 %4076
      %4078 = vrot.lane.b32.xlu0 %v3092, 64
      %v4079 = vpop.permute.xlu0 %4078
      %4080 = vrot.lane.b32.xlu0 %v3093, 64
      %v4081 = vpop.permute.xlu0 %4080
      %4082 = vrot.lane.b32.xlu0 %v3094, 64
      %v4083 = vpop.permute.xlu0 %4082
      %4084 = vrot.lane.b32.xlu0 %v3095, 64
      %v4085 = vpop.permute.xlu0 %4084
      %4086 = vrot.lane.b32.xlu0 %v3096, 64
      %v4087 = vpop.permute.xlu0 %4086
      %4088 = vrot.lane.b32.xlu0 %v3097, 64
      %v4089 = vpop.permute.xlu0 %4088
      %v4122 = vsel %vm327, %v2809, %v3131
      %v4123 = vsel %vm327, %v2810, %v3133
      %v4124 = vsel %vm327, %v2811, %v3135
      %v4125 = vsel %vm327, %v2812, %v3137
      %v4126 = vsel %vm327, %v2813, %v3139
      %v4127 = vsel %vm327, %v2814, %v3141
      %v4128 = vsel %vm327, %v2815, %v3143
      %v4129 = vsel %vm327, %v2816, %v3145
      %v4130 = vsel %vm327, %v2817, %v3147
      %v4131 = vsel %vm327, %v2818, %v3149
      %v4132 = vsel %vm327, %v2819, %v3151
      %v4133 = vsel %vm327, %v2820, %v3153
      %v4134 = vsel %vm327, %v2821, %v3155
      %v4135 = vsel %vm327, %v2822, %v3157
      %v4136 = vsel %vm327, %v2823, %v3159
      %v4137 = vsel %vm327, %v2824, %v3161
      %v4138 = vsel %vm327, %v2825, %v3163
      %v4139 = vsel %vm327, %v2826, %v3165
      %v4140 = vsel %vm327, %v2827, %v3167
      %v4141 = vsel %vm327, %v2828, %v3169
      %v4142 = vsel %vm327, %v2829, %v3171
      %v4143 = vsel %vm327, %v2830, %v3173
      %v4144 = vsel %vm327, %v2831, %v3175
      %v4145 = vsel %vm327, %v2832, %v3177
      %v4146 = vsel %vm327, %v2833, %v3179
      %v4147 = vsel %vm327, %v2834, %v3181
      %v4148 = vsel %vm327, %v2835, %v3183
      %v4149 = vsel %vm327, %v2836, %v3185
      %v4150 = vsel %vm327, %v2837, %v3187
      %v4151 = vsel %vm327, %v2838, %v3189
      %v4152 = vsel %vm327, %v2839, %v3191
      %v4153 = vsel %vm327, %v2840, %v3193
      %v4154 = vsel %vm2114, %v4122, %v3259
      %v4155 = vsel %vm2114, %v4123, %v3261
      %v4156 = vsel %vm2114, %v4124, %v3263
      %v4157 = vsel %vm2114, %v4125, %v3265
      %v4158 = vsel %vm2114, %v4126, %v3267
      %v4159 = vsel %vm2114, %v4127, %v3269
      %v4160 = vsel %vm2114, %v4128, %v3271
      %v4161 = vsel %vm2114, %v4129, %v3273
      %v4162 = vsel %vm2114, %v4130, %v3275
      %v4163 = vsel %vm2114, %v4131, %v3277
      %v4164 = vsel %vm2114, %v4132, %v3279
      %v4165 = vsel %vm2114, %v4133, %v3281
      %v4166 = vsel %vm2114, %v4134, %v3283
      %v4167 = vsel %vm2114, %v4135, %v3285
      %v4168 = vsel %vm2114, %v4136, %v3287
      %v4169 = vsel %vm2114, %v4137, %v3289
      %v4170 = vsel %vm2114, %v4138, %v3291
      %v4171 = vsel %vm2114, %v4139, %v3293
      %v4172 = vsel %vm2114, %v4140, %v3295
      %v4173 = vsel %vm2114, %v4141, %v3297
      %v4174 = vsel %vm2114, %v4142, %v3299
      %v4175 = vsel %vm2114, %v4143, %v3301
      %v4176 = vsel %vm2114, %v4144, %v3303
      %v4177 = vsel %vm2114, %v4145, %v3305
      %v4178 = vsel %vm2114, %v4146, %v3307
      %v4179 = vsel %vm2114, %v4147, %v3309
      %v4180 = vsel %vm2114, %v4148, %v3311
      %v4181 = vsel %vm2114, %v4149, %v3313
      %v4182 = vsel %vm2114, %v4150, %v3315
      %v4183 = vsel %vm2114, %v4151, %v3317
      %v4184 = vsel %vm2114, %v4152, %v3319
      %v4185 = vsel %vm2114, %v4153, %v3321
      %v4186 = vsel %vm2147, %v4154, %v3387
      %v4187 = vsel %vm2147, %v4155, %v3389
      %v4188 = vsel %vm2147, %v4156, %v3391
      %v4189 = vsel %vm2147, %v4157, %v3393
      %v4190 = vsel %vm2147, %v4158, %v3395
      %v4191 = vsel %vm2147, %v4159, %v3397
      %v4192 = vsel %vm2147, %v4160, %v3399
      %v4193 = vsel %vm2147, %v4161, %v3401
      %v4194 = vsel %vm2147, %v4162, %v3403
      %v4195 = vsel %vm2147, %v4163, %v3405
      %v4196 = vsel %vm2147, %v4164, %v3407
      %v4197 = vsel %vm2147, %v4165, %v3409
      %v4198 = vsel %vm2147, %v4166, %v3411
      %v4199 = vsel %vm2147, %v4167, %v3413
      %v4200 = vsel %vm2147, %v4168, %v3415
      %v4201 = vsel %vm2147, %v4169, %v3417
      %v4202 = vsel %vm2147, %v4170, %v3419
      %v4203 = vsel %vm2147, %v4171, %v3421
      %v4204 = vsel %vm2147, %v4172, %v3423
      %v4205 = vsel %vm2147, %v4173, %v3425
      %v4206 = vsel %vm2147, %v4174, %v3427
      %v4207 = vsel %vm2147, %v4175, %v3429
      %v4208 = vsel %vm2147, %v4176, %v3431
      %v4209 = vsel %vm2147, %v4177, %v3433
      %v4210 = vsel %vm2147, %v4178, %v3435
      %v4211 = vsel %vm2147, %v4179, %v3437
      %v4212 = vsel %vm2147, %v4180, %v3439
      %v4213 = vsel %vm2147, %v4181, %v3441
      %v4214 = vsel %vm2147, %v4182, %v3443
      %v4215 = vsel %vm2147, %v4183, %v3445
      %v4216 = vsel %vm2147, %v4184, %v3447
      %v4217 = vsel %vm2147, %v4185, %v3449
      %v4218 = vsel %vm2180, %v4186, %v3515
      %v4219 = vsel %vm2180, %v4187, %v3517
      %v4220 = vsel %vm2180, %v4188, %v3519
      %v4221 = vsel %vm2180, %v4189, %v3521
      %v4222 = vsel %vm2180, %v4190, %v3523
      %v4223 = vsel %vm2180, %v4191, %v3525
      %v4224 = vsel %vm2180, %v4192, %v3527
      %v4225 = vsel %vm2180, %v4193, %v3529
      %v4226 = vsel %vm2180, %v4194, %v3531
      %v4227 = vsel %vm2180, %v4195, %v3533
      %v4228 = vsel %vm2180, %v4196, %v3535
      %v4229 = vsel %vm2180, %v4197, %v3537
      %v4230 = vsel %vm2180, %v4198, %v3539
      %v4231 = vsel %vm2180, %v4199, %v3541
      %v4232 = vsel %vm2180, %v4200, %v3543
      %v4233 = vsel %vm2180, %v4201, %v3545
      %v4234 = vsel %vm2180, %v4202, %v3547
      %v4235 = vsel %vm2180, %v4203, %v3549
      %v4236 = vsel %vm2180, %v4204, %v3551
      %v4237 = vsel %vm2180, %v4205, %v3553
      %v4238 = vsel %vm2180, %v4206, %v3555
      %v4239 = vsel %vm2180, %v4207, %v3557
      %v4240 = vsel %vm2180, %v4208, %v3559
      %v4241 = vsel %vm2180, %v4209, %v3561
      %v4242 = vsel %vm2180, %v4210, %v3563
      %v4243 = vsel %vm2180, %v4211, %v3565
      %v4244 = vsel %vm2180, %v4212, %v3567
      %v4245 = vsel %vm2180, %v4213, %v3569
      %v4246 = vsel %vm2180, %v4214, %v3571
      %v4247 = vsel %vm2180, %v4215, %v3573
      %v4248 = vsel %vm2180, %v4216, %v3575
      %v4249 = vsel %vm2180, %v4217, %v3577
      %v4250 = vsel %vm2213, %v4218, %v3643
      %v4251 = vsel %vm2213, %v4219, %v3645
      %v4252 = vsel %vm2213, %v4220, %v3647
      %v4253 = vsel %vm2213, %v4221, %v3649
      %v4254 = vsel %vm2213, %v4222, %v3651
      %v4255 = vsel %vm2213, %v4223, %v3653
      %v4256 = vsel %vm2213, %v4224, %v3655
      %v4257 = vsel %vm2213, %v4225, %v3657
      %v4258 = vsel %vm2213, %v4226, %v3659
      %v4259 = vsel %vm2213, %v4227, %v3661
      %v4260 = vsel %vm2213, %v4228, %v3663
      %v4261 = vsel %vm2213, %v4229, %v3665
      %v4262 = vsel %vm2213, %v4230, %v3667
      %v4263 = vsel %vm2213, %v4231, %v3669
      %v4264 = vsel %vm2213, %v4232, %v3671
      %v4265 = vsel %vm2213, %v4233, %v3673
      %v4266 = vsel %vm2213, %v4234, %v3675
      %v4267 = vsel %vm2213, %v4235, %v3677
      %v4268 = vsel %vm2213, %v4236, %v3679
      %v4269 = vsel %vm2213, %v4237, %v3681
      %v4270 = vsel %vm2213, %v4238, %v3683
      %v4271 = vsel %vm2213, %v4239, %v3685
      %v4272 = vsel %vm2213, %v4240, %v3687
      %v4273 = vsel %vm2213, %v4241, %v3689
      %v4274 = vsel %vm2213, %v4242, %v3691
      %v4275 = vsel %vm2213, %v4243, %v3693
      %v4276 = vsel %vm2213, %v4244, %v3695
      %v4277 = vsel %vm2213, %v4245, %v3697
      %v4278 = vsel %vm2213, %v4246, %v3699
      %v4279 = vsel %vm2213, %v4247, %v3701
      %v4280 = vsel %vm2213, %v4248, %v3703
      %v4281 = vsel %vm2213, %v4249, %v3705
      %v4282 = vsel %vm2246, %v4250, %v3771
      %v4283 = vsel %vm2246, %v4251, %v3773
      %v4284 = vsel %vm2246, %v4252, %v3775
      %v4285 = vsel %vm2246, %v4253, %v3777
      %v4286 = vsel %vm2246, %v4254, %v3779
      %v4287 = vsel %vm2246, %v4255, %v3781
      %v4288 = vsel %vm2246, %v4256, %v3783
      %v4289 = vsel %vm2246, %v4257, %v3785
      %v4290 = vsel %vm2246, %v4258, %v3787
      %v4291 = vsel %vm2246, %v4259, %v3789
      %v4292 = vsel %vm2246, %v4260, %v3791
      %v4293 = vsel %vm2246, %v4261, %v3793
      %v4294 = vsel %vm2246, %v4262, %v3795
      %v4295 = vsel %vm2246, %v4263, %v3797
      %v4296 = vsel %vm2246, %v4264, %v3799
      %v4297 = vsel %vm2246, %v4265, %v3801
      %v4298 = vsel %vm2246, %v4266, %v3803
      %v4299 = vsel %vm2246, %v4267, %v3805
      %v4300 = vsel %vm2246, %v4268, %v3807
      %v4301 = vsel %vm2246, %v4269, %v3809
      %v4302 = vsel %vm2246, %v4270, %v3811
      %v4303 = vsel %vm2246, %v4271, %v3813
      %v4304 = vsel %vm2246, %v4272, %v3815
      %v4305 = vsel %vm2246, %v4273, %v3817
      %v4306 = vsel %vm2246, %v4274, %v3819
      %v4307 = vsel %vm2246, %v4275, %v3821
      %v4308 = vsel %vm2246, %v4276, %v3823
      %v4309 = vsel %vm2246, %v4277, %v3825
      %v4310 = vsel %vm2246, %v4278, %v3827
      %v4311 = vsel %vm2246, %v4279, %v3829
      %v4312 = vsel %vm2246, %v4280, %v3831
      %v4313 = vsel %vm2246, %v4281, %v3833
      %v4314 = vsel %vm2279, %v4282, %v3899
      %v4315 = vsel %vm2279, %v4283, %v3901
      %v4316 = vsel %vm2279, %v4284, %v3903
      %v4317 = vsel %vm2279, %v4285, %v3905
      %v4318 = vsel %vm2279, %v4286, %v3907
      %v4319 = vsel %vm2279, %v4287, %v3909
      %v4320 = vsel %vm2279, %v4288, %v3911
      %v4321 = vsel %vm2279, %v4289, %v3913
      %v4322 = vsel %vm2279, %v4290, %v3915
      %v4323 = vsel %vm2279, %v4291, %v3917
      %v4324 = vsel %vm2279, %v4292, %v3919
      %v4325 = vsel %vm2279, %v4293, %v3921
      %v4326 = vsel %vm2279, %v4294, %v3923
      %v4327 = vsel %vm2279, %v4295, %v3925
      %v4328 = vsel %vm2279, %v4296, %v3927
      %v4329 = vsel %vm2279, %v4297, %v3929
      %v4330 = vsel %vm2279, %v4298, %v3931
      %v4331 = vsel %vm2279, %v4299, %v3933
      %v4332 = vsel %vm2279, %v4300, %v3935
      %v4333 = vsel %vm2279, %v4301, %v3937
      %v4334 = vsel %vm2279, %v4302, %v3939
      %v4335 = vsel %vm2279, %v4303, %v3941
      %v4336 = vsel %vm2279, %v4304, %v3943
      %v4337 = vsel %vm2279, %v4305, %v3945
      %v4338 = vsel %vm2279, %v4306, %v3947
      %v4339 = vsel %vm2279, %v4307, %v3949
      %v4340 = vsel %vm2279, %v4308, %v3951
      %v4341 = vsel %vm2279, %v4309, %v3953
      %v4342 = vsel %vm2279, %v4310, %v3955
      %v4343 = vsel %vm2279, %v4311, %v3957
      %v4344 = vsel %vm2279, %v4312, %v3959
      %v4345 = vsel %vm2279, %v4313, %v3961
      %v4346 = vsel %vm2312, %v4314, %v4027
      %v4347 = vsel %vm2312, %v4315, %v4029
      %v4348 = vsel %vm2312, %v4316, %v4031
      %v4349 = vsel %vm2312, %v4317, %v4033
      %v4350 = vsel %vm2312, %v4318, %v4035
      %v4351 = vsel %vm2312, %v4319, %v4037
      %v4352 = vsel %vm2312, %v4320, %v4039
      %v4353 = vsel %vm2312, %v4321, %v4041
      %v4354 = vsel %vm2312, %v4322, %v4043
      %v4355 = vsel %vm2312, %v4323, %v4045
      %v4356 = vsel %vm2312, %v4324, %v4047
      %v4357 = vsel %vm2312, %v4325, %v4049
      %v4358 = vsel %vm2312, %v4326, %v4051
      %v4359 = vsel %vm2312, %v4327, %v4053
      %v4360 = vsel %vm2312, %v4328, %v4055
      %v4361 = vsel %vm2312, %v4329, %v4057
      %v4362 = vsel %vm2312, %v4330, %v4059
      %v4363 = vsel %vm2312, %v4331, %v4061
      %v4364 = vsel %vm2312, %v4332, %v4063
      %v4365 = vsel %vm2312, %v4333, %v4065
      %v4366 = vsel %vm2312, %v4334, %v4067
      %v4367 = vsel %vm2312, %v4335, %v4069
      %v4368 = vsel %vm2312, %v4336, %v4071
      %v4369 = vsel %vm2312, %v4337, %v4073
      %v4370 = vsel %vm2312, %v4338, %v4075
      %v4371 = vsel %vm2312, %v4339, %v4077
      %v4372 = vsel %vm2312, %v4340, %v4079
      %v4373 = vsel %vm2312, %v4341, %v4081
      %v4374 = vsel %vm2312, %v4342, %v4083
      %v4375 = vsel %vm2312, %v4343, %v4085
      %v4376 = vsel %vm2312, %v4344, %v4087
      %v4377 = vsel %vm2312, %v4345, %v4089
      %v4378 = vpack.c.bf16 %v4347, %v4346
      %v4379 = vpack.c.bf16 %v4349, %v4348
      %v4380 = vpack.c.bf16 %v4351, %v4350
      %v4381 = vpack.c.bf16 %v4353, %v4352
      %v4382 = vpack.c.bf16 %v4355, %v4354
      %v4383 = vpack.c.bf16 %v4357, %v4356
      %v4384 = vpack.c.bf16 %v4359, %v4358
      %v4385 = vpack.c.bf16 %v4361, %v4360
      %v4386 = vpack.c.bf16 %v4363, %v4362
      %v4387 = vpack.c.bf16 %v4365, %v4364
      %v4388 = vpack.c.bf16 %v4367, %v4366
      %v4389 = vpack.c.bf16 %v4369, %v4368
      %v4390 = vpack.c.bf16 %v4371, %v4370
      %v4391 = vpack.c.bf16 %v4373, %v4372
      %v4392 = vpack.c.bf16 %v4375, %v4374
      %v4393 = vpack.c.bf16 %v4377, %v4376
      %v4395 = vsel %vm2397, %v2808, 0
      %v4398 = vsel %vm2397, %v4378, 0
      %v4401 = vsel %vm2397, %v4379, 0
      %v4404 = vsel %vm2397, %v4380, 0
      %v4407 = vsel %vm2397, %v4381, 0
      %v4410 = vsel %vm2397, %v4382, 0
      %v4413 = vsel %vm2397, %v4383, 0
      %v4416 = vsel %vm2397, %v4384, 0
      %v4419 = vsel %vm2397, %v4385, 0
      %v4422 = vsel %vm2397, %v4386, 0
      %v4425 = vsel %vm2397, %v4387, 0
      %v4428 = vsel %vm2397, %v4388, 0
      %v4431 = vsel %vm2397, %v4389, 0
      %v4434 = vsel %vm2397, %v4390, 0
      %v4437 = vsel %vm2397, %v4391, 0
      %v4440 = vsel %vm2397, %v4392, 0
      %v4443 = vsel %vm2397, %v4393, 0
      %4445 = vmatprep.subr.bf16.mxu0 0
      %4446 = vmatpush1.bf16.xpose.msra.mxu0 %v4419
      %4447 = vmatprep.subr.bf16.mxu0 0
      %4448 = vmatpush1.bf16.xpose.msra.mxu0 %v4416
      %4449 = vmatprep.subr.bf16.mxu0 0
      %4450 = vmatpush1.bf16.xpose.msra.mxu0 %v4413
      %4451 = vmatprep.subr.bf16.mxu0 0
      %4452 = vmatpush1.bf16.xpose.msra.mxu0 %v4410
      %4453 = vmatprep.subr.bf16.mxu0 0
      %4454 = vmatpush1.bf16.xpose.msra.mxu0 %v4407
      %4455 = vmatprep.subr.bf16.mxu0 0
      %4456 = vmatpush1.bf16.xpose.msra.mxu0 %v4404
      %4457 = vmatprep.subr.bf16.mxu0 0
      %4458 = vmatpush1.bf16.xpose.msra.mxu0 %v4401
      %4459 = vmatprep.subr.bf16.mxu0 0
      %4460 = vmatpush1.bf16.xpose.msra.mxu0 %v4398
      %4461 = vmatprep.subr.bf16.mxu0 0
      %4462 = vmatpush2.bf16.xpose.msra.mxu0 %v4443
      %4463 = vmatprep.subr.bf16.mxu0 0
      %4464 = vmatpush2.bf16.xpose.msra.mxu0 %v4440
      %4465 = vmatprep.subr.bf16.mxu0 0
      %4466 = vmatpush2.bf16.xpose.msra.mxu0 %v4437
      %4467 = vmatprep.subr.bf16.mxu0 0
      %4468 = vmatpush2.bf16.xpose.msra.mxu0 %v4434
      %4469 = vmatprep.subr.bf16.mxu0 0
      %4470 = vmatpush2.bf16.xpose.msra.mxu0 %v4431
      %4471 = vmatprep.subr.bf16.mxu0 0
      %4472 = vmatpush2.bf16.xpose.msra.mxu0 %v4428
      %4473 = vmatprep.subr.bf16.mxu0 0
      %4474 = vmatpush2.bf16.xpose.msra.mxu0 %v4425
      %4475 = vmatprep.subr.bf16.mxu0 0
      %4476 = vmatpush2.bf16.xpose.msra.mxu0 %v4422
      %4477 = vmatprep.mubr.bf16.mxu0 0
      %4478 = vmatmul.mubr.bf16.gmra.mxu0 %v4395
      %v4479 = vpop.f32.mrf.mxu0
      %v4480 = vadd.f32 0.0, %v4479
      %v4481 = vpop.f32.mrf.mxu0
      %v4482 = vadd.f32 0.0, %v4481
      %v4483 = vpop.f32.mrf.mxu0
      %v4484 = vpop.f32.mrf.mxu0
      %4485 = vdwg.mxu0
      %v4486 = vld [vmem:[%s6] sm:$0xff]
      %4488 = vset.pattern.permute.xlu0 0
      %4489 = vperm.xlu0 %4488, %v4486
      %v4490 = vpop.permute.xlu0 %4489
      %v4492 = vmul.f32 %v4480, %v4490
      %v4493 = vmul.f32 %v4482, %v4490
      %v4494 = vld [vmem:[%s7] sm:$0xff]
      %4496 = vset.pattern.permute.xlu0 0
      %4497 = vperm.xlu0 %4496, %v4494
      %v4498 = vpop.permute.xlu0 %4497
      %v4500 = vadd.f32 %v4492, %v4498
      %v4501 = vadd.f32 %v4493, %v4498
      %v4502 = vmax.f32 %v4500, 0.0
      %v4503 = vmax.f32 %v4501, 0.0
      %4504 = vst [vmem:[%s325] sm:$0xff] %v4502
      %4505 = vst [vmem:[%s325 + $0x8] sm:$0xff] %v4503
      %p4506 = scmp.lt.s32.totalorder %s19, 1
      %s4507 = scalar_select %p4506, %s19, 1
      %s4508 = smul.addr %s4507, 2
      %s4509 = smul.addr %s4508, 8
      %s4510 = scalar_lea.vmem %s8, %s4509
      // Predicated region
      $region53: #{decoder_block_forward.1} parent=51 // pred_check
        %p4511 = pneg %p215
      $region54: #{decoder_block_forward.1} parent=51 // pred_check_branch
        %4513 = sbr.rel (%p4511) target = $region56
      $region55: #{decoder_block_forward.1} parent=51 // pred_region
        _
      $region56: #{decoder_block_forward.1} parent=51 // pred_fallthru
        _
    $region52: #{decoder_block_forward.1} parent=5 // pred_fallthru
      _
    %p4514 = scmp.le.s32.totalorder 2, %s14
    // Predicated region
    $region57: #{decoder_block_forward.1} parent=5 // pred_check
      %p4515 = pneg %p4514
    $region58: #{decoder_block_forward.1} parent=5 // pred_check_branch
      %4517 = sbr.rel (%p4515) target = $region60
    $region59: #{decoder_block_forward.1} parent=5 // pred_region
      %s4518 = ssub.s32 %s14, 2
      // Predicated region
      $region61: #{decoder_block_forward.1} parent=59 // pred_check
        %p4519 = pneg %p221
      $region62: #{decoder_block_forward.1} parent=59 // pred_check_branch
        %4521 = sbr.rel (%p4519) target = $region64
      $region63: #{decoder_block_forward.1} parent=59 // pred_region
        %p4522 = scmp.lt.s32.totalorder %s20, 1
        %s4523 = scalar_select %p4522, %s20, 1
        %s4524 = smul.addr %s4523, 2
        %s4525 = smul.addr %s4524, 8
        %s4526 = scalar_lea.vmem %s8, %s4525
      $region64: #{decoder_block_forward.1} parent=59 // pred_fallthru
        _
    $region60: #{decoder_block_forward.1} parent=5 // pred_fallthru
      _
  $region6: #{decoder_block_forward.1} parent=0 // loop_footer
    %s18 = sadd.s32 1, %s14
  $region7: #{decoder_block_forward.1} parent=0 // loop_footer_branch
    %13 = sbr.rel target = $region3
  $region8: #{decoder_block_forward.1} parent=0 // loop_exit
    _

</llo_original>
